<compile_context>
chip_gen: v5e
topology: v5e:2x2
jax: 0.10.0
libtpu: 0.0.40
codegen_flags: <defaults>
</compile_context>

<pallas_src>
import functools

import jax
import jax.numpy as jnp
from jax.experimental import pallas as pl
from jax.experimental.pallas import tpu as pltpu

LANE = 128  # TPU lane width; all feature dims are padded to a multiple of this


def _round_up(n, m):
    return ((n + m - 1) // m) * m


def _pad2(a, rows, cols):
    r, c = a.shape
    if r == rows and c == cols:
        return a
    return jnp.pad(a, ((0, rows - r), (0, cols - c)))


# ----------------------------------------------------------------------------
# Kernel
# ----------------------------------------------------------------------------
def vae_kernel(
    x_ref, eps_ref,
    w_in_ref, b_in_ref, w_in2_ref, b_in2_ref,
    w_mv_ref, b_mv_ref,
    w_h_ref, b_h_ref, w_h2_ref, b_h2_ref, w_out_ref, b_out_ref,
    x_hat_ref, ml_ref,
    *, lat_p,
):
    cdt = w_in_ref.dtype  # bf16: MXU-input dtype (accumulation stays f32)

    def mm(a, w_ref, b_ref):
        return (
            jnp.dot(a.astype(cdt), w_ref[...], preferred_element_type=jnp.float32)
            + b_ref[...]
        )

    def lrelu(v):  # LeakyReLU(0.2): max(x, 0.2*x) == where(x>0, x, 0.2x)
        return jnp.maximum(v, 0.2 * v)

    x = x_ref[...]  # bf16 tile (already MXU dtype)

    # ---- Encoder ----
    h = lrelu(mm(x, w_in_ref, b_in_ref))
    h = lrelu(mm(h, w_in2_ref, b_in2_ref))

    # Fused mean / log_var projection: one lane-dense [TB, 2*lat_p] matmul.
    ml = mm(h, w_mv_ref, b_mv_ref)
    mean = ml[:, :lat_p]
    log_var = ml[:, lat_p:]

    # ---- Reparameterization (f32): z = mean + exp(0.5*log_var) * eps ----
    z = mean + jnp.exp(0.5 * log_var) * eps_ref[...]

    # ---- Decoder ----
    d = lrelu(mm(z, w_h_ref, b_h_ref))
    d = lrelu(mm(d, w_h2_ref, b_h2_ref))
    logits = mm(d, w_out_ref, b_out_ref)

    x_hat_ref[...] = jax.nn.sigmoid(logits).astype(x_hat_ref.dtype)
    ml_ref[...] = ml.astype(ml_ref.dtype)


# ----------------------------------------------------------------------------
# One-time weight preparation (hoisted out of the forward hot path)
# ----------------------------------------------------------------------------
def prepare_params(params, weight_dtype=jnp.bfloat16):
    """Pad weights to lane multiples, cast to bf16, fuse mean/log_var proj.
    Call once; reuse the result for every forward call."""
    input_dim, hidden_dim = params["w_in"].shape
    latent_dim = params["w_mean"].shape[1]
    in_p = _round_up(input_dim, LANE)
    h_p = _round_up(hidden_dim, LANE)
    lat_p = _round_up(latent_dim, LANE)

    def w(name, rows, cols):
        return _pad2(params[name], rows, cols).astype(weight_dtype)

    def b(name, cols):
        return _pad2(params[name], 1, cols).astype(jnp.float32)

    return dict(
        dims=(input_dim, hidden_dim, latent_dim, in_p, h_p, lat_p),
        weight_dtype=weight_dtype,
        w_in=w("w_in", in_p, h_p), b_in=b("b_in", h_p),
        w_in2=w("w_in2", h_p, h_p), b_in2=b("b_in2", h_p),
        w_mv=jnp.concatenate([w("w_mean", h_p, lat_p), w("w_var", h_p, lat_p)], axis=1),
        b_mv=jnp.concatenate([b("b_mean", lat_p), b("b_var", lat_p)], axis=1),
        w_h=w("w_h", lat_p, h_p), b_h=b("b_h", h_p),
        w_h2=w("w_h2", h_p, h_p), b_h2=b("b_h2", h_p),
        w_out=w("w_out", h_p, in_p), b_out=b("b_out", in_p),
    )


def _choose_batch_tile(B, block_b):
    """Batch-tile rows: multiple of 16 (bf16 sublane packing), >=2 grid steps
    whenever B > 16 (both v7x TensorCores get work), minimal padded rows."""
    if B <= 16:
        return _round_up(max(B, 1), 16)
    n = max(2, pl.cdiv(B, block_b))
    if n % 2:           # even tile count -> balanced split across 2 TCs
        n += 1
    return _round_up(pl.cdiv(B, n), 16)


# ----------------------------------------------------------------------------
# Forward wrapper
# ----------------------------------------------------------------------------
def vae_forward(x, eps, prepped, *, block_b=256, x_hat_dtype=jnp.float32):
    """x: [B, input_dim], eps: [B, latent_dim], prepped: prepare_params(...)."""
    input_dim, hidden_dim, latent_dim, in_p, h_p, lat_p = prepped["dims"]
    B = x.shape[0]

    tb = _choose_batch_tile(B, block_b)
    bp = _round_up(B, tb)
    num_tiles = bp // tb

    # Activations: x in bf16 (it is cast to the MXU dtype anyway), eps stays
    # f32 (feeds the f32 reparameterization).  Padded rows/cols are zero.
    x_p = _pad2(x.astype(jnp.float32), bp, in_p).astype(prepped["weight_dtype"])
    eps_p = _pad2(eps.astype(jnp.float32), bp, lat_p)

    weight_args = (
        prepped["w_in"], prepped["b_in"], prepped["w_in2"], prepped["b_in2"],
        prepped["w_mv"], prepped["b_mv"],
        prepped["w_h"], prepped["b_h"], prepped["w_h2"], prepped["b_h2"],
        prepped["w_out"], prepped["b_out"],
    )
    args = (x_p, eps_p) + weight_args

    out_shape = (
        jax.ShapeDtypeStruct((bp, in_p), x_hat_dtype),        # x_hat (padded)
        jax.ShapeDtypeStruct((bp, 2 * lat_p), jnp.float32),   # mean || log_var
    )
    # NOTE: padded batch rows of the outputs are dead (x_hat rows become 0.5
    # via sigmoid(bias-only)); they are sliced off below — never consume the
    # padded slabs directly.

    act_spec = lambda feat: pl.BlockSpec((tb, feat), lambda i: (i, 0))

    # Advisory cost estimate for the XLA scheduler.
    mm_elems = (in_p * h_p + h_p * h_p + h_p * 2 * lat_p
                + lat_p * h_p + h_p * h_p + h_p * in_p)
    weight_bytes = int(sum(a.size * a.dtype.itemsize for a in weight_args))
    bytes_accessed = int(
        x_p.size * x_p.dtype.itemsize + eps_p.size * 4 + weight_bytes
        + bp * in_p * jnp.dtype(x_hat_dtype).itemsize + bp * 2 * lat_p * 4)
    cost = pl.CostEstimate(
        flops=2 * bp * mm_elems,
        transcendentals=bp * (lat_p + in_p),   # exp (reparam) + sigmoid
        bytes_accessed=bytes_accessed,
    )

    # VMEM budget from actual buffers (weights worst-case double-buffered,
    # activation/output tiles double-buffered) + compiler scratch headroom.
    tile_bytes = tb * (in_p * x_p.dtype.itemsize + lat_p * 4
                       + in_p * jnp.dtype(x_hat_dtype).itemsize + 2 * lat_p * 4)
    vmem_limit = int(min(32 << 20,
                         max(16 << 20, 2 * weight_bytes + 2 * tile_bytes + (8 << 20))))

    def run(single_buffer_weights):
        if single_buffer_weights:
            # Constant block index -> a single VMEM buffer suffices; halves
            # the resident weight footprint vs. default double buffering.
            resident = lambda a: pl.BlockSpec(a.shape, lambda i: (0, 0),
                                              pipeline_mode=pl.Buffered(1))
        else:
            resident = lambda a: pl.BlockSpec(a.shape, lambda i: (0, 0))
        in_specs = [act_spec(in_p), act_spec(lat_p)] + [resident(a) for a in weight_args]
        out_specs = (act_spec(in_p), act_spec(2 * lat_p))
        return pl.pallas_call(
            functools.partial(vae_kernel, lat_p=lat_p),
            grid=(num_tiles,),
            in_specs=in_specs,
            out_specs=out_specs,
            out_shape=out_shape,
            compiler_params=pltpu.CompilerParams(
                dimension_semantics=("parallel",),
                vmem_limit_bytes=vmem_limit,
            ),
            cost_estimate=cost,
        )(*args)

    try:
        xh_p, ml_p = run(True)       # single-buffered resident weights
    except Exception:
        xh_p, ml_p = run(False)      # fallback: default double buffering

    x_hat = xh_p[:B, :input_dim]
    mean = ml_p[:B, :latent_dim]
    log_var = ml_p[:B, lat_p:lat_p + latent_dim]
    return x_hat, mean, log_var


# ----------------------------------------------------------------------------
# Init + pure-JAX reference
# ----------------------------------------------------------------------------
def init_params(key, input_dim, hidden_dim, latent_dim):
    """Deterministic init. Linear weights stored transposed: [in, out], f32."""
    def linear(k, fan_in, fan_out):
        kw, kb = jax.random.split(k)
        bound = 1.0 / jnp.sqrt(fan_in)
        w = jax.random.uniform(kw, (fan_in, fan_out), jnp.float32, -bound, bound)
        b = jax.random.uniform(kb, (1, fan_out), jnp.float32, -bound, bound)
        return w, b

    keys = jax.random.split(key, 7)
    p = {}
    # Encoder
    p["w_in"], p["b_in"] = linear(keys[0], input_dim, hidden_dim)
    p["w_in2"], p["b_in2"] = linear(keys[1], hidden_dim, hidden_dim)
    p["w_mean"], p["b_mean"] = linear(keys[2], hidden_dim, latent_dim)
    p["w_var"], p["b_var"] = linear(keys[3], hidden_dim, latent_dim)
    # Decoder
    p["w_h"], p["b_h"] = linear(keys[4], latent_dim, hidden_dim)
    p["w_h2"], p["b_h2"] = linear(keys[5], hidden_dim, hidden_dim)
    p["w_out"], p["b_out"] = linear(keys[6], hidden_dim, input_dim)
    return p


def ref_forward(x, eps, p, weight_dtype=jnp.bfloat16):
    """Pure-JAX reference matching the kernel's bf16-weight / f32-accumulate math."""
    lrelu = lambda v: jnp.where(v > 0, v, 0.2 * v)

    def mm(a, w, b):
        a16 = a.astype(weight_dtype).astype(jnp.float32)
        w16 = w.astype(weight_dtype).astype(jnp.float32)
        return a16 @ w16 + b

    h = lrelu(mm(x, p["w_in"], p["b_in"]))
    h = lrelu(mm(h, p["w_in2"], p["b_in2"]))
    mean = mm(h, p["w_mean"], p["b_mean"])
    log_var = mm(h, p["w_var"], p["b_var"])
    z = mean + jnp.exp(0.5 * log_var) * eps
    d = lrelu(mm(z, p["w_h"], p["b_h"]))
    d = lrelu(mm(d, p["w_h2"], p["b_h2"]))
    return jax.nn.sigmoid(mm(d, p["w_out"], p["b_out"])), mean, log_var


if __name__ == "__main__":
    # Small shapes consistent with the module (orig: input=784, hidden=400,
    # latent=200); chosen to exercise lane padding + the multi-tile batch grid.
    batch, input_dim, hidden_dim, latent_dim = 128, 112, 96, 48

    key = jax.random.PRNGKey(0)
    kx, keps, kp = jax.random.split(key, 3)

    x = jax.random.normal(kx, (batch, input_dim), jnp.float32)
    eps = jax.random.normal(keps, (batch, latent_dim), jnp.float32)
    params = init_params(kp, input_dim, hidden_dim, latent_dim)

    # One-time weight preparation (pad / bf16 cast / mean||log_var fuse).
    prepped = prepare_params(params)

    x_hat, mean, log_var = vae_forward(x, eps, prepped)
    jax.block_until_ready((x_hat, mean, log_var))

    r_xh, r_m, r_lv = ref_forward(x, eps, params)
    assert x_hat.shape == (batch, input_dim)
    assert mean.shape == (batch, latent_dim) and log_var.shape == (batch, latent_dim)
    assert jnp.allclose(x_hat, r_xh, atol=3e-3, rtol=3e-3), "x_hat mismatch"
    assert jnp.allclose(mean, r_m, atol=3e-3, rtol=3e-3), "mean mismatch"
    assert jnp.allclose(log_var, r_lv, atol=3e-3, rtol=3e-3), "log_var mismatch"

    print("KERNEL_OK")
</pallas_src>

<mosaic_0001>
module attributes {stable_mosaic.version = 11 : i64} {
  func.func @vae_kernel(%arg0: i32, %arg1: memref<64x128xbf16, #tpu.memory_space<vmem>>, %arg2: memref<64x128xf32, #tpu.memory_space<vmem>>, %arg3: memref<128x128xbf16, #tpu.memory_space<vmem>>, %arg4: memref<1x128xf32, #tpu.memory_space<vmem>>, %arg5: memref<128x128xbf16, #tpu.memory_space<vmem>>, %arg6: memref<1x128xf32, #tpu.memory_space<vmem>>, %arg7: memref<128x256xbf16, #tpu.memory_space<vmem>>, %arg8: memref<1x256xf32, #tpu.memory_space<vmem>>, %arg9: memref<128x128xbf16, #tpu.memory_space<vmem>>, %arg10: memref<1x128xf32, #tpu.memory_space<vmem>>, %arg11: memref<128x128xbf16, #tpu.memory_space<vmem>>, %arg12: memref<1x128xf32, #tpu.memory_space<vmem>>, %arg13: memref<128x128xbf16, #tpu.memory_space<vmem>>, %arg14: memref<1x128xf32, #tpu.memory_space<vmem>>, %arg15: memref<64x128xf32, #tpu.memory_space<vmem>>, %arg16: memref<64x256xf32, #tpu.memory_space<vmem>>) attributes {dimension_semantics = [#tpu.dimension_semantics<parallel>], iteration_bounds = array<i64: 2>, scalar_prefetch = 0 : i64, scratch_operands = 0 : i64, tpu.core_type = #tpu.core_type<tc>, window_params = [{transform_indices = @transform_0, window_bounds = array<i64: 64, 128>}, {transform_indices = @transform_1, window_bounds = array<i64: 64, 128>}, {pipeline_mode = #tpu.pipeline_mode<synchronous>, transform_indices = @transform_2, window_bounds = array<i64: 128, 128>}, {pipeline_mode = #tpu.pipeline_mode<synchronous>, transform_indices = @transform_3, window_bounds = array<i64: 1, 128>}, {pipeline_mode = #tpu.pipeline_mode<synchronous>, transform_indices = @transform_4, window_bounds = array<i64: 128, 128>}, {pipeline_mode = #tpu.pipeline_mode<synchronous>, transform_indices = @transform_5, window_bounds = array<i64: 1, 128>}, {pipeline_mode = #tpu.pipeline_mode<synchronous>, transform_indices = @transform_6, window_bounds = array<i64: 128, 256>}, {pipeline_mode = #tpu.pipeline_mode<synchronous>, transform_indices = @transform_7, window_bounds = array<i64: 1, 256>}, {pipeline_mode = #tpu.pipeline_mode<synchronous>, transform_indices = @transform_8, window_bounds = array<i64: 128, 128>}, {pipeline_mode = #tpu.pipeline_mode<synchronous>, transform_indices = @transform_9, window_bounds = array<i64: 1, 128>}, {pipeline_mode = #tpu.pipeline_mode<synchronous>, transform_indices = @transform_10, window_bounds = array<i64: 128, 128>}, {pipeline_mode = #tpu.pipeline_mode<synchronous>, transform_indices = @transform_11, window_bounds = array<i64: 1, 128>}, {pipeline_mode = #tpu.pipeline_mode<synchronous>, transform_indices = @transform_12, window_bounds = array<i64: 128, 128>}, {pipeline_mode = #tpu.pipeline_mode<synchronous>, transform_indices = @transform_13, window_bounds = array<i64: 1, 128>}, {transform_indices = @transform_14, window_bounds = array<i64: 64, 128>}, {transform_indices = @transform_15, window_bounds = array<i64: 64, 256>}]} {
    %c0 = arith.constant 0 : index
    %c0_0 = arith.constant 0 : index
    %0 = vector.load %arg1[%c0, %c0_0] : memref<64x128xbf16, #tpu.memory_space<vmem>>, vector<64x128xbf16>
    %c0_1 = arith.constant 0 : index
    %c0_2 = arith.constant 0 : index
    %1 = vector.load %arg3[%c0_1, %c0_2] : memref<128x128xbf16, #tpu.memory_space<vmem>>, vector<128x128xbf16>
    %cst = arith.constant dense<0.000000e+00> : vector<64x128xf32>
    %2 = tpu.matmul %0, %1, %cst {dimension_numbers = #tpu.dot_dimension_numbers<[1], [0], [0], [1], [0, 0, 1, 1], [], []>} : vector<64x128xbf16>, vector<128x128xbf16>, vector<64x128xf32> -> vector<64x128xf32>
    %c0_3 = arith.constant 0 : index
    %c0_4 = arith.constant 0 : index
    %3 = vector.load %arg4[%c0_3, %c0_4] : memref<1x128xf32, #tpu.memory_space<vmem>>, vector<1x128xf32>
    %4 = vector.broadcast %3 : vector<1x128xf32> to vector<64x128xf32>
    %5 = arith.addf %2, %4 : vector<64x128xf32>
    %cst_5 = arith.constant 2.000000e-01 : f32
    %6 = vector.broadcast %cst_5 : f32 to vector<64x128xf32>
    %7 = arith.mulf %6, %5 : vector<64x128xf32>
    %8 = arith.maximumf %5, %7 : vector<64x128xf32>
    %9 = arith.truncf %8 : vector<64x128xf32> to vector<64x128xbf16>
    %c0_6 = arith.constant 0 : index
    %c0_7 = arith.constant 0 : index
    %10 = vector.load %arg5[%c0_6, %c0_7] : memref<128x128xbf16, #tpu.memory_space<vmem>>, vector<128x128xbf16>
    %cst_8 = arith.constant dense<0.000000e+00> : vector<64x128xf32>
    %11 = tpu.matmul %9, %10, %cst_8 {dimension_numbers = #tpu.dot_dimension_numbers<[1], [0], [0], [1], [0, 0, 1, 1], [], []>} : vector<64x128xbf16>, vector<128x128xbf16>, vector<64x128xf32> -> vector<64x128xf32>
    %c0_9 = arith.constant 0 : index
    %c0_10 = arith.constant 0 : index
    %12 = vector.load %arg6[%c0_9, %c0_10] : memref<1x128xf32, #tpu.memory_space<vmem>>, vector<1x128xf32>
    %13 = vector.broadcast %12 : vector<1x128xf32> to vector<64x128xf32>
    %14 = arith.addf %11, %13 : vector<64x128xf32>
    %cst_11 = arith.constant 2.000000e-01 : f32
    %15 = vector.broadcast %cst_11 : f32 to vector<64x128xf32>
    %16 = arith.mulf %15, %14 : vector<64x128xf32>
    %17 = arith.maximumf %14, %16 : vector<64x128xf32>
    %18 = arith.truncf %17 : vector<64x128xf32> to vector<64x128xbf16>
    %c0_12 = arith.constant 0 : index
    %c0_13 = arith.constant 0 : index
    %19 = vector.load %arg7[%c0_12, %c0_13] : memref<128x256xbf16, #tpu.memory_space<vmem>>, vector<128x256xbf16>
    %cst_14 = arith.constant dense<0.000000e+00> : vector<64x256xf32>
    %20 = tpu.matmul %18, %19, %cst_14 {dimension_numbers = #tpu.dot_dimension_numbers<[1], [0], [0], [1], [0, 0, 1, 1], [], []>} : vector<64x128xbf16>, vector<128x256xbf16>, vector<64x256xf32> -> vector<64x256xf32>
    %c0_15 = arith.constant 0 : index
    %c0_16 = arith.constant 0 : index
    %21 = vector.load %arg8[%c0_15, %c0_16] : memref<1x256xf32, #tpu.memory_space<vmem>>, vector<1x256xf32>
    %22 = vector.broadcast %21 : vector<1x256xf32> to vector<64x256xf32>
    %23 = arith.addf %20, %22 : vector<64x256xf32>
    %24 = vector.extract_strided_slice %23 {offsets = [0, 0], sizes = [64, 128], strides = [1, 1]} : vector<64x256xf32> to vector<64x128xf32>
    %25 = vector.extract_strided_slice %23 {offsets = [0, 128], sizes = [64, 128], strides = [1, 1]} : vector<64x256xf32> to vector<64x128xf32>
    %cst_17 = arith.constant 5.000000e-01 : f32
    %26 = vector.broadcast %cst_17 : f32 to vector<64x128xf32>
    %27 = arith.mulf %26, %25 : vector<64x128xf32>
    %28 = math.exp %27 : vector<64x128xf32>
    %c0_18 = arith.constant 0 : index
    %c0_19 = arith.constant 0 : index
    %29 = vector.load %arg2[%c0_18, %c0_19] : memref<64x128xf32, #tpu.memory_space<vmem>>, vector<64x128xf32>
    %30 = arith.mulf %28, %29 : vector<64x128xf32>
    %31 = arith.addf %24, %30 : vector<64x128xf32>
    %32 = arith.truncf %31 : vector<64x128xf32> to vector<64x128xbf16>
    %c0_20 = arith.constant 0 : index
    %c0_21 = arith.constant 0 : index
    %33 = vector.load %arg9[%c0_20, %c0_21] : memref<128x128xbf16, #tpu.memory_space<vmem>>, vector<128x128xbf16>
    %cst_22 = arith.constant dense<0.000000e+00> : vector<64x128xf32>
    %34 = tpu.matmul %32, %33, %cst_22 {dimension_numbers = #tpu.dot_dimension_numbers<[1], [0], [0], [1], [0, 0, 1, 1], [], []>} : vector<64x128xbf16>, vector<128x128xbf16>, vector<64x128xf32> -> vector<64x128xf32>
    %c0_23 = arith.constant 0 : index
    %c0_24 = arith.constant 0 : index
    %35 = vector.load %arg10[%c0_23, %c0_24] : memref<1x128xf32, #tpu.memory_space<vmem>>, vector<1x128xf32>
    %36 = vector.broadcast %35 : vector<1x128xf32> to vector<64x128xf32>
    %37 = arith.addf %34, %36 : vector<64x128xf32>
    %cst_25 = arith.constant 2.000000e-01 : f32
    %38 = vector.broadcast %cst_25 : f32 to vector<64x128xf32>
    %39 = arith.mulf %38, %37 : vector<64x128xf32>
    %40 = arith.maximumf %37, %39 : vector<64x128xf32>
    %41 = arith.truncf %40 : vector<64x128xf32> to vector<64x128xbf16>
    %c0_26 = arith.constant 0 : index
    %c0_27 = arith.constant 0 : index
    %42 = vector.load %arg11[%c0_26, %c0_27] : memref<128x128xbf16, #tpu.memory_space<vmem>>, vector<128x128xbf16>
    %cst_28 = arith.constant dense<0.000000e+00> : vector<64x128xf32>
    %43 = tpu.matmul %41, %42, %cst_28 {dimension_numbers = #tpu.dot_dimension_numbers<[1], [0], [0], [1], [0, 0, 1, 1], [], []>} : vector<64x128xbf16>, vector<128x128xbf16>, vector<64x128xf32> -> vector<64x128xf32>
    %c0_29 = arith.constant 0 : index
    %c0_30 = arith.constant 0 : index
    %44 = vector.load %arg12[%c0_29, %c0_30] : memref<1x128xf32, #tpu.memory_space<vmem>>, vector<1x128xf32>
    %45 = vector.broadcast %44 : vector<1x128xf32> to vector<64x128xf32>
    %46 = arith.addf %43, %45 : vector<64x128xf32>
    %cst_31 = arith.constant 2.000000e-01 : f32
    %47 = vector.broadcast %cst_31 : f32 to vector<64x128xf32>
    %48 = arith.mulf %47, %46 : vector<64x128xf32>
    %49 = arith.maximumf %46, %48 : vector<64x128xf32>
    %50 = arith.truncf %49 : vector<64x128xf32> to vector<64x128xbf16>
    %c0_32 = arith.constant 0 : index
    %c0_33 = arith.constant 0 : index
    %51 = vector.load %arg13[%c0_32, %c0_33] : memref<128x128xbf16, #tpu.memory_space<vmem>>, vector<128x128xbf16>
    %cst_34 = arith.constant dense<0.000000e+00> : vector<64x128xf32>
    %52 = tpu.matmul %50, %51, %cst_34 {dimension_numbers = #tpu.dot_dimension_numbers<[1], [0], [0], [1], [0, 0, 1, 1], [], []>} : vector<64x128xbf16>, vector<128x128xbf16>, vector<64x128xf32> -> vector<64x128xf32>
    %c0_35 = arith.constant 0 : index
    %c0_36 = arith.constant 0 : index
    %53 = vector.load %arg14[%c0_35, %c0_36] : memref<1x128xf32, #tpu.memory_space<vmem>>, vector<1x128xf32>
    %54 = vector.broadcast %53 : vector<1x128xf32> to vector<64x128xf32>
    %55 = arith.addf %52, %54 : vector<64x128xf32>
    %56 = arith.negf %55 : vector<64x128xf32>
    %57 = math.exp %56 : vector<64x128xf32>
    %cst_37 = arith.constant 1.000000e+00 : f32
    %58 = vector.broadcast %cst_37 : f32 to vector<64x128xf32>
    %59 = arith.addf %58, %57 : vector<64x128xf32>
    %60 = arith.divf %58, %59 : vector<64x128xf32>
    %c0_38 = arith.constant 0 : index
    %c0_39 = arith.constant 0 : index
    %61 = vector.load %arg15[%c0_38, %c0_39] : memref<64x128xf32, #tpu.memory_space<vmem>>, vector<64x128xf32>
    tpu.vector_store %arg15[%c0_38, %c0_39], %60 {strides = array<i32>} : memref<64x128xf32, #tpu.memory_space<vmem>>, vector<64x128xf32>,
    %c0_40 = arith.constant 0 : index
    %c0_41 = arith.constant 0 : index
    %62 = vector.load %arg16[%c0_40, %c0_41] : memref<64x256xf32, #tpu.memory_space<vmem>>, vector<64x256xf32>
    tpu.vector_store %arg16[%c0_40, %c0_41], %23 {strides = array<i32>} : memref<64x256xf32, #tpu.memory_space<vmem>>, vector<64x256xf32>,
    return
  }
  func.func @transform_0(%arg0: i32) -> (i32, i32) {
    %c0_i32 = arith.constant 0 : i32
    %c0_i32_0 = arith.constant 0 : i32
    return %arg0, %c0_i32 : i32, i32
  }
  func.func @transform_1(%arg0: i32) -> (i32, i32) {
    %c0_i32 = arith.constant 0 : i32
    %c0_i32_0 = arith.constant 0 : i32
    return %arg0, %c0_i32 : i32, i32
  }
  func.func @transform_2(%arg0: i32) -> (i32, i32) {
    %c0_i32 = arith.constant 0 : i32
    %c0_i32_0 = arith.constant 0 : i32
    %c0_i32_1 = arith.constant 0 : i32
    return %c0_i32, %c0_i32_0 : i32, i32
  }
  func.func @transform_3(%arg0: i32) -> (i32, i32) {
    %c0_i32 = arith.constant 0 : i32
    %c0_i32_0 = arith.constant 0 : i32
    %c0_i32_1 = arith.constant 0 : i32
    return %c0_i32, %c0_i32_0 : i32, i32
  }
  func.func @transform_4(%arg0: i32) -> (i32, i32) {
    %c0_i32 = arith.constant 0 : i32
    %c0_i32_0 = arith.constant 0 : i32
    %c0_i32_1 = arith.constant 0 : i32
    return %c0_i32, %c0_i32_0 : i32, i32
  }
  func.func @transform_5(%arg0: i32) -> (i32, i32) {
    %c0_i32 = arith.constant 0 : i32
    %c0_i32_0 = arith.constant 0 : i32
    %c0_i32_1 = arith.constant 0 : i32
    return %c0_i32, %c0_i32_0 : i32, i32
  }
  func.func @transform_6(%arg0: i32) -> (i32, i32) {
    %c0_i32 = arith.constant 0 : i32
    %c0_i32_0 = arith.constant 0 : i32
    %c0_i32_1 = arith.constant 0 : i32
    return %c0_i32, %c0_i32_0 : i32, i32
  }
  func.func @transform_7(%arg0: i32) -> (i32, i32) {
    %c0_i32 = arith.constant 0 : i32
    %c0_i32_0 = arith.constant 0 : i32
    %c0_i32_1 = arith.constant 0 : i32
    return %c0_i32, %c0_i32_0 : i32, i32
  }
  func.func @transform_8(%arg0: i32) -> (i32, i32) {
    %c0_i32 = arith.constant 0 : i32
    %c0_i32_0 = arith.constant 0 : i32
    %c0_i32_1 = arith.constant 0 : i32
    return %c0_i32, %c0_i32_0 : i32, i32
  }
  func.func @transform_9(%arg0: i32) -> (i32, i32) {
    %c0_i32 = arith.constant 0 : i32
    %c0_i32_0 = arith.constant 0 : i32
    %c0_i32_1 = arith.constant 0 : i32
    return %c0_i32, %c0_i32_0 : i32, i32
  }
  func.func @transform_10(%arg0: i32) -> (i32, i32) {
    %c0_i32 = arith.constant 0 : i32
    %c0_i32_0 = arith.constant 0 : i32
    %c0_i32_1 = arith.constant 0 : i32
    return %c0_i32, %c0_i32_0 : i32, i32
  }
  func.func @transform_11(%arg0: i32) -> (i32, i32) {
    %c0_i32 = arith.constant 0 : i32
    %c0_i32_0 = arith.constant 0 : i32
    %c0_i32_1 = arith.constant 0 : i32
    return %c0_i32, %c0_i32_0 : i32, i32
  }
  func.func @transform_12(%arg0: i32) -> (i32, i32) {
    %c0_i32 = arith.constant 0 : i32
    %c0_i32_0 = arith.constant 0 : i32
    %c0_i32_1 = arith.constant 0 : i32
    return %c0_i32, %c0_i32_0 : i32, i32
  }
  func.func @transform_13(%arg0: i32) -> (i32, i32) {
    %c0_i32 = arith.constant 0 : i32
    %c0_i32_0 = arith.constant 0 : i32
    %c0_i32_1 = arith.constant 0 : i32
    return %c0_i32, %c0_i32_0 : i32, i32
  }
  func.func @transform_14(%arg0: i32) -> (i32, i32) {
    %c0_i32 = arith.constant 0 : i32
    %c0_i32_0 = arith.constant 0 : i32
    return %arg0, %c0_i32 : i32, i32
  }
  func.func @transform_15(%arg0: i32) -> (i32, i32) {
    %c0_i32 = arith.constant 0 : i32
    %c0_i32_0 = arith.constant 0 : i32
    return %arg0, %c0_i32 : i32, i32
  }
}

module attributes {stable_mosaic.version = 11 : i64} {
  func.func @vae_kernel(%arg0: i32, %arg1: memref<64x128xbf16, #tpu.memory_space<vmem>>, %arg2: memref<64x128xf32, #tpu.memory_space<vmem>>, %arg3: memref<128x128xbf16, #tpu.memory_space<vmem>>, %arg4: memref<1x128xf32, #tpu.memory_space<vmem>>, %arg5: memref<128x128xbf16, #tpu.memory_space<vmem>>, %arg6: memref<1x128xf32, #tpu.memory_space<vmem>>, %arg7: memref<128x256xbf16, #tpu.memory_space<vmem>>, %arg8: memref<1x256xf32, #tpu.memory_space<vmem>>, %arg9: memref<128x128xbf16, #tpu.memory_space<vmem>>, %arg10: memref<1x128xf32, #tpu.memory_space<vmem>>, %arg11: memref<128x128xbf16, #tpu.memory_space<vmem>>, %arg12: memref<1x128xf32, #tpu.memory_space<vmem>>, %arg13: memref<128x128xbf16, #tpu.memory_space<vmem>>, %arg14: memref<1x128xf32, #tpu.memory_space<vmem>>, %arg15: memref<64x128xf32, #tpu.memory_space<vmem>>, %arg16: memref<64x256xf32, #tpu.memory_space<vmem>>) attributes {dimension_semantics = [#tpu.dimension_semantics<parallel>], iteration_bounds = array<i64: 2>, scalar_prefetch = 0 : i64, scratch_operands = 0 : i64, tpu.core_type = #tpu.core_type<tc>, window_params = [{transform_indices = @transform_0, window_bounds = array<i64: 64, 128>}, {transform_indices = @transform_1, window_bounds = array<i64: 64, 128>}, {pipeline_mode = #tpu.pipeline_mode<synchronous>, transform_indices = @transform_2, window_bounds = array<i64: 128, 128>}, {pipeline_mode = #tpu.pipeline_mode<synchronous>, transform_indices = @transform_3, window_bounds = array<i64: 1, 128>}, {pipeline_mode = #tpu.pipeline_mode<synchronous>, transform_indices = @transform_4, window_bounds = array<i64: 128, 128>}, {pipeline_mode = #tpu.pipeline_mode<synchronous>, transform_indices = @transform_5, window_bounds = array<i64: 1, 128>}, {pipeline_mode = #tpu.pipeline_mode<synchronous>, transform_indices = @transform_6, window_bounds = array<i64: 128, 256>}, {pipeline_mode = #tpu.pipeline_mode<synchronous>, transform_indices = @transform_7, window_bounds = array<i64: 1, 256>}, {pipeline_mode = #tpu.pipeline_mode<synchronous>, transform_indices = @transform_8, window_bounds = array<i64: 128, 128>}, {pipeline_mode = #tpu.pipeline_mode<synchronous>, transform_indices = @transform_9, window_bounds = array<i64: 1, 128>}, {pipeline_mode = #tpu.pipeline_mode<synchronous>, transform_indices = @transform_10, window_bounds = array<i64: 128, 128>}, {pipeline_mode = #tpu.pipeline_mode<synchronous>, transform_indices = @transform_11, window_bounds = array<i64: 1, 128>}, {pipeline_mode = #tpu.pipeline_mode<synchronous>, transform_indices = @transform_12, window_bounds = array<i64: 128, 128>}, {pipeline_mode = #tpu.pipeline_mode<synchronous>, transform_indices = @transform_13, window_bounds = array<i64: 1, 128>}, {transform_indices = @transform_14, window_bounds = array<i64: 64, 128>}, {transform_indices = @transform_15, window_bounds = array<i64: 64, 256>}]} {
    %c0 = arith.constant 0 : index
    %c0_0 = arith.constant 0 : index
    %0 = vector.load %arg1[%c0, %c0_0] : memref<64x128xbf16, #tpu.memory_space<vmem>>, vector<64x128xbf16>
    %c0_1 = arith.constant 0 : index
    %c0_2 = arith.constant 0 : index
    %1 = vector.load %arg3[%c0_1, %c0_2] : memref<128x128xbf16, #tpu.memory_space<vmem>>, vector<128x128xbf16>
    %cst = arith.constant dense<0.000000e+00> : vector<64x128xf32>
    %2 = tpu.matmul %0, %1, %cst {dimension_numbers = #tpu.dot_dimension_numbers<[1], [0], [0], [1], [0, 0, 1, 1], [], []>} : vector<64x128xbf16>, vector<128x128xbf16>, vector<64x128xf32> -> vector<64x128xf32>
    %c0_3 = arith.constant 0 : index
    %c0_4 = arith.constant 0 : index
    %3 = vector.load %arg4[%c0_3, %c0_4] : memref<1x128xf32, #tpu.memory_space<vmem>>, vector<1x128xf32>
    %4 = vector.broadcast %3 : vector<1x128xf32> to vector<64x128xf32>
    %5 = arith.addf %2, %4 : vector<64x128xf32>
    %cst_5 = arith.constant 2.000000e-01 : f32
    %6 = vector.broadcast %cst_5 : f32 to vector<64x128xf32>
    %7 = arith.mulf %6, %5 : vector<64x128xf32>
    %8 = arith.maximumf %5, %7 : vector<64x128xf32>
    %9 = arith.truncf %8 : vector<64x128xf32> to vector<64x128xbf16>
    %c0_6 = arith.constant 0 : index
    %c0_7 = arith.constant 0 : index
    %10 = vector.load %arg5[%c0_6, %c0_7] : memref<128x128xbf16, #tpu.memory_space<vmem>>, vector<128x128xbf16>
    %cst_8 = arith.constant dense<0.000000e+00> : vector<64x128xf32>
    %11 = tpu.matmul %9, %10, %cst_8 {dimension_numbers = #tpu.dot_dimension_numbers<[1], [0], [0], [1], [0, 0, 1, 1], [], []>} : vector<64x128xbf16>, vector<128x128xbf16>, vector<64x128xf32> -> vector<64x128xf32>
    %c0_9 = arith.constant 0 : index
    %c0_10 = arith.constant 0 : index
    %12 = vector.load %arg6[%c0_9, %c0_10] : memref<1x128xf32, #tpu.memory_space<vmem>>, vector<1x128xf32>
    %13 = vector.broadcast %12 : vector<1x128xf32> to vector<64x128xf32>
    %14 = arith.addf %11, %13 : vector<64x128xf32>
    %cst_11 = arith.constant 2.000000e-01 : f32
    %15 = vector.broadcast %cst_11 : f32 to vector<64x128xf32>
    %16 = arith.mulf %15, %14 : vector<64x128xf32>
    %17 = arith.maximumf %14, %16 : vector<64x128xf32>
    %18 = arith.truncf %17 : vector<64x128xf32> to vector<64x128xbf16>
    %c0_12 = arith.constant 0 : index
    %c0_13 = arith.constant 0 : index
    %19 = vector.load %arg7[%c0_12, %c0_13] : memref<128x256xbf16, #tpu.memory_space<vmem>>, vector<128x256xbf16>
    %cst_14 = arith.constant dense<0.000000e+00> : vector<64x256xf32>
    %20 = tpu.matmul %18, %19, %cst_14 {dimension_numbers = #tpu.dot_dimension_numbers<[1], [0], [0], [1], [0, 0, 1, 1], [], []>} : vector<64x128xbf16>, vector<128x256xbf16>, vector<64x256xf32> -> vector<64x256xf32>
    %c0_15 = arith.constant 0 : index
    %c0_16 = arith.constant 0 : index
    %21 = vector.load %arg8[%c0_15, %c0_16] : memref<1x256xf32, #tpu.memory_space<vmem>>, vector<1x256xf32>
    %22 = vector.broadcast %21 : vector<1x256xf32> to vector<64x256xf32>
    %23 = arith.addf %20, %22 : vector<64x256xf32>
    %24 = vector.extract_strided_slice %23 {offsets = [0, 0], sizes = [64, 128], strides = [1, 1]} : vector<64x256xf32> to vector<64x128xf32>
    %25 = vector.extract_strided_slice %23 {offsets = [0, 128], sizes = [64, 128], strides = [1, 1]} : vector<64x256xf32> to vector<64x128xf32>
    %cst_17 = arith.constant 5.000000e-01 : f32
    %26 = vector.broadcast %cst_17 : f32 to vector<64x128xf32>
    %27 = arith.mulf %26, %25 : vector<64x128xf32>
    %28 = math.exp %27 : vector<64x128xf32>
    %c0_18 = arith.constant 0 : index
    %c0_19 = arith.constant 0 : index
    %29 = vector.load %arg2[%c0_18, %c0_19] : memref<64x128xf32, #tpu.memory_space<vmem>>, vector<64x128xf32>
    %30 = arith.mulf %28, %29 : vector<64x128xf32>
    %31 = arith.addf %24, %30 : vector<64x128xf32>
    %32 = arith.truncf %31 : vector<64x128xf32> to vector<64x128xbf16>
    %c0_20 = arith.constant 0 : index
    %c0_21 = arith.constant 0 : index
    %33 = vector.load %arg9[%c0_20, %c0_21] : memref<128x128xbf16, #tpu.memory_space<vmem>>, vector<128x128xbf16>
    %cst_22 = arith.constant dense<0.000000e+00> : vector<64x128xf32>
    %34 = tpu.matmul %32, %33, %cst_22 {dimension_numbers = #tpu.dot_dimension_numbers<[1], [0], [0], [1], [0, 0, 1, 1], [], []>} : vector<64x128xbf16>, vector<128x128xbf16>, vector<64x128xf32> -> vector<64x128xf32>
    %c0_23 = arith.constant 0 : index
    %c0_24 = arith.constant 0 : index
    %35 = vector.load %arg10[%c0_23, %c0_24] : memref<1x128xf32, #tpu.memory_space<vmem>>, vector<1x128xf32>
    %36 = vector.broadcast %35 : vector<1x128xf32> to vector<64x128xf32>
    %37 = arith.addf %34, %36 : vector<64x128xf32>
    %cst_25 = arith.constant 2.000000e-01 : f32
    %38 = vector.broadcast %cst_25 : f32 to vector<64x128xf32>
    %39 = arith.mulf %38, %37 : vector<64x128xf32>
    %40 = arith.maximumf %37, %39 : vector<64x128xf32>
    %41 = arith.truncf %40 : vector<64x128xf32> to vector<64x128xbf16>
    %c0_26 = arith.constant 0 : index
    %c0_27 = arith.constant 0 : index
    %42 = vector.load %arg11[%c0_26, %c0_27] : memref<128x128xbf16, #tpu.memory_space<vmem>>, vector<128x128xbf16>
    %cst_28 = arith.constant dense<0.000000e+00> : vector<64x128xf32>
    %43 = tpu.matmul %41, %42, %cst_28 {dimension_numbers = #tpu.dot_dimension_numbers<[1], [0], [0], [1], [0, 0, 1, 1], [], []>} : vector<64x128xbf16>, vector<128x128xbf16>, vector<64x128xf32> -> vector<64x128xf32>
    %c0_29 = arith.constant 0 : index
    %c0_30 = arith.constant 0 : index
    %44 = vector.load %arg12[%c0_29, %c0_30] : memref<1x128xf32, #tpu.memory_space<vmem>>, vector<1x128xf32>
    %45 = vector.broadcast %44 : vector<1x128xf32> to vector<64x128xf32>
    %46 = arith.addf %43, %45 : vector<64x128xf32>
    %cst_31 = arith.constant 2.000000e-01 : f32
    %47 = vector.broadcast %cst_31 : f32 to vector<64x128xf32>
    %48 = arith.mulf %47, %46 : vector<64x128xf32>
    %49 = arith.maximumf %46, %48 : vector<64x128xf32>
    %50 = arith.truncf %49 : vector<64x128xf32> to vector<64x128xbf16>
    %c0_32 = arith.constant 0 : index
    %c0_33 = arith.constant 0 : index
    %51 = vector.load %arg13[%c0_32, %c0_33] : memref<128x128xbf16, #tpu.memory_space<vmem>>, vector<128x128xbf16>
    %cst_34 = arith.constant dense<0.000000e+00> : vector<64x128xf32>
    %52 = tpu.matmul %50, %51, %cst_34 {dimension_numbers = #tpu.dot_dimension_numbers<[1], [0], [0], [1], [0, 0, 1, 1], [], []>} : vector<64x128xbf16>, vector<128x128xbf16>, vector<64x128xf32> -> vector<64x128xf32>
    %c0_35 = arith.constant 0 : index
    %c0_36 = arith.constant 0 : index
    %53 = vector.load %arg14[%c0_35, %c0_36] : memref<1x128xf32, #tpu.memory_space<vmem>>, vector<1x128xf32>
    %54 = vector.broadcast %53 : vector<1x128xf32> to vector<64x128xf32>
    %55 = arith.addf %52, %54 : vector<64x128xf32>
    %56 = arith.negf %55 : vector<64x128xf32>
    %57 = math.exp %56 : vector<64x128xf32>
    %cst_37 = arith.constant 1.000000e+00 : f32
    %58 = vector.broadcast %cst_37 : f32 to vector<64x128xf32>
    %59 = arith.addf %58, %57 : vector<64x128xf32>
    %60 = arith.divf %58, %59 : vector<64x128xf32>
    %c0_38 = arith.constant 0 : index
    %c0_39 = arith.constant 0 : index
    %61 = vector.load %arg15[%c0_38, %c0_39] : memref<64x128xf32, #tpu.memory_space<vmem>>, vector<64x128xf32>
    tpu.vector_store %arg15[%c0_38, %c0_39], %60 {strides = array<i32>} : memref<64x128xf32, #tpu.memory_space<vmem>>, vector<64x128xf32>,
    %c0_40 = arith.constant 0 : index
    %c0_41 = arith.constant 0 : index
    %62 = vector.load %arg16[%c0_40, %c0_41] : memref<64x256xf32, #tpu.memory_space<vmem>>, vector<64x256xf32>
    tpu.vector_store %arg16[%c0_40, %c0_41], %23 {strides = array<i32>} : memref<64x256xf32, #tpu.memory_space<vmem>>, vector<64x256xf32>,
    return
  }
  func.func @transform_0(%arg0: i32) -> (i32, i32) {
    %c0_i32 = arith.constant 0 : i32
    %c0_i32_0 = arith.constant 0 : i32
    return %arg0, %c0_i32 : i32, i32
  }
  func.func @transform_1(%arg0: i32) -> (i32, i32) {
    %c0_i32 = arith.constant 0 : i32
    %c0_i32_0 = arith.constant 0 : i32
    return %arg0, %c0_i32 : i32, i32
  }
  func.func @transform_2(%arg0: i32) -> (i32, i32) {
    %c0_i32 = arith.constant 0 : i32
    %c0_i32_0 = arith.constant 0 : i32
    %c0_i32_1 = arith.constant 0 : i32
    return %c0_i32, %c0_i32_0 : i32, i32
  }
  func.func @transform_3(%arg0: i32) -> (i32, i32) {
    %c0_i32 = arith.constant 0 : i32
    %c0_i32_0 = arith.constant 0 : i32
    %c0_i32_1 = arith.constant 0 : i32
    return %c0_i32, %c0_i32_0 : i32, i32
  }
  func.func @transform_4(%arg0: i32) -> (i32, i32) {
    %c0_i32 = arith.constant 0 : i32
    %c0_i32_0 = arith.constant 0 : i32
    %c0_i32_1 = arith.constant 0 : i32
    return %c0_i32, %c0_i32_0 : i32, i32
  }
  func.func @transform_5(%arg0: i32) -> (i32, i32) {
    %c0_i32 = arith.constant 0 : i32
    %c0_i32_0 = arith.constant 0 : i32
    %c0_i32_1 = arith.constant 0 : i32
    return %c0_i32, %c0_i32_0 : i32, i32
  }
  func.func @transform_6(%arg0: i32) -> (i32, i32) {
    %c0_i32 = arith.constant 0 : i32
    %c0_i32_0 = arith.constant 0 : i32
    %c0_i32_1 = arith.constant 0 : i32
    return %c0_i32, %c0_i32_0 : i32, i32
  }
  func.func @transform_7(%arg0: i32) -> (i32, i32) {
    %c0_i32 = arith.constant 0 : i32
    %c0_i32_0 = arith.constant 0 : i32
    %c0_i32_1 = arith.constant 0 : i32
    return %c0_i32, %c0_i32_0 : i32, i32
  }
  func.func @transform_8(%arg0: i32) -> (i32, i32) {
    %c0_i32 = arith.constant 0 : i32
    %c0_i32_0 = arith.constant 0 : i32
    %c0_i32_1 = arith.constant 0 : i32
    return %c0_i32, %c0_i32_0 : i32, i32
  }
  func.func @transform_9(%arg0: i32) -> (i32, i32) {
    %c0_i32 = arith.constant 0 : i32
    %c0_i32_0 = arith.constant 0 : i32
    %c0_i32_1 = arith.constant 0 : i32
    return %c0_i32, %c0_i32_0 : i32, i32
  }
  func.func @transform_10(%arg0: i32) -> (i32, i32) {
    %c0_i32 = arith.constant 0 : i32
    %c0_i32_0 = arith.constant 0 : i32
    %c0_i32_1 = arith.constant 0 : i32
    return %c0_i32, %c0_i32_0 : i32, i32
  }
  func.func @transform_11(%arg0: i32) -> (i32, i32) {
    %c0_i32 = arith.constant 0 : i32
    %c0_i32_0 = arith.constant 0 : i32
    %c0_i32_1 = arith.constant 0 : i32
    return %c0_i32, %c0_i32_0 : i32, i32
  }
  func.func @transform_12(%arg0: i32) -> (i32, i32) {
    %c0_i32 = arith.constant 0 : i32
    %c0_i32_0 = arith.constant 0 : i32
    %c0_i32_1 = arith.constant 0 : i32
    return %c0_i32, %c0_i32_0 : i32, i32
  }
  func.func @transform_13(%arg0: i32) -> (i32, i32) {
    %c0_i32 = arith.constant 0 : i32
    %c0_i32_0 = arith.constant 0 : i32
    %c0_i32_1 = arith.constant 0 : i32
    return %c0_i32, %c0_i32_0 : i32, i32
  }
  func.func @transform_14(%arg0: i32) -> (i32, i32) {
    %c0_i32 = arith.constant 0 : i32
    %c0_i32_0 = arith.constant 0 : i32
    return %arg0, %c0_i32 : i32, i32
  }
  func.func @transform_15(%arg0: i32) -> (i32, i32) {
    %c0_i32 = arith.constant 0 : i32
    %c0_i32_0 = arith.constant 0 : i32
    return %arg0, %c0_i32 : i32, i32
  }
}

</mosaic_0001>

<llo_original>
// kernel: tpu_custom_call.1
$region0: #{tpu_custom_call.1}
  #allocation0 [shape = 'u32[]', space=smem, size = 0x4, offset = 0x4, fixed_abs, tag = 'smem constant byte address 0x4 - core index']
  #allocation1 [shape = 'u32[72,128]{1,0:T(1,128)}', space=vmem, size = 0x9000, scoped, tag = 'internal scratch']
  %s0 = inlined_call_operand.hbm [shape: bf16[128,128], index: 0, kind: input, shape index: {}]
  %s1 = inlined_call_operand.hbm [shape: f32[128,128], index: 1, kind: input, shape index: {}]
  %s2 = inlined_call_operand.hbm [shape: bf16[128,128], index: 2, kind: input, shape index: {}]
  %s3 = inlined_call_operand.vmem [shape: f32[1,128], index: 3, kind: input, shape index: {}]
  %s4 = inlined_call_operand.hbm [shape: bf16[128,128], index: 4, kind: input, shape index: {}]
  %s5 = inlined_call_operand.vmem [shape: f32[1,128], index: 5, kind: input, shape index: {}]
  %s6 = inlined_call_operand.hbm [shape: bf16[128,256], index: 6, kind: input, shape index: {}]
  %s7 = inlined_call_operand.vmem [shape: f32[1,256], index: 7, kind: input, shape index: {}]
  %s8 = inlined_call_operand.hbm [shape: bf16[128,128], index: 8, kind: input, shape index: {}]
  %s9 = inlined_call_operand.vmem [shape: f32[1,128], index: 9, kind: input, shape index: {}]
  %s10 = inlined_call_operand.hbm [shape: bf16[128,128], index: 10, kind: input, shape index: {}]
  %s11 = inlined_call_operand.vmem [shape: f32[1,128], index: 11, kind: input, shape index: {}]
  %s12 = inlined_call_operand.hbm [shape: bf16[128,128], index: 12, kind: input, shape index: {}]
  %s13 = inlined_call_operand.vmem [shape: f32[1,128], index: 13, kind: input, shape index: {}]
  %s14 = inlined_call_operand.hbm [shape: f32[128,128], index: 14, kind: output, shape index: {0}]
  %s15 = inlined_call_operand.hbm [shape: f32[128,256], index: 15, kind: output, shape index: {1}]
  %16 = xla_tuple %s14, %s15
  %s17 = sld [smem:[#allocation0]]
  $region129: #{tpu_custom_call.1} parent=0
    _
  %s19 = ssub.s32 1, %s17
  %s20 = scalar_select 0, %s19, %s17
  $region1: #{tpu_custom_call.1} parent=0
    #allocation2 [shape = 'u8[32768]{0}', space=vmem, size = 0x8000, scoped, tag = 'input window, operand 0']
    #allocation3 [shape = 's32[2]{0}', space=sflag, size = 0x8, scoped, tag = 'scoped memory for tpu_custom_call.1']
    #allocation4 [shape = 's32[2]{0}', space=sflag, size = 0x8, scoped, tag = 'scoped memory for tpu_custom_call.1']
    #allocation5 [shape = 'u8[65536]{0}', space=vmem, size = 0x10000, scoped, tag = 'input window, operand 1']
    #allocation6 [shape = 's32[2]{0}', space=sflag, size = 0x8, scoped, tag = 'scoped memory for tpu_custom_call.1']
    #allocation7 [shape = 'u8[32768]{0}', space=vmem, size = 0x8000, scoped, tag = 'input window, operand 2, single buffered']
    #allocation8 [shape = 'u8[32768]{0}', space=vmem, size = 0x8000, scoped, tag = 'input window, operand 4, single buffered']
    #allocation9 [shape = 's32[1]{0}', space=sflag, size = 0x4, scoped, tag = 'scoped memory for tpu_custom_call.1']
    #allocation10 [shape = 'u8[65536]{0}', space=vmem, size = 0x10000, scoped, tag = 'input window, operand 6, single buffered']
    #allocation11 [shape = 'u8[32768]{0}', space=vmem, size = 0x8000, scoped, tag = 'input window, operand 8, single buffered']
    #allocation12 [shape = 's32[1]{0}', space=sflag, size = 0x4, scoped, tag = 'scoped memory for tpu_custom_call.1']
    #allocation13 [shape = 'u8[32768]{0}', space=vmem, size = 0x8000, scoped, tag = 'input window, operand 10, single buffered']
    #allocation14 [shape = 'u8[32768]{0}', space=vmem, size = 0x8000, scoped, tag = 'input window, operand 12, single buffered']
    #allocation15 [shape = 's32[1]{0}', space=sflag, size = 0x4, scoped, tag = 'scoped memory for tpu_custom_call.1']
    #allocation16 [shape = 'u8[65536]{0}', space=vmem, size = 0x10000, scoped, tag = 'output window, operand 0']
    #allocation17 [shape = 'u8[131072]{0}', space=vmem, size = 0x20000, scoped, tag = 'output window, operand 1']
    #allocation18 [shape = 's32[2]{0}', space=sflag, size = 0x8, scoped, tag = 'scoped memory for tpu_custom_call.1']
    %21 = vsyncpa [#allocation3], 0
    %s22 = scalar_lea.sflag [#allocation3], 1
    %23 = vsyncpa %s22, 0
    %24 = vsyncpa [#allocation6], 0
    %s25 = scalar_lea.sflag [#allocation6], 1
    %26 = vsyncpa %s25, 0
    %27 = vsyncpa [#allocation9], 0
    %28 = vsyncpa [#allocation12], 0
    %29 = vsyncpa [#allocation15], 0
    %30 = vsyncpa [#allocation4], 0
    %s31 = scalar_lea.sflag [#allocation4], 1
    %32 = vsyncpa %s31, 0
    %33 = vsyncpa [#allocation18], 0
    %s34 = scalar_lea.sflag [#allocation18], 1
    %35 = vsyncpa %s34, 0
    loop: start=0, step=1, limit=4
    $region2: #{tpu_custom_call.1} parent=1 // loop_pre_header
      _
    $region3: #{tpu_custom_call.1} parent=1 // loop_header
      %s37 = sphi 0, %s41
      %p38 = scmp.ge.s32.totalorder %s37, 4
      %s47 = sphi 0, %s49
      %s50 = sphi 0, %s47
      %s51 = sphi 0, %s50
      %s67 = sphi 0, %s51
      %s73 = sphi 0, %s75
      %s76 = sphi 0, %s73
      %s77 = sphi 0, %s76
      %s93 = sphi 0, %s77
      %s97 = sphi 0, %s97
      %s99 = sphi 0, %s97
      %s100 = sphi 0, %s99
      %s114 = sphi 0, %s100
      %s118 = sphi 0, %s118
      %s120 = sphi 0, %s118
      %s121 = sphi 0, %s120
      %s135 = sphi 0, %s121
      %s139 = sphi 0, %s139
      %s141 = sphi 0, %s139
      %s142 = sphi 0, %s141
      %s156 = sphi 0, %s142
      %s160 = sphi 0, %s160
      %s162 = sphi 0, %s160
      %s163 = sphi 0, %s162
      %s177 = sphi 0, %s163
      %s181 = sphi 0, %s181
      %s183 = sphi 0, %s181
      %s184 = sphi 0, %s183
      %s198 = sphi 0, %s184
      %s202 = sphi 0, %s202
      %s204 = sphi 0, %s202
      %s205 = sphi 0, %s204
      %s219 = sphi 0, %s205
      %s223 = sphi 0, %s223
      %s225 = sphi 0, %s223
      %s226 = sphi 0, %s225
      %s240 = sphi 0, %s226
      %s244 = sphi 0, %s244
      %s246 = sphi 0, %s244
      %s247 = sphi 0, %s246
      %s261 = sphi 0, %s247
      %s265 = sphi 0, %s265
      %s267 = sphi 0, %s265
      %s268 = sphi 0, %s267
      %s282 = sphi 0, %s268
      %s286 = sphi 0, %s286
      %s288 = sphi 0, %s286
      %s289 = sphi 0, %s288
      %s303 = sphi 0, %s289
      %s307 = sphi 0, %s307
      %s309 = sphi 0, %s307
      %s310 = sphi 0, %s309
      %s324 = sphi 0, %s310
      %s328 = sphi 0, %s328
      %s330 = sphi 0, %s328
      %s331 = sphi 0, %s330
      %s345 = sphi 0, %s331
      %s351 = sphi 0, %s353
      %s354 = sphi 0, %s351
      %s355 = sphi 0, %s354
      %s371 = sphi 0, %s355
      %s377 = sphi 0, %s379
      %s380 = sphi 0, %s377
      %s381 = sphi 0, %s380
      %s397 = sphi 0, %s381
    $region4: #{tpu_custom_call.1} parent=1 // loop_header_branch
      %40 = sbr.rel (%p38) target = $region8
    $region5: #{tpu_custom_call.1} parent=1 // loop_body
      %s42 = ssub.s32 %s37, 1
      %s43 = ssub.s32 %s37, 2
      %s44 = sadd.s32 %s37, 1
      %s45 = ssub.s32 %s37, %s44
      %p46 = scmp.eq.s32.totalorder %s45, 0
      %s48 = sadd.s32 %s47, 1
      %s49 = scalar_select %p46, %s47, %s48
      %p52 = pneg %p46
      %p53 = scmp.eq.s32.totalorder %s37, 1
      %p54 = por %p52, %p53
      %p55 = scmp.ne.s32.totalorder %s47, %s50
      %p56 = scmp.eq.s32.totalorder %s37, 0
      %p57 = por %p55, %p56
      %p58 = scmp.ne.s32.totalorder %s47, %s50
      %p59 = scmp.eq.s32.totalorder %s42, 1
      %p60 = por %p58, %p59
      %p61 = scmp.ne.s32.totalorder %s50, %s51
      %p62 = scmp.eq.s32.totalorder %s42, 0
      %p63 = por %p61, %p62
      %p64 = scmp.ne.s32.totalorder %s50, %s51
      %p65 = scmp.eq.s32.totalorder %s43, 1
      %p66 = por %p64, %p65
      %p68 = scmp.ne.s32.totalorder %s51, %s67
      %p69 = scmp.eq.s32.totalorder %s43, 0
      %p70 = por %p68, %p69
      %s71 = ssub.s32 %s37, %s44
      %p72 = scmp.eq.s32.totalorder %s71, 0
      %s74 = sadd.s32 %s73, 1
      %s75 = scalar_select %p72, %s73, %s74
      %p78 = pneg %p72
      %p79 = scmp.eq.s32.totalorder %s37, 1
      %p80 = por %p78, %p79
      %p81 = scmp.ne.s32.totalorder %s73, %s76
      %p82 = scmp.eq.s32.totalorder %s37, 0
      %p83 = por %p81, %p82
      %p84 = scmp.ne.s32.totalorder %s73, %s76
      %p85 = scmp.eq.s32.totalorder %s42, 1
      %p86 = por %p84, %p85
      %p87 = scmp.ne.s32.totalorder %s76, %s77
      %p88 = scmp.eq.s32.totalorder %s42, 0
      %p89 = por %p87, %p88
      %p90 = scmp.ne.s32.totalorder %s76, %s77
      %p91 = scmp.eq.s32.totalorder %s43, 1
      %p92 = por %p90, %p91
      %p94 = scmp.ne.s32.totalorder %s77, %s93
      %p95 = scmp.eq.s32.totalorder %s43, 0
      %p96 = por %p94, %p95
      %s98 = sadd.s32 %s97, 1
      %p101 = scmp.eq.s32.totalorder %s37, 1
      %p102 = scmp.ne.s32.totalorder %s97, %s99
      %p103 = scmp.eq.s32.totalorder %s37, 0
      %p104 = por %p102, %p103
      %p105 = scmp.ne.s32.totalorder %s97, %s99
      %p106 = scmp.eq.s32.totalorder %s42, 1
      %p107 = por %p105, %p106
      %p108 = scmp.ne.s32.totalorder %s99, %s100
      %p109 = scmp.eq.s32.totalorder %s42, 0
      %p110 = por %p108, %p109
      %p111 = scmp.ne.s32.totalorder %s99, %s100
      %p112 = scmp.eq.s32.totalorder %s43, 1
      %p113 = por %p111, %p112
      %p115 = scmp.ne.s32.totalorder %s100, %s114
      %p116 = scmp.eq.s32.totalorder %s43, 0
      %p117 = por %p115, %p116
      %s119 = sadd.s32 %s118, 1
      %p122 = scmp.eq.s32.totalorder %s37, 1
      %p123 = scmp.ne.s32.totalorder %s118, %s120
      %p124 = scmp.eq.s32.totalorder %s37, 0
      %p125 = por %p123, %p124
      %p126 = scmp.ne.s32.totalorder %s118, %s120
      %p127 = scmp.eq.s32.totalorder %s42, 1
      %p128 = por %p126, %p127
      %p129 = scmp.ne.s32.totalorder %s120, %s121
      %p130 = scmp.eq.s32.totalorder %s42, 0
      %p131 = por %p129, %p130
      %p132 = scmp.ne.s32.totalorder %s120, %s121
      %p133 = scmp.eq.s32.totalorder %s43, 1
      %p134 = por %p132, %p133
      %p136 = scmp.ne.s32.totalorder %s121, %s135
      %p137 = scmp.eq.s32.totalorder %s43, 0
      %p138 = por %p136, %p137
      %s140 = sadd.s32 %s139, 1
      %p143 = scmp.eq.s32.totalorder %s37, 1
      %p144 = scmp.ne.s32.totalorder %s139, %s141
      %p145 = scmp.eq.s32.totalorder %s37, 0
      %p146 = por %p144, %p145
      %p147 = scmp.ne.s32.totalorder %s139, %s141
      %p148 = scmp.eq.s32.totalorder %s42, 1
      %p149 = por %p147, %p148
      %p150 = scmp.ne.s32.totalorder %s141, %s142
      %p151 = scmp.eq.s32.totalorder %s42, 0
      %p152 = por %p150, %p151
      %p153 = scmp.ne.s32.totalorder %s141, %s142
      %p154 = scmp.eq.s32.totalorder %s43, 1
      %p155 = por %p153, %p154
      %p157 = scmp.ne.s32.totalorder %s142, %s156
      %p158 = scmp.eq.s32.totalorder %s43, 0
      %p159 = por %p157, %p158
      %s161 = sadd.s32 %s160, 1
      %p164 = scmp.eq.s32.totalorder %s37, 1
      %p165 = scmp.ne.s32.totalorder %s160, %s162
      %p166 = scmp.eq.s32.totalorder %s37, 0
      %p167 = por %p165, %p166
      %p168 = scmp.ne.s32.totalorder %s160, %s162
      %p169 = scmp.eq.s32.totalorder %s42, 1
      %p170 = por %p168, %p169
      %p171 = scmp.ne.s32.totalorder %s162, %s163
      %p172 = scmp.eq.s32.totalorder %s42, 0
      %p173 = por %p171, %p172
      %p174 = scmp.ne.s32.totalorder %s162, %s163
      %p175 = scmp.eq.s32.totalorder %s43, 1
      %p176 = por %p174, %p175
      %p178 = scmp.ne.s32.totalorder %s163, %s177
      %p179 = scmp.eq.s32.totalorder %s43, 0
      %p180 = por %p178, %p179
      %s182 = sadd.s32 %s181, 1
      %p185 = scmp.eq.s32.totalorder %s37, 1
      %p186 = scmp.ne.s32.totalorder %s181, %s183
      %p187 = scmp.eq.s32.totalorder %s37, 0
      %p188 = por %p186, %p187
      %p189 = scmp.ne.s32.totalorder %s181, %s183
      %p190 = scmp.eq.s32.totalorder %s42, 1
      %p191 = por %p189, %p190
      %p192 = scmp.ne.s32.totalorder %s183, %s184
      %p193 = scmp.eq.s32.totalorder %s42, 0
      %p194 = por %p192, %p193
      %p195 = scmp.ne.s32.totalorder %s183, %s184
      %p196 = scmp.eq.s32.totalorder %s43, 1
      %p197 = por %p195, %p196
      %p199 = scmp.ne.s32.totalorder %s184, %s198
      %p200 = scmp.eq.s32.totalorder %s43, 0
      %p201 = por %p199, %p200
      %s203 = sadd.s32 %s202, 1
      %p206 = scmp.eq.s32.totalorder %s37, 1
      %p207 = scmp.ne.s32.totalorder %s202, %s204
      %p208 = scmp.eq.s32.totalorder %s37, 0
      %p209 = por %p207, %p208
      %p210 = scmp.ne.s32.totalorder %s202, %s204
      %p211 = scmp.eq.s32.totalorder %s42, 1
      %p212 = por %p210, %p211
      %p213 = scmp.ne.s32.totalorder %s204, %s205
      %p214 = scmp.eq.s32.totalorder %s42, 0
      %p215 = por %p213, %p214
      %p216 = scmp.ne.s32.totalorder %s204, %s205
      %p217 = scmp.eq.s32.totalorder %s43, 1
      %p218 = por %p216, %p217
      %p220 = scmp.ne.s32.totalorder %s205, %s219
      %p221 = scmp.eq.s32.totalorder %s43, 0
      %p222 = por %p220, %p221
      %s224 = sadd.s32 %s223, 1
      %p227 = scmp.eq.s32.totalorder %s37, 1
      %p228 = scmp.ne.s32.totalorder %s223, %s225
      %p229 = scmp.eq.s32.totalorder %s37, 0
      %p230 = por %p228, %p229
      %p231 = scmp.ne.s32.totalorder %s223, %s225
      %p232 = scmp.eq.s32.totalorder %s42, 1
      %p233 = por %p231, %p232
      %p234 = scmp.ne.s32.totalorder %s225, %s226
      %p235 = scmp.eq.s32.totalorder %s42, 0
      %p236 = por %p234, %p235
      %p237 = scmp.ne.s32.totalorder %s225, %s226
      %p238 = scmp.eq.s32.totalorder %s43, 1
      %p239 = por %p237, %p238
      %p241 = scmp.ne.s32.totalorder %s226, %s240
      %p242 = scmp.eq.s32.totalorder %s43, 0
      %p243 = por %p241, %p242
      %s245 = sadd.s32 %s244, 1
      %p248 = scmp.eq.s32.totalorder %s37, 1
      %p249 = scmp.ne.s32.totalorder %s244, %s246
      %p250 = scmp.eq.s32.totalorder %s37, 0
      %p251 = por %p249, %p250
      %p252 = scmp.ne.s32.totalorder %s244, %s246
      %p253 = scmp.eq.s32.totalorder %s42, 1
      %p254 = por %p252, %p253
      %p255 = scmp.ne.s32.totalorder %s246, %s247
      %p256 = scmp.eq.s32.totalorder %s42, 0
      %p257 = por %p255, %p256
      %p258 = scmp.ne.s32.totalorder %s246, %s247
      %p259 = scmp.eq.s32.totalorder %s43, 1
      %p260 = por %p258, %p259
      %p262 = scmp.ne.s32.totalorder %s247, %s261
      %p263 = scmp.eq.s32.totalorder %s43, 0
      %p264 = por %p262, %p263
      %s266 = sadd.s32 %s265, 1
      %p269 = scmp.eq.s32.totalorder %s37, 1
      %p270 = scmp.ne.s32.totalorder %s265, %s267
      %p271 = scmp.eq.s32.totalorder %s37, 0
      %p272 = por %p270, %p271
      %p273 = scmp.ne.s32.totalorder %s265, %s267
      %p274 = scmp.eq.s32.totalorder %s42, 1
      %p275 = por %p273, %p274
      %p276 = scmp.ne.s32.totalorder %s267, %s268
      %p277 = scmp.eq.s32.totalorder %s42, 0
      %p278 = por %p276, %p277
      %p279 = scmp.ne.s32.totalorder %s267, %s268
      %p280 = scmp.eq.s32.totalorder %s43, 1
      %p281 = por %p279, %p280
      %p283 = scmp.ne.s32.totalorder %s268, %s282
      %p284 = scmp.eq.s32.totalorder %s43, 0
      %p285 = por %p283, %p284
      %s287 = sadd.s32 %s286, 1
      %p290 = scmp.eq.s32.totalorder %s37, 1
      %p291 = scmp.ne.s32.totalorder %s286, %s288
      %p292 = scmp.eq.s32.totalorder %s37, 0
      %p293 = por %p291, %p292
      %p294 = scmp.ne.s32.totalorder %s286, %s288
      %p295 = scmp.eq.s32.totalorder %s42, 1
      %p296 = por %p294, %p295
      %p297 = scmp.ne.s32.totalorder %s288, %s289
      %p298 = scmp.eq.s32.totalorder %s42, 0
      %p299 = por %p297, %p298
      %p300 = scmp.ne.s32.totalorder %s288, %s289
      %p301 = scmp.eq.s32.totalorder %s43, 1
      %p302 = por %p300, %p301
      %p304 = scmp.ne.s32.totalorder %s289, %s303
      %p305 = scmp.eq.s32.totalorder %s43, 0
      %p306 = por %p304, %p305
      %s308 = sadd.s32 %s307, 1
      %p311 = scmp.eq.s32.totalorder %s37, 1
      %p312 = scmp.ne.s32.totalorder %s307, %s309
      %p313 = scmp.eq.s32.totalorder %s37, 0
      %p314 = por %p312, %p313
      %p315 = scmp.ne.s32.totalorder %s307, %s309
      %p316 = scmp.eq.s32.totalorder %s42, 1
      %p317 = por %p315, %p316
      %p318 = scmp.ne.s32.totalorder %s309, %s310
      %p319 = scmp.eq.s32.totalorder %s42, 0
      %p320 = por %p318, %p319
      %p321 = scmp.ne.s32.totalorder %s309, %s310
      %p322 = scmp.eq.s32.totalorder %s43, 1
      %p323 = por %p321, %p322
      %p325 = scmp.ne.s32.totalorder %s310, %s324
      %p326 = scmp.eq.s32.totalorder %s43, 0
      %p327 = por %p325, %p326
      %s329 = sadd.s32 %s328, 1
      %p332 = scmp.eq.s32.totalorder %s37, 1
      %p333 = scmp.ne.s32.totalorder %s328, %s330
      %p334 = scmp.eq.s32.totalorder %s37, 0
      %p335 = por %p333, %p334
      %p336 = scmp.ne.s32.totalorder %s328, %s330
      %p337 = scmp.eq.s32.totalorder %s42, 1
      %p338 = por %p336, %p337
      %p339 = scmp.ne.s32.totalorder %s330, %s331
      %p340 = scmp.eq.s32.totalorder %s42, 0
      %p341 = por %p339, %p340
      %p342 = scmp.ne.s32.totalorder %s330, %s331
      %p343 = scmp.eq.s32.totalorder %s43, 1
      %p344 = por %p342, %p343
      %p346 = scmp.ne.s32.totalorder %s331, %s345
      %p347 = scmp.eq.s32.totalorder %s43, 0
      %p348 = por %p346, %p347
      %s349 = ssub.s32 %s37, %s44
      %p350 = scmp.eq.s32.totalorder %s349, 0
      %s352 = sadd.s32 %s351, 1
      %s353 = scalar_select %p350, %s351, %s352
      %p356 = pneg %p350
      %p357 = scmp.eq.s32.totalorder %s37, 1
      %p358 = por %p356, %p357
      %p359 = scmp.ne.s32.totalorder %s351, %s354
      %p360 = scmp.eq.s32.totalorder %s37, 0
      %p361 = por %p359, %p360
      %p362 = scmp.ne.s32.totalorder %s351, %s354
      %p363 = scmp.eq.s32.totalorder %s42, 1
      %p364 = por %p362, %p363
      %p365 = scmp.ne.s32.totalorder %s354, %s355
      %p366 = scmp.eq.s32.totalorder %s42, 0
      %p367 = por %p365, %p366
      %p368 = scmp.ne.s32.totalorder %s354, %s355
      %p369 = scmp.eq.s32.totalorder %s43, 1
      %p370 = por %p368, %p369
      %p372 = scmp.ne.s32.totalorder %s355, %s371
      %p373 = scmp.eq.s32.totalorder %s43, 0
      %p374 = por %p372, %p373
      %s375 = ssub.s32 %s37, %s44
      %p376 = scmp.eq.s32.totalorder %s375, 0
      %s378 = sadd.s32 %s377, 1
      %s379 = scalar_select %p376, %s377, %s378
      %p382 = pneg %p376
      %p383 = scmp.eq.s32.totalorder %s37, 1
      %p384 = por %p382, %p383
      %p385 = scmp.ne.s32.totalorder %s377, %s380
      %p386 = scmp.eq.s32.totalorder %s37, 0
      %p387 = por %p385, %p386
      %p388 = scmp.ne.s32.totalorder %s377, %s380
      %p389 = scmp.eq.s32.totalorder %s42, 1
      %p390 = por %p388, %p389
      %p391 = scmp.ne.s32.totalorder %s380, %s381
      %p392 = scmp.eq.s32.totalorder %s42, 0
      %p393 = por %p391, %p392
      %p394 = scmp.ne.s32.totalorder %s380, %s381
      %p395 = scmp.eq.s32.totalorder %s43, 1
      %p396 = por %p394, %p395
      %p398 = scmp.ne.s32.totalorder %s381, %s397
      %p399 = scmp.eq.s32.totalorder %s43, 0
      %p400 = por %p398, %p399
      %p401 = scmp.le.s32.totalorder 1, %s37
      %p402 = scmp.lt.s32.totalorder %s37, 3
      %p403 = pnand %p401, %p402
      %p404 = pneg %p403
      // Predicated region
      $region9: #{tpu_custom_call.1} parent=5 // pred_check
        _
      $region10: #{tpu_custom_call.1} parent=5 // pred_check_branch
        %406 = sbr.rel (%p403) target = $region12
      $region11: #{tpu_custom_call.1} parent=5 // pred_region
        %s407 = ssub.s32 %s37, 1
        // Predicated region
        $region13: #{tpu_custom_call.1} parent=11 // pred_check
          %p408 = pneg %p110
        $region14: #{tpu_custom_call.1} parent=11 // pred_check_branch
          %410 = sbr.rel (%p408) target = $region16
        $region15: #{tpu_custom_call.1} parent=11 // pred_region
          %412 = vsyncadd [#allocation6], 0
          %s413 = sshll.u32 %s2, 4
          %s414 = int_to_ptr.hbm [resolvable:$true] %s413
          %s415 = sshll.u32 [#allocation7], 4
          %s416 = int_to_ptr.vmem [resolvable:$true] %s415
          %421 = dma.hbm_to_vmem [thread:$0]  %s414, 1024, %s416, [#allocation6], 64, 64, 4
        $region16: #{tpu_custom_call.1} parent=11 // pred_fallthru
          _
        // Predicated region
        $region17: #{tpu_custom_call.1} parent=11 // pred_check
          %p422 = pneg %p131
        $region18: #{tpu_custom_call.1} parent=11 // pred_check_branch
          %424 = sbr.rel (%p422) target = $region20
        $region19: #{tpu_custom_call.1} parent=11 // pred_region
          _
        $region20: #{tpu_custom_call.1} parent=11 // pred_fallthru
          _
        // Predicated region
        $region21: #{tpu_custom_call.1} parent=11 // pred_check
          %p425 = pneg %p152
        $region22: #{tpu_custom_call.1} parent=11 // pred_check_branch
          %427 = sbr.rel (%p425) target = $region24
        $region23: #{tpu_custom_call.1} parent=11 // pred_region
          %429 = vsyncadd [#allocation9], 0
          %s430 = sshll.u32 %s4, 4
          %s431 = int_to_ptr.hbm [resolvable:$true] %s430
          %s432 = sshll.u32 [#allocation8], 4
          %s433 = int_to_ptr.vmem [resolvable:$true] %s432
          %438 = dma.hbm_to_vmem [thread:$0]  %s431, 1024, %s433, [#allocation9], 64, 64, 4
        $region24: #{tpu_custom_call.1} parent=11 // pred_fallthru
          _
        // Predicated region
        $region25: #{tpu_custom_call.1} parent=11 // pred_check
          %p439 = pneg %p173
        $region26: #{tpu_custom_call.1} parent=11 // pred_check_branch
          %441 = sbr.rel (%p439) target = $region28
        $region27: #{tpu_custom_call.1} parent=11 // pred_region
          _
        $region28: #{tpu_custom_call.1} parent=11 // pred_fallthru
          _
        // Predicated region
        $region29: #{tpu_custom_call.1} parent=11 // pred_check
          %p442 = pneg %p194
        $region30: #{tpu_custom_call.1} parent=11 // pred_check_branch
          %444 = sbr.rel (%p442) target = $region32
        $region31: #{tpu_custom_call.1} parent=11 // pred_region
          %446 = vsyncadd [#allocation9], 0
          %s447 = sshll.u32 %s6, 4
          %s448 = int_to_ptr.hbm [resolvable:$true] %s447
          %s449 = sshll.u32 [#allocation10], 4
          %s450 = int_to_ptr.vmem [resolvable:$true] %s449
          %455 = dma.hbm_to_vmem [thread:$0]  %s448, 2048, %s450, [#allocation9], 128, 128, 8
        $region32: #{tpu_custom_call.1} parent=11 // pred_fallthru
          _
        // Predicated region
        $region33: #{tpu_custom_call.1} parent=11 // pred_check
          %p456 = pneg %p215
        $region34: #{tpu_custom_call.1} parent=11 // pred_check_branch
          %458 = sbr.rel (%p456) target = $region36
        $region35: #{tpu_custom_call.1} parent=11 // pred_region
          _
        $region36: #{tpu_custom_call.1} parent=11 // pred_fallthru
          _
        // Predicated region
        $region37: #{tpu_custom_call.1} parent=11 // pred_check
          %p459 = pneg %p236
        $region38: #{tpu_custom_call.1} parent=11 // pred_check_branch
          %461 = sbr.rel (%p459) target = $region40
        $region39: #{tpu_custom_call.1} parent=11 // pred_region
          %463 = vsyncadd [#allocation12], 0
          %s464 = sshll.u32 %s8, 4
          %s465 = int_to_ptr.hbm [resolvable:$true] %s464
          %s466 = sshll.u32 [#allocation11], 4
          %s467 = int_to_ptr.vmem [resolvable:$true] %s466
          %472 = dma.hbm_to_vmem [thread:$0]  %s465, 1024, %s467, [#allocation12], 64, 64, 4
        $region40: #{tpu_custom_call.1} parent=11 // pred_fallthru
          _
        // Predicated region
        $region41: #{tpu_custom_call.1} parent=11 // pred_check
          %p473 = pneg %p257
        $region42: #{tpu_custom_call.1} parent=11 // pred_check_branch
          %475 = sbr.rel (%p473) target = $region44
        $region43: #{tpu_custom_call.1} parent=11 // pred_region
          _
        $region44: #{tpu_custom_call.1} parent=11 // pred_fallthru
          _
        // Predicated region
        $region45: #{tpu_custom_call.1} parent=11 // pred_check
          %p476 = pneg %p278
        $region46: #{tpu_custom_call.1} parent=11 // pred_check_branch
          %478 = sbr.rel (%p476) target = $region48
        $region47: #{tpu_custom_call.1} parent=11 // pred_region
          %480 = vsyncadd [#allocation12], 0
          %s481 = sshll.u32 %s10, 4
          %s482 = int_to_ptr.hbm [resolvable:$true] %s481
          %s483 = sshll.u32 [#allocation13], 4
          %s484 = int_to_ptr.vmem [resolvable:$true] %s483
          %489 = dma.hbm_to_vmem [thread:$0]  %s482, 1024, %s484, [#allocation12], 64, 64, 4
        $region48: #{tpu_custom_call.1} parent=11 // pred_fallthru
          _
        // Predicated region
        $region49: #{tpu_custom_call.1} parent=11 // pred_check
          %p490 = pneg %p299
        $region50: #{tpu_custom_call.1} parent=11 // pred_check_branch
          %492 = sbr.rel (%p490) target = $region52
        $region51: #{tpu_custom_call.1} parent=11 // pred_region
          _
        $region52: #{tpu_custom_call.1} parent=11 // pred_fallthru
          _
        // Predicated region
        $region53: #{tpu_custom_call.1} parent=11 // pred_check
          %p493 = pneg %p320
        $region54: #{tpu_custom_call.1} parent=11 // pred_check_branch
          %495 = sbr.rel (%p493) target = $region56
        $region55: #{tpu_custom_call.1} parent=11 // pred_region
          %497 = vsyncadd [#allocation15], 0
          %s498 = sshll.u32 %s12, 4
          %s499 = int_to_ptr.hbm [resolvable:$true] %s498
          %s500 = sshll.u32 [#allocation14], 4
          %s501 = int_to_ptr.vmem [resolvable:$true] %s500
          %506 = dma.hbm_to_vmem [thread:$0]  %s499, 1024, %s501, [#allocation15], 64, 64, 4
        $region56: #{tpu_custom_call.1} parent=11 // pred_fallthru
          _
        // Predicated region
        $region57: #{tpu_custom_call.1} parent=11 // pred_check
          %p507 = pneg %p341
        $region58: #{tpu_custom_call.1} parent=11 // pred_check_branch
          %509 = sbr.rel (%p507) target = $region60
        $region59: #{tpu_custom_call.1} parent=11 // pred_region
          _
        $region60: #{tpu_custom_call.1} parent=11 // pred_fallthru
          _
      $region12: #{tpu_custom_call.1} parent=5 // pred_fallthru
        _
      %p510 = scmp.lt.s32.totalorder %s37, 2
      // Predicated region
      $region61: #{tpu_custom_call.1} parent=5 // pred_check
        %p511 = pneg %p510
      $region62: #{tpu_custom_call.1} parent=5 // pred_check_branch
        %513 = sbr.rel (%p511) target = $region64
      $region63: #{tpu_custom_call.1} parent=5 // pred_region
        // Predicated region
        $region65: #{tpu_custom_call.1} parent=63 // pred_check
          %p514 = pneg %p57
        $region66: #{tpu_custom_call.1} parent=63 // pred_check_branch
          %516 = sbr.rel (%p514) target = $region68
        $region67: #{tpu_custom_call.1} parent=63 // pred_region
          %s517 = sand.u32 %s47, 1
          %s518 = scalar_lea.sflag [#allocation3], %s517
          %s519 = sand.u32 %s47, 1
          %s520 = smul.addr %s519, 32
          %s521 = scalar_lea.vmem [#allocation2], %s520
          %s522 = smul.u32 8, %s37
          %524 = vsyncadd %s518, 0
          %s525 = smul.addr %s522, 4
          %s526 = scalar_lea.hbm %s0, %s525
          %s527 = sshll.u32 %s526, 4
          %s528 = int_to_ptr.hbm [resolvable:$true] %s527
          %s529 = sshll.u32 %s521, 4
          %s530 = int_to_ptr.vmem [resolvable:$true] %s529
          %535 = dma.hbm_to_vmem [thread:$0]  %s528, 512, %s530, %s518, 64, 64, 4
        $region68: #{tpu_custom_call.1} parent=63 // pred_fallthru
          _
        // Predicated region
        $region69: #{tpu_custom_call.1} parent=63 // pred_check
          %p536 = pneg %p83
        $region70: #{tpu_custom_call.1} parent=63 // pred_check_branch
          %538 = sbr.rel (%p536) target = $region72
        $region71: #{tpu_custom_call.1} parent=63 // pred_region
          %s539 = sand.u32 %s37, 1
          %s540 = scalar_lea.sflag [#allocation6], %s539
          %s541 = sand.u32 %s73, 1
          %s542 = smul.addr %s541, 64
          %s543 = scalar_lea.vmem [#allocation5], %s542
          %s544 = smul.u32 8, %s37
          %546 = vsyncadd %s540, 0
          %s547 = smul.addr %s544, 8
          %s548 = scalar_lea.hbm %s1, %s547
          %s549 = sshll.u32 %s548, 4
          %s550 = int_to_ptr.hbm [resolvable:$true] %s549
          %s551 = sshll.u32 %s543, 4
          %s552 = int_to_ptr.vmem [resolvable:$true] %s551
          %557 = dma.hbm_to_vmem [thread:$0]  %s550, 1024, %s552, %s540, 128, 128, 8
        $region72: #{tpu_custom_call.1} parent=63 // pred_fallthru
          _
      $region64: #{tpu_custom_call.1} parent=5 // pred_fallthru
        _
      %p558 = scmp.le.s32.totalorder 1, %s37
      %p559 = scmp.lt.s32.totalorder %s37, 3
      %p560 = pnand %p558, %p559
      %p561 = pneg %p560
      // Predicated region
      $region73: #{tpu_custom_call.1} parent=5 // pred_check
        _
      $region74: #{tpu_custom_call.1} parent=5 // pred_check_branch
        %563 = sbr.rel (%p560) target = $region76
      $region75: #{tpu_custom_call.1} parent=5 // pred_region
        %s564 = ssub.s32 %s37, 1
        %s565 = sand.u32 %s50, 1
        %s566 = scalar_lea.sflag [#allocation3], %s565
        %s567 = sand.u32 %s50, 1
        %s568 = smul.addr %s567, 32
        %s569 = scalar_lea.vmem [#allocation2], %s568
        // Predicated region
        $region77: #{tpu_custom_call.1} parent=75 // pred_check
          %p570 = pneg %p63
        $region78: #{tpu_custom_call.1} parent=75 // pred_check_branch
          %572 = sbr.rel (%p570) target = $region80
        $region79: #{tpu_custom_call.1} parent=75 // pred_region
          %574 = dma.done %s566, 512
        $region80: #{tpu_custom_call.1} parent=75 // pred_fallthru
          _
        %s575 = sand.u32 %s42, 1
        %s576 = scalar_lea.sflag [#allocation6], %s575
        %s577 = sand.u32 %s76, 1
        %s578 = smul.addr %s577, 64
        %s579 = scalar_lea.vmem [#allocation5], %s578
        // Predicated region
        $region81: #{tpu_custom_call.1} parent=75 // pred_check
          %p580 = pneg %p89
        $region82: #{tpu_custom_call.1} parent=75 // pred_check_branch
          %582 = sbr.rel (%p580) target = $region84
        $region83: #{tpu_custom_call.1} parent=75 // pred_region
          %584 = dma.done %s576, 1024
        $region84: #{tpu_custom_call.1} parent=75 // pred_fallthru
          _
        // Predicated region
        $region85: #{tpu_custom_call.1} parent=75 // pred_check
          %p585 = pneg %p110
        $region86: #{tpu_custom_call.1} parent=75 // pred_check_branch
          %587 = sbr.rel (%p585) target = $region88
        $region87: #{tpu_custom_call.1} parent=75 // pred_region
          %589 = dma.done [#allocation6], 1024
        $region88: #{tpu_custom_call.1} parent=75 // pred_fallthru
          _
        // Predicated region
        $region89: #{tpu_custom_call.1} parent=75 // pred_check
          %p590 = pneg %p152
        $region90: #{tpu_custom_call.1} parent=75 // pred_check_branch
          %592 = sbr.rel (%p590) target = $region92
        $region91: #{tpu_custom_call.1} parent=75 // pred_region
          %594 = dma.done [#allocation9], 1024
        $region92: #{tpu_custom_call.1} parent=75 // pred_fallthru
          _
        // Predicated region
        $region93: #{tpu_custom_call.1} parent=75 // pred_check
          %p595 = pneg %p194
        $region94: #{tpu_custom_call.1} parent=75 // pred_check_branch
          %597 = sbr.rel (%p595) target = $region96
        $region95: #{tpu_custom_call.1} parent=75 // pred_region
          %599 = dma.done [#allocation9], 2048
        $region96: #{tpu_custom_call.1} parent=75 // pred_fallthru
          _
        // Predicated region
        $region97: #{tpu_custom_call.1} parent=75 // pred_check
          %p600 = pneg %p236
        $region98: #{tpu_custom_call.1} parent=75 // pred_check_branch
          %602 = sbr.rel (%p600) target = $region100
        $region99: #{tpu_custom_call.1} parent=75 // pred_region
          %604 = dma.done [#allocation12], 1024
        $region100: #{tpu_custom_call.1} parent=75 // pred_fallthru
          _
        // Predicated region
        $region101: #{tpu_custom_call.1} parent=75 // pred_check
          %p605 = pneg %p278
        $region102: #{tpu_custom_call.1} parent=75 // pred_check_branch
          %607 = sbr.rel (%p605) target = $region104
        $region103: #{tpu_custom_call.1} parent=75 // pred_region
          %609 = dma.done [#allocation12], 1024
        $region104: #{tpu_custom_call.1} parent=75 // pred_fallthru
          _
        // Predicated region
        $region105: #{tpu_custom_call.1} parent=75 // pred_check
          %p610 = pneg %p320
        $region106: #{tpu_custom_call.1} parent=75 // pred_check_branch
          %612 = sbr.rel (%p610) target = $region108
        $region107: #{tpu_custom_call.1} parent=75 // pred_region
          %614 = dma.done [#allocation15], 1024
        $region108: #{tpu_custom_call.1} parent=75 // pred_fallthru
          _
        %s615 = sand.u32 %s50, 1
        %s616 = scalar_lea.sflag [#allocation3], %s615
        %s617 = sand.u32 %s50, 1
        %s618 = smul.addr %s617, 32
        %s619 = scalar_lea.vmem [#allocation2], %s618
        %p620 = pneg %p63
        %p621 = pneg %p60
        %s622 = sand.u32 %s42, 1
        %s623 = scalar_lea.sflag [#allocation6], %s622
        %s624 = sand.u32 %s76, 1
        %s625 = smul.addr %s624, 64
        %s626 = scalar_lea.vmem [#allocation5], %s625
        %p627 = pneg %p89
        %p628 = pneg %p86
        %p629 = pneg %p110
        %p630 = pneg %p107
        %p631 = pneg %p131
        %p632 = pneg %p128
        %p633 = pneg %p152
        %p634 = pneg %p149
        %p635 = pneg %p173
        %p636 = pneg %p170
        %p637 = pneg %p194
        %p638 = pneg %p191
        %p639 = pneg %p215
        %p640 = pneg %p212
        %p641 = pneg %p236
        %p642 = pneg %p233
        %p643 = pneg %p257
        %p644 = pneg %p254
        %p645 = pneg %p278
        %p646 = pneg %p275
        %p647 = pneg %p299
        %p648 = pneg %p296
        %p649 = pneg %p320
        %p650 = pneg %p317
        %p651 = pneg %p341
        %p652 = pneg %p338
        %p653 = pneg %p367
        %p654 = pneg %p364
        %s655 = sand.u32 %s354, 1
        %s656 = scalar_lea.sflag [#allocation4], %s655
        %s657 = sand.u32 %s354, 1
        %s658 = smul.addr %s657, 64
        %s659 = scalar_lea.vmem [#allocation16], %s658
        %p660 = pneg %p393
        %p661 = pneg %p390
        %s662 = sand.u32 %s380, 1
        %s663 = scalar_lea.sflag [#allocation18], %s662
        %s664 = sand.u32 %s380, 1
        %s665 = smul.addr %s664, 128
        %s666 = scalar_lea.vmem [#allocation17], %s665
        %s667 = smul.u32 8, %s42
        %s668 = smul.u32 8, %s42
        %s669 = smul.u32 8, %s42
        %s670 = smul.u32 8, %s42
        %v671 = vld [vmem:[%s569] sm:$0xf]
        %v672 = vld [vmem:[%s569 + $0x4] sm:$0xf]
        %v673 = vld [vmem:[%s569 + $0x8] sm:$0xf]
        %v674 = vld [vmem:[%s569 + $0xc] sm:$0xf]
        %v675 = vld [vmem:[%s569 + $0x10] sm:$0xf]
        %v676 = vld [vmem:[%s569 + $0x14] sm:$0xf]
        %v677 = vld [vmem:[%s569 + $0x18] sm:$0xf]
        %v678 = vld [vmem:[%s569 + $0x1c] sm:$0xf]
        %v679 = vld [vmem:[#allocation7] sm:$0xf]
        %v680 = vld [vmem:[#allocation7 + $0x4] sm:$0xf]
        %v681 = vld [vmem:[#allocation7 + $0x8] sm:$0xf]
        %v682 = vld [vmem:[#allocation7 + $0xc] sm:$0xf]
        %v683 = vld [vmem:[#allocation7 + $0x10] sm:$0xf]
        %v684 = vld [vmem:[#allocation7 + $0x14] sm:$0xf]
        %v685 = vld [vmem:[#allocation7 + $0x18] sm:$0xf]
        %v686 = vld [vmem:[#allocation7 + $0x1c] sm:$0xf]
        %v687 = vld [vmem:[#allocation7 + $0x20] sm:$0xf]
        %v688 = vld [vmem:[#allocation7 + $0x24] sm:$0xf]
        %v689 = vld [vmem:[#allocation7 + $0x28] sm:$0xf]
        %v690 = vld [vmem:[#allocation7 + $0x2c] sm:$0xf]
        %v691 = vld [vmem:[#allocation7 + $0x30] sm:$0xf]
        %v692 = vld [vmem:[#allocation7 + $0x34] sm:$0xf]
        %v693 = vld [vmem:[#allocation7 + $0x38] sm:$0xf]
        %v694 = vld [vmem:[#allocation7 + $0x3c] sm:$0xf]
        %v695 = vld [vmem:[%s3] sm:$0x1]
        %v697 = vperm.slane %v695, 0
        %v707 = vunpack.c.l.b16 %v671
        %v708 = vunpack.c.l.b16 %v672
        %v709 = vunpack.c.l.b16 %v673
        %v710 = vunpack.c.l.b16 %v674
        %v711 = vunpack.c.l.b16 %v675
        %v712 = vunpack.c.l.b16 %v676
        %v713 = vunpack.c.l.b16 %v677
        %v714 = vunpack.c.l.b16 %v678
        %v715 = vpack.c.b16 %v708, %v707
        %v716 = vpack.c.b16 %v710, %v709
        %v717 = vpack.c.b16 %v712, %v711
        %v718 = vpack.c.b16 %v714, %v713
        %v739 = vunpack.c.l.b16 %v679
        %v740 = vunpack.c.l.b16 %v680
        %v741 = vunpack.c.l.b16 %v681
        %v742 = vunpack.c.l.b16 %v682
        %v743 = vunpack.c.l.b16 %v683
        %v744 = vunpack.c.l.b16 %v684
        %v745 = vunpack.c.l.b16 %v685
        %v746 = vunpack.c.l.b16 %v686
        %v747 = vunpack.c.l.b16 %v687
        %v748 = vunpack.c.l.b16 %v688
        %v749 = vunpack.c.l.b16 %v689
        %v750 = vunpack.c.l.b16 %v690
        %v751 = vunpack.c.l.b16 %v691
        %v752 = vunpack.c.l.b16 %v692
        %v753 = vunpack.c.l.b16 %v693
        %v754 = vunpack.c.l.b16 %v694
        %v755 = vpack.c.b16 %v740, %v739
        %v756 = vpack.c.b16 %v742, %v741
        %v757 = vpack.c.b16 %v744, %v743
        %v758 = vpack.c.b16 %v746, %v745
        %v759 = vpack.c.b16 %v748, %v747
        %v760 = vpack.c.b16 %v750, %v749
        %v761 = vpack.c.b16 %v752, %v751
        %v762 = vpack.c.b16 %v754, %v753
        %771 = vmatpush.bf16.msra.mxu0 %v762
        %772 = vmatpush.bf16.msra.mxu0 %v761
        %773 = vmatpush.bf16.msra.mxu0 %v760
        %774 = vmatpush.bf16.msra.mxu0 %v759
        %775 = vmatpush.bf16.msra.mxu0 %v758
        %776 = vmatpush.bf16.msra.mxu0 %v757
        %777 = vmatpush.bf16.msra.mxu0 %v756
        %778 = vmatpush.bf16.msra.mxu0 %v755
        %779 = vmatmul.bf16.gmra.mxu0 %v715
        %v780 = vpop.f32.mrf.mxu0
        %v781 = vadd.f32 %v697, %v780
        %v782 = vpop.f32.mrf.mxu0
        %v783 = vadd.f32 %v697, %v782
        %784 = vmatmul.bf16.gmra.mxu0 %v716
        %v785 = vpop.f32.mrf.mxu0
        %v786 = vadd.f32 %v697, %v785
        %v787 = vpop.f32.mrf.mxu0
        %v788 = vadd.f32 %v697, %v787
        %789 = vmatmul.bf16.gmra.mxu0 %v717
        %v790 = vpop.f32.mrf.mxu0
        %v791 = vadd.f32 %v697, %v790
        %v792 = vpop.f32.mrf.mxu0
        %v793 = vadd.f32 %v697, %v792
        %794 = vmatmul.bf16.gmra.mxu0 %v718
        %v795 = vpop.f32.mrf.mxu0
        %v796 = vadd.f32 %v697, %v795
        %v797 = vpop.f32.mrf.mxu0
        %v798 = vadd.f32 %v697, %v797
        %799 = vdwg.mxu0
        %v800 = vmul.f32 %v781, 0.2
        %v801 = vmul.f32 %v783, 0.2
        %v802 = vmul.f32 %v786, 0.2
        %v803 = vmul.f32 %v788, 0.2
        %v804 = vmul.f32 %v791, 0.2
        %v805 = vmul.f32 %v793, 0.2
        %v806 = vmul.f32 %v796, 0.2
        %v807 = vmul.f32 %v798, 0.2
        %v808 = vmax.f32 %v781, %v800
        %v809 = vmax.f32 %v783, %v801
        %v810 = vmax.f32 %v786, %v802
        %v811 = vmax.f32 %v788, %v803
        %v812 = vmax.f32 %v791, %v804
        %v813 = vmax.f32 %v793, %v805
        %v814 = vmax.f32 %v796, %v806
        %v815 = vmax.f32 %v798, %v807
        %v816 = vpack.c.bf16 %v809, %v808
        %v817 = vpack.c.bf16 %v811, %v810
        %v818 = vpack.c.bf16 %v813, %v812
        %v819 = vpack.c.bf16 %v815, %v814
        %v820 = vld [vmem:[#allocation8] sm:$0xf]
        %v821 = vld [vmem:[#allocation8 + $0x4] sm:$0xf]
        %v822 = vld [vmem:[#allocation8 + $0x8] sm:$0xf]
        %v823 = vld [vmem:[#allocation8 + $0xc] sm:$0xf]
        %v824 = vld [vmem:[#allocation8 + $0x10] sm:$0xf]
        %v825 = vld [vmem:[#allocation8 + $0x14] sm:$0xf]
        %v826 = vld [vmem:[#allocation8 + $0x18] sm:$0xf]
        %v827 = vld [vmem:[#allocation8 + $0x1c] sm:$0xf]
        %v828 = vld [vmem:[#allocation8 + $0x20] sm:$0xf]
        %v829 = vld [vmem:[#allocation8 + $0x24] sm:$0xf]
        %v830 = vld [vmem:[#allocation8 + $0x28] sm:$0xf]
        %v831 = vld [vmem:[#allocation8 + $0x2c] sm:$0xf]
        %v832 = vld [vmem:[#allocation8 + $0x30] sm:$0xf]
        %v833 = vld [vmem:[#allocation8 + $0x34] sm:$0xf]
        %v834 = vld [vmem:[#allocation8 + $0x38] sm:$0xf]
        %v835 = vld [vmem:[#allocation8 + $0x3c] sm:$0xf]
        %v836 = vld [vmem:[%s5] sm:$0x1]
        %v838 = vperm.slane %v836, 0
        %v856 = vunpack.c.l.b16 %v820
        %v857 = vunpack.c.l.b16 %v821
        %v858 = vunpack.c.l.b16 %v822
        %v859 = vunpack.c.l.b16 %v823
        %v860 = vunpack.c.l.b16 %v824
        %v861 = vunpack.c.l.b16 %v825
        %v862 = vunpack.c.l.b16 %v826
        %v863 = vunpack.c.l.b16 %v827
        %v864 = vunpack.c.l.b16 %v828
        %v865 = vunpack.c.l.b16 %v829
        %v866 = vunpack.c.l.b16 %v830
        %v867 = vunpack.c.l.b16 %v831
        %v868 = vunpack.c.l.b16 %v832
        %v869 = vunpack.c.l.b16 %v833
        %v870 = vunpack.c.l.b16 %v834
        %v871 = vunpack.c.l.b16 %v835
        %v872 = vpack.c.b16 %v857, %v856
        %v873 = vpack.c.b16 %v859, %v858
        %v874 = vpack.c.b16 %v861, %v860
        %v875 = vpack.c.b16 %v863, %v862
        %v876 = vpack.c.b16 %v865, %v864
        %v877 = vpack.c.b16 %v867, %v866
        %v878 = vpack.c.b16 %v869, %v868
        %v879 = vpack.c.b16 %v871, %v870
        %888 = vmatpush.bf16.msra.mxu0 %v879
        %889 = vmatpush.bf16.msra.mxu0 %v878
        %890 = vmatpush.bf16.msra.mxu0 %v877
        %891 = vmatpush.bf16.msra.mxu0 %v876
        %892 = vmatpush.bf16.msra.mxu0 %v875
        %893 = vmatpush.bf16.msra.mxu0 %v874
        %894 = vmatpush.bf16.msra.mxu0 %v873
        %895 = vmatpush.bf16.msra.mxu0 %v872
        %896 = vmatmul.bf16.gmra.mxu0 %v816
        %v897 = vpop.f32.mrf.mxu0
        %v898 = vadd.f32 %v838, %v897
        %v899 = vpop.f32.mrf.mxu0
        %v900 = vadd.f32 %v838, %v899
        %901 = vmatmul.bf16.gmra.mxu0 %v817
        %v902 = vpop.f32.mrf.mxu0
        %v903 = vadd.f32 %v838, %v902
        %v904 = vpop.f32.mrf.mxu0
        %v905 = vadd.f32 %v838, %v904
        %906 = vmatmul.bf16.gmra.mxu0 %v818
        %v907 = vpop.f32.mrf.mxu0
        %v908 = vadd.f32 %v838, %v907
        %v909 = vpop.f32.mrf.mxu0
        %v910 = vadd.f32 %v838, %v909
        %911 = vmatmul.bf16.gmra.mxu0 %v819
        %v912 = vpop.f32.mrf.mxu0
        %v913 = vadd.f32 %v838, %v912
        %v914 = vpop.f32.mrf.mxu0
        %v915 = vadd.f32 %v838, %v914
        %916 = vdwg.mxu0
        %v917 = vmul.f32 %v898, 0.2
        %v918 = vmul.f32 %v900, 0.2
        %v919 = vmul.f32 %v903, 0.2
        %v920 = vmul.f32 %v905, 0.2
        %v921 = vmul.f32 %v908, 0.2
        %v922 = vmul.f32 %v910, 0.2
        %v923 = vmul.f32 %v913, 0.2
        %v924 = vmul.f32 %v915, 0.2
        %v925 = vmax.f32 %v898, %v917
        %v926 = vmax.f32 %v900, %v918
        %v927 = vmax.f32 %v903, %v919
        %v928 = vmax.f32 %v905, %v920
        %v929 = vmax.f32 %v908, %v921
        %v930 = vmax.f32 %v910, %v922
        %v931 = vmax.f32 %v913, %v923
        %v932 = vmax.f32 %v915, %v924
        %v933 = vpack.c.bf16 %v926, %v925
        %v934 = vpack.c.bf16 %v928, %v927
        %v935 = vpack.c.bf16 %v930, %v929
        %v936 = vpack.c.bf16 %v932, %v931
        %v937 = vld [vmem:[#allocation10] sm:$0xff]
        %v938 = vld [vmem:[#allocation10 + $0x8] sm:$0xff]
        %v939 = vld [vmem:[#allocation10 + $0x10] sm:$0xff]
        %v940 = vld [vmem:[#allocation10 + $0x18] sm:$0xff]
        %v941 = vld [vmem:[#allocation10 + $0x20] sm:$0xff]
        %v942 = vld [vmem:[#allocation10 + $0x28] sm:$0xff]
        %v943 = vld [vmem:[#allocation10 + $0x30] sm:$0xff]
        %v944 = vld [vmem:[#allocation10 + $0x38] sm:$0xff]
        %v945 = vld [vmem:[#allocation10 + $0x40] sm:$0xff]
        %v946 = vld [vmem:[#allocation10 + $0x48] sm:$0xff]
        %v947 = vld [vmem:[#allocation10 + $0x50] sm:$0xff]
        %v948 = vld [vmem:[#allocation10 + $0x58] sm:$0xff]
        %v949 = vld [vmem:[#allocation10 + $0x60] sm:$0xff]
        %v950 = vld [vmem:[#allocation10 + $0x68] sm:$0xff]
        %v951 = vld [vmem:[#allocation10 + $0x70] sm:$0xff]
        %v952 = vld [vmem:[#allocation10 + $0x78] sm:$0xff]
        %v953 = vld [vmem:[%s7] sm:$0x3]
        %v955 = vperm.slane %v953, 0
        %v956 = vperm.slane %v953, 1
        %v975 = vunpack.c.l.b16 %v937
        %v976 = vunpack.c.h.b16 %v937
        %v977 = vunpack.c.l.b16 %v938
        %v978 = vunpack.c.h.b16 %v938
        %v979 = vunpack.c.l.b16 %v939
        %v980 = vunpack.c.h.b16 %v939
        %v981 = vunpack.c.l.b16 %v940
        %v982 = vunpack.c.h.b16 %v940
        %v983 = vunpack.c.l.b16 %v941
        %v984 = vunpack.c.h.b16 %v941
        %v985 = vunpack.c.l.b16 %v942
        %v986 = vunpack.c.h.b16 %v942
        %v987 = vunpack.c.l.b16 %v943
        %v988 = vunpack.c.h.b16 %v943
        %v989 = vunpack.c.l.b16 %v944
        %v990 = vunpack.c.h.b16 %v944
        %v991 = vunpack.c.l.b16 %v945
        %v992 = vunpack.c.h.b16 %v945
        %v993 = vunpack.c.l.b16 %v946
        %v994 = vunpack.c.h.b16 %v946
        %v995 = vunpack.c.l.b16 %v947
        %v996 = vunpack.c.h.b16 %v947
        %v997 = vunpack.c.l.b16 %v948
        %v998 = vunpack.c.h.b16 %v948
        %v999 = vunpack.c.l.b16 %v949
        %v1000 = vunpack.c.h.b16 %v949
        %v1001 = vunpack.c.l.b16 %v950
        %v1002 = vunpack.c.h.b16 %v950
        %v1003 = vunpack.c.l.b16 %v951
        %v1004 = vunpack.c.h.b16 %v951
        %v1005 = vunpack.c.l.b16 %v952
        %v1006 = vunpack.c.h.b16 %v952
        %v1007 = vpack.c.b16 %v977, %v975
        %v1008 = vpack.c.b16 %v978, %v976
        %v1009 = vpack.c.b16 %v981, %v979
        %v1010 = vpack.c.b16 %v982, %v980
        %v1011 = vpack.c.b16 %v985, %v983
        %v1012 = vpack.c.b16 %v986, %v984
        %v1013 = vpack.c.b16 %v989, %v987
        %v1014 = vpack.c.b16 %v990, %v988
        %v1015 = vpack.c.b16 %v993, %v991
        %v1016 = vpack.c.b16 %v994, %v992
        %v1017 = vpack.c.b16 %v997, %v995
        %v1018 = vpack.c.b16 %v998, %v996
        %v1019 = vpack.c.b16 %v1001, %v999
        %v1020 = vpack.c.b16 %v1002, %v1000
        %v1021 = vpack.c.b16 %v1005, %v1003
        %v1022 = vpack.c.b16 %v1006, %v1004
        %1039 = vmatpush.bf16.msra.mxu0 %v1021
        %1040 = vmatpush.bf16.msra.mxu0 %v1019
        %1041 = vmatpush.bf16.msra.mxu0 %v1017
        %1042 = vmatpush.bf16.msra.mxu0 %v1015
        %1043 = vmatpush.bf16.msra.mxu0 %v1013
        %1044 = vmatpush.bf16.msra.mxu0 %v1011
        %1045 = vmatpush.bf16.msra.mxu0 %v1009
        %1046 = vmatpush.bf16.msra.mxu0 %v1007
        %1047 = vmatmul.bf16.gmra.mxu0 %v933
        %v1048 = vpop.f32.mrf.mxu0
        %v1049 = vadd.f32 %v955, %v1048
        %v1050 = vpop.f32.mrf.mxu0
        %v1051 = vadd.f32 %v955, %v1050
        %1052 = vmatmul.bf16.gmra.mxu0 %v934
        %v1053 = vpop.f32.mrf.mxu0
        %v1054 = vadd.f32 %v955, %v1053
        %v1055 = vpop.f32.mrf.mxu0
        %v1056 = vadd.f32 %v955, %v1055
        %1057 = vmatmul.bf16.gmra.mxu0 %v935
        %v1058 = vpop.f32.mrf.mxu0
        %v1059 = vadd.f32 %v955, %v1058
        %v1060 = vpop.f32.mrf.mxu0
        %v1061 = vadd.f32 %v955, %v1060
        %1062 = vmatmul.bf16.gmra.mxu0 %v936
        %v1063 = vpop.f32.mrf.mxu0
        %v1064 = vadd.f32 %v955, %v1063
        %v1065 = vpop.f32.mrf.mxu0
        %v1066 = vadd.f32 %v955, %v1065
        %1067 = vdwg.mxu0
        %1068 = vmatpush.bf16.msra.mxu0 %v1022
        %1069 = vmatpush.bf16.msra.mxu0 %v1020
        %1070 = vmatpush.bf16.msra.mxu0 %v1018
        %1071 = vmatpush.bf16.msra.mxu0 %v1016
        %1072 = vmatpush.bf16.msra.mxu0 %v1014
        %1073 = vmatpush.bf16.msra.mxu0 %v1012
        %1074 = vmatpush.bf16.msra.mxu0 %v1010
        %1075 = vmatpush.bf16.msra.mxu0 %v1008
        %1076 = vmatmul.bf16.gmra.mxu0 %v933
        %v1077 = vpop.f32.mrf.mxu0
        %v1078 = vadd.f32 %v956, %v1077
        %v1079 = vpop.f32.mrf.mxu0
        %v1080 = vadd.f32 %v956, %v1079
        %1081 = vmatmul.bf16.gmra.mxu0 %v934
        %v1082 = vpop.f32.mrf.mxu0
        %v1083 = vadd.f32 %v956, %v1082
        %v1084 = vpop.f32.mrf.mxu0
        %v1085 = vadd.f32 %v956, %v1084
        %1086 = vmatmul.bf16.gmra.mxu0 %v935
        %v1087 = vpop.f32.mrf.mxu0
        %v1088 = vadd.f32 %v956, %v1087
        %v1089 = vpop.f32.mrf.mxu0
        %v1090 = vadd.f32 %v956, %v1089
        %1091 = vmatmul.bf16.gmra.mxu0 %v936
        %v1092 = vpop.f32.mrf.mxu0
        %v1093 = vadd.f32 %v956, %v1092
        %v1094 = vpop.f32.mrf.mxu0
        %v1095 = vadd.f32 %v956, %v1094
        %1096 = vdwg.mxu0
        %v1097 = vmul.f32 %v1078, 0.5
        %v1098 = vmul.f32 %v1080, 0.5
        %v1099 = vmul.f32 %v1083, 0.5
        %v1100 = vmul.f32 %v1085, 0.5
        %v1101 = vmul.f32 %v1088, 0.5
        %v1102 = vmul.f32 %v1090, 0.5
        %v1103 = vmul.f32 %v1093, 0.5
        %v1104 = vmul.f32 %v1095, 0.5
        %v1105 = vmul.f32 %v1097, 1.442695
        %v1106 = vpow.pop %v1105
        %v1107 = vmul.f32 %v1098, 1.442695
        %v1108 = vpow.pop %v1107
        %v1109 = vmul.f32 %v1099, 1.442695
        %v1110 = vpow.pop %v1109
        %v1111 = vmul.f32 %v1100, 1.442695
        %v1112 = vpow.pop %v1111
        %v1113 = vmul.f32 %v1101, 1.442695
        %v1114 = vpow.pop %v1113
        %v1115 = vmul.f32 %v1102, 1.442695
        %v1116 = vpow.pop %v1115
        %v1117 = vmul.f32 %v1103, 1.442695
        %v1118 = vpow.pop %v1117
        %v1119 = vmul.f32 %v1104, 1.442695
        %v1120 = vpow.pop %v1119
        %v1121 = vld [vmem:[%s579] sm:$0xff]
        %v1122 = vld [vmem:[%s579 + $0x8] sm:$0xff]
        %v1123 = vld [vmem:[%s579 + $0x10] sm:$0xff]
        %v1124 = vld [vmem:[%s579 + $0x18] sm:$0xff]
        %v1125 = vld [vmem:[%s579 + $0x20] sm:$0xff]
        %v1126 = vld [vmem:[%s579 + $0x28] sm:$0xff]
        %v1127 = vld [vmem:[%s579 + $0x30] sm:$0xff]
        %v1128 = vld [vmem:[%s579 + $0x38] sm:$0xff]
        %v1129 = vmul.f32 %v1106, %v1121
        %v1130 = vmul.f32 %v1108, %v1122
        %v1131 = vmul.f32 %v1110, %v1123
        %v1132 = vmul.f32 %v1112, %v1124
        %v1133 = vmul.f32 %v1114, %v1125
        %v1134 = vmul.f32 %v1116, %v1126
        %v1135 = vmul.f32 %v1118, %v1127
        %v1136 = vmul.f32 %v1120, %v1128
        %v1137 = vadd.f32 %v1049, %v1129
        %v1138 = vadd.f32 %v1051, %v1130
        %v1139 = vadd.f32 %v1054, %v1131
        %v1140 = vadd.f32 %v1056, %v1132
        %v1141 = vadd.f32 %v1059, %v1133
        %v1142 = vadd.f32 %v1061, %v1134
        %v1143 = vadd.f32 %v1064, %v1135
        %v1144 = vadd.f32 %v1066, %v1136
        %v1145 = vpack.c.bf16 %v1138, %v1137
        %v1146 = vpack.c.bf16 %v1140, %v1139
        %v1147 = vpack.c.bf16 %v1142, %v1141
        %v1148 = vpack.c.bf16 %v1144, %v1143
        %v1149 = vld [vmem:[#allocation11] sm:$0xf]
        %v1150 = vld [vmem:[#allocation11 + $0x4] sm:$0xf]
        %v1151 = vld [vmem:[#allocation11 + $0x8] sm:$0xf]
        %v1152 = vld [vmem:[#allocation11 + $0xc] sm:$0xf]
        %v1153 = vld [vmem:[#allocation11 + $0x10] sm:$0xf]
        %v1154 = vld [vmem:[#allocation11 + $0x14] sm:$0xf]
        %v1155 = vld [vmem:[#allocation11 + $0x18] sm:$0xf]
        %v1156 = vld [vmem:[#allocation11 + $0x1c] sm:$0xf]
        %v1157 = vld [vmem:[#allocation11 + $0x20] sm:$0xf]
        %v1158 = vld [vmem:[#allocation11 + $0x24] sm:$0xf]
        %v1159 = vld [vmem:[#allocation11 + $0x28] sm:$0xf]
        %v1160 = vld [vmem:[#allocation11 + $0x2c] sm:$0xf]
        %v1161 = vld [vmem:[#allocation11 + $0x30] sm:$0xf]
        %v1162 = vld [vmem:[#allocation11 + $0x34] sm:$0xf]
        %v1163 = vld [vmem:[#allocation11 + $0x38] sm:$0xf]
        %v1164 = vld [vmem:[#allocation11 + $0x3c] sm:$0xf]
        %v1165 = vld [vmem:[%s9] sm:$0x1]
        %v1167 = vperm.slane %v1165, 0
        %v1185 = vunpack.c.l.b16 %v1149
        %v1186 = vunpack.c.l.b16 %v1150
        %v1187 = vunpack.c.l.b16 %v1151
        %v1188 = vunpack.c.l.b16 %v1152
        %v1189 = vunpack.c.l.b16 %v1153
        %v1190 = vunpack.c.l.b16 %v1154
        %v1191 = vunpack.c.l.b16 %v1155
        %v1192 = vunpack.c.l.b16 %v1156
        %v1193 = vunpack.c.l.b16 %v1157
        %v1194 = vunpack.c.l.b16 %v1158
        %v1195 = vunpack.c.l.b16 %v1159
        %v1196 = vunpack.c.l.b16 %v1160
        %v1197 = vunpack.c.l.b16 %v1161
        %v1198 = vunpack.c.l.b16 %v1162
        %v1199 = vunpack.c.l.b16 %v1163
        %v1200 = vunpack.c.l.b16 %v1164
        %v1201 = vpack.c.b16 %v1186, %v1185
        %v1202 = vpack.c.b16 %v1188, %v1187
        %v1203 = vpack.c.b16 %v1190, %v1189
        %v1204 = vpack.c.b16 %v1192, %v1191
        %v1205 = vpack.c.b16 %v1194, %v1193
        %v1206 = vpack.c.b16 %v1196, %v1195
        %v1207 = vpack.c.b16 %v1198, %v1197
        %v1208 = vpack.c.b16 %v1200, %v1199
        %1217 = vmatpush.bf16.msra.mxu0 %v1208
        %1218 = vmatpush.bf16.msra.mxu0 %v1207
        %1219 = vmatpush.bf16.msra.mxu0 %v1206
        %1220 = vmatpush.bf16.msra.mxu0 %v1205
        %1221 = vmatpush.bf16.msra.mxu0 %v1204
        %1222 = vmatpush.bf16.msra.mxu0 %v1203
        %1223 = vmatpush.bf16.msra.mxu0 %v1202
        %1224 = vmatpush.bf16.msra.mxu0 %v1201
        %1225 = vmatmul.bf16.gmra.mxu0 %v1145
        %v1226 = vpop.f32.mrf.mxu0
        %v1227 = vadd.f32 %v1167, %v1226
        %v1228 = vpop.f32.mrf.mxu0
        %v1229 = vadd.f32 %v1167, %v1228
        %1230 = vmatmul.bf16.gmra.mxu0 %v1146
        %v1231 = vpop.f32.mrf.mxu0
        %v1232 = vadd.f32 %v1167, %v1231
        %v1233 = vpop.f32.mrf.mxu0
        %v1234 = vadd.f32 %v1167, %v1233
        %1235 = vmatmul.bf16.gmra.mxu0 %v1147
        %v1236 = vpop.f32.mrf.mxu0
        %v1237 = vadd.f32 %v1167, %v1236
        %v1238 = vpop.f32.mrf.mxu0
        %v1239 = vadd.f32 %v1167, %v1238
        %1240 = vmatmul.bf16.gmra.mxu0 %v1148
        %v1241 = vpop.f32.mrf.mxu0
        %v1242 = vadd.f32 %v1167, %v1241
        %v1243 = vpop.f32.mrf.mxu0
        %v1244 = vadd.f32 %v1167, %v1243
        %1245 = vdwg.mxu0
        %v1246 = vmul.f32 %v1227, 0.2
        %v1247 = vmul.f32 %v1229, 0.2
        %v1248 = vmul.f32 %v1232, 0.2
        %v1249 = vmul.f32 %v1234, 0.2
        %v1250 = vmul.f32 %v1237, 0.2
        %v1251 = vmul.f32 %v1239, 0.2
        %v1252 = vmul.f32 %v1242, 0.2
        %v1253 = vmul.f32 %v1244, 0.2
        %v1254 = vmax.f32 %v1227, %v1246
        %v1255 = vmax.f32 %v1229, %v1247
        %v1256 = vmax.f32 %v1232, %v1248
        %v1257 = vmax.f32 %v1234, %v1249
        %v1258 = vmax.f32 %v1237, %v1250
        %v1259 = vmax.f32 %v1239, %v1251
        %v1260 = vmax.f32 %v1242, %v1252
        %v1261 = vmax.f32 %v1244, %v1253
        %v1262 = vpack.c.bf16 %v1255, %v1254
        %v1263 = vpack.c.bf16 %v1257, %v1256
        %v1264 = vpack.c.bf16 %v1259, %v1258
        %v1265 = vpack.c.bf16 %v1261, %v1260
        %v1266 = vld [vmem:[#allocation13] sm:$0xf]
        %v1267 = vld [vmem:[#allocation13 + $0x4] sm:$0xf]
        %v1268 = vld [vmem:[#allocation13 + $0x8] sm:$0xf]
        %v1269 = vld [vmem:[#allocation13 + $0xc] sm:$0xf]
        %v1270 = vld [vmem:[#allocation13 + $0x10] sm:$0xf]
        %v1271 = vld [vmem:[#allocation13 + $0x14] sm:$0xf]
        %v1272 = vld [vmem:[#allocation13 + $0x18] sm:$0xf]
        %v1273 = vld [vmem:[#allocation13 + $0x1c] sm:$0xf]
        %v1274 = vld [vmem:[#allocation13 + $0x20] sm:$0xf]
        %v1275 = vld [vmem:[#allocation13 + $0x24] sm:$0xf]
        %v1276 = vld [vmem:[#allocation13 + $0x28] sm:$0xf]
        %v1277 = vld [vmem:[#allocation13 + $0x2c] sm:$0xf]
        %v1278 = vld [vmem:[#allocation13 + $0x30] sm:$0xf]
        %v1279 = vld [vmem:[#allocation13 + $0x34] sm:$0xf]
        %v1280 = vld [vmem:[#allocation13 + $0x38] sm:$0xf]
        %v1281 = vld [vmem:[#allocation13 + $0x3c] sm:$0xf]
        %v1282 = vld [vmem:[%s11] sm:$0x1]
        %v1284 = vperm.slane %v1282, 0
        %v1302 = vunpack.c.l.b16 %v1266
        %v1303 = vunpack.c.l.b16 %v1267
        %v1304 = vunpack.c.l.b16 %v1268
        %v1305 = vunpack.c.l.b16 %v1269
        %v1306 = vunpack.c.l.b16 %v1270
        %v1307 = vunpack.c.l.b16 %v1271
        %v1308 = vunpack.c.l.b16 %v1272
        %v1309 = vunpack.c.l.b16 %v1273
        %v1310 = vunpack.c.l.b16 %v1274
        %v1311 = vunpack.c.l.b16 %v1275
        %v1312 = vunpack.c.l.b16 %v1276
        %v1313 = vunpack.c.l.b16 %v1277
        %v1314 = vunpack.c.l.b16 %v1278
        %v1315 = vunpack.c.l.b16 %v1279
        %v1316 = vunpack.c.l.b16 %v1280
        %v1317 = vunpack.c.l.b16 %v1281
        %v1318 = vpack.c.b16 %v1303, %v1302
        %v1319 = vpack.c.b16 %v1305, %v1304
        %v1320 = vpack.c.b16 %v1307, %v1306
        %v1321 = vpack.c.b16 %v1309, %v1308
        %v1322 = vpack.c.b16 %v1311, %v1310
        %v1323 = vpack.c.b16 %v1313, %v1312
        %v1324 = vpack.c.b16 %v1315, %v1314
        %v1325 = vpack.c.b16 %v1317, %v1316
        %1334 = vmatpush.bf16.msra.mxu0 %v1325
        %1335 = vmatpush.bf16.msra.mxu0 %v1324
        %1336 = vmatpush.bf16.msra.mxu0 %v1323
        %1337 = vmatpush.bf16.msra.mxu0 %v1322
        %1338 = vmatpush.bf16.msra.mxu0 %v1321
        %1339 = vmatpush.bf16.msra.mxu0 %v1320
        %1340 = vmatpush.bf16.msra.mxu0 %v1319
        %1341 = vmatpush.bf16.msra.mxu0 %v1318
        %1342 = vmatmul.bf16.gmra.mxu0 %v1262
        %v1343 = vpop.f32.mrf.mxu0
        %v1344 = vadd.f32 %v1284, %v1343
        %v1345 = vpop.f32.mrf.mxu0
        %v1346 = vadd.f32 %v1284, %v1345
        %1347 = vmatmul.bf16.gmra.mxu0 %v1263
        %v1348 = vpop.f32.mrf.mxu0
        %v1349 = vadd.f32 %v1284, %v1348
        %v1350 = vpop.f32.mrf.mxu0
        %v1351 = vadd.f32 %v1284, %v1350
        %1352 = vmatmul.bf16.gmra.mxu0 %v1264
        %v1353 = vpop.f32.mrf.mxu0
        %v1354 = vadd.f32 %v1284, %v1353
        %v1355 = vpop.f32.mrf.mxu0
        %v1356 = vadd.f32 %v1284, %v1355
        %1357 = vmatmul.bf16.gmra.mxu0 %v1265
        %v1358 = vpop.f32.mrf.mxu0
        %v1359 = vadd.f32 %v1284, %v1358
        %v1360 = vpop.f32.mrf.mxu0
        %v1361 = vadd.f32 %v1284, %v1360
        %1362 = vdwg.mxu0
        %v1363 = vmul.f32 %v1344, 0.2
        %v1364 = vmul.f32 %v1346, 0.2
        %v1365 = vmul.f32 %v1349, 0.2
        %v1366 = vmul.f32 %v1351, 0.2
        %v1367 = vmul.f32 %v1354, 0.2
        %v1368 = vmul.f32 %v1356, 0.2
        %v1369 = vmul.f32 %v1359, 0.2
        %v1370 = vmul.f32 %v1361, 0.2
        %v1371 = vmax.f32 %v1344, %v1363
        %v1372 = vmax.f32 %v1346, %v1364
        %v1373 = vmax.f32 %v1349, %v1365
        %v1374 = vmax.f32 %v1351, %v1366
        %v1375 = vmax.f32 %v1354, %v1367
        %v1376 = vmax.f32 %v1356, %v1368
        %v1377 = vmax.f32 %v1359, %v1369
        %v1378 = vmax.f32 %v1361, %v1370
        %v1379 = vpack.c.bf16 %v1372, %v1371
        %v1380 = vpack.c.bf16 %v1374, %v1373
        %v1381 = vpack.c.bf16 %v1376, %v1375
        %v1382 = vpack.c.bf16 %v1378, %v1377
        %v1383 = vld [vmem:[#allocation14] sm:$0xf]
        %v1384 = vld [vmem:[#allocation14 + $0x4] sm:$0xf]
        %v1385 = vld [vmem:[#allocation14 + $0x8] sm:$0xf]
        %v1386 = vld [vmem:[#allocation14 + $0xc] sm:$0xf]
        %v1387 = vld [vmem:[#allocation14 + $0x10] sm:$0xf]
        %v1388 = vld [vmem:[#allocation14 + $0x14] sm:$0xf]
        %v1389 = vld [vmem:[#allocation14 + $0x18] sm:$0xf]
        %v1390 = vld [vmem:[#allocation14 + $0x1c] sm:$0xf]
        %v1391 = vld [vmem:[#allocation14 + $0x20] sm:$0xf]
        %v1392 = vld [vmem:[#allocation14 + $0x24] sm:$0xf]
        %v1393 = vld [vmem:[#allocation14 + $0x28] sm:$0xf]
        %v1394 = vld [vmem:[#allocation14 + $0x2c] sm:$0xf]
        %v1395 = vld [vmem:[#allocation14 + $0x30] sm:$0xf]
        %v1396 = vld [vmem:[#allocation14 + $0x34] sm:$0xf]
        %v1397 = vld [vmem:[#allocation14 + $0x38] sm:$0xf]
        %v1398 = vld [vmem:[#allocation14 + $0x3c] sm:$0xf]
        %v1399 = vld [vmem:[%s13] sm:$0x1]
        %v1401 = vperm.slane %v1399, 0
        %v1419 = vunpack.c.l.b16 %v1383
        %v1420 = vunpack.c.l.b16 %v1384
        %v1421 = vunpack.c.l.b16 %v1385
        %v1422 = vunpack.c.l.b16 %v1386
        %v1423 = vunpack.c.l.b16 %v1387
        %v1424 = vunpack.c.l.b16 %v1388
        %v1425 = vunpack.c.l.b16 %v1389
        %v1426 = vunpack.c.l.b16 %v1390
        %v1427 = vunpack.c.l.b16 %v1391
        %v1428 = vunpack.c.l.b16 %v1392
        %v1429 = vunpack.c.l.b16 %v1393
        %v1430 = vunpack.c.l.b16 %v1394
        %v1431 = vunpack.c.l.b16 %v1395
        %v1432 = vunpack.c.l.b16 %v1396
        %v1433 = vunpack.c.l.b16 %v1397
        %v1434 = vunpack.c.l.b16 %v1398
        %v1435 = vpack.c.b16 %v1420, %v1419
        %v1436 = vpack.c.b16 %v1422, %v1421
        %v1437 = vpack.c.b16 %v1424, %v1423
        %v1438 = vpack.c.b16 %v1426, %v1425
        %v1439 = vpack.c.b16 %v1428, %v1427
        %v1440 = vpack.c.b16 %v1430, %v1429
        %v1441 = vpack.c.b16 %v1432, %v1431
        %v1442 = vpack.c.b16 %v1434, %v1433
        %1451 = vmatpush.bf16.msra.mxu0 %v1442
        %1452 = vmatpush.bf16.msra.mxu0 %v1441
        %1453 = vmatpush.bf16.msra.mxu0 %v1440
        %1454 = vmatpush.bf16.msra.mxu0 %v1439
        %1455 = vmatpush.bf16.msra.mxu0 %v1438
        %1456 = vmatpush.bf16.msra.mxu0 %v1437
        %1457 = vmatpush.bf16.msra.mxu0 %v1436
        %1458 = vmatpush.bf16.msra.mxu0 %v1435
        %1459 = vmatmul.bf16.gmra.mxu0 %v1379
        %v1460 = vpop.f32.mrf.mxu0
        %v1461 = vadd.f32 %v1401, %v1460
        %v1462 = vpop.f32.mrf.mxu0
        %v1463 = vadd.f32 %v1401, %v1462
        %1464 = vmatmul.bf16.gmra.mxu0 %v1380
        %v1465 = vpop.f32.mrf.mxu0
        %v1466 = vadd.f32 %v1401, %v1465
        %v1467 = vpop.f32.mrf.mxu0
        %v1468 = vadd.f32 %v1401, %v1467
        %1469 = vmatmul.bf16.gmra.mxu0 %v1381
        %v1470 = vpop.f32.mrf.mxu0
        %v1471 = vadd.f32 %v1401, %v1470
        %v1472 = vpop.f32.mrf.mxu0
        %v1473 = vadd.f32 %v1401, %v1472
        %1474 = vmatmul.bf16.gmra.mxu0 %v1382
        %v1475 = vpop.f32.mrf.mxu0
        %v1476 = vadd.f32 %v1401, %v1475
        %v1477 = vpop.f32.mrf.mxu0
        %v1478 = vadd.f32 %v1401, %v1477
        %1479 = vdwg.mxu0
        %v1480 = vxor.u32 %v1461, 2147483648
        %v1481 = vxor.u32 %v1463, 2147483648
        %v1482 = vxor.u32 %v1466, 2147483648
        %v1483 = vxor.u32 %v1468, 2147483648
        %v1484 = vxor.u32 %v1471, 2147483648
        %v1485 = vxor.u32 %v1473, 2147483648
        %v1486 = vxor.u32 %v1476, 2147483648
        %v1487 = vxor.u32 %v1478, 2147483648
        %v1488 = vmul.f32 %v1480, 1.442695
        %v1489 = vpow.pop %v1488
        %v1490 = vmul.f32 %v1481, 1.442695
        %v1491 = vpow.pop %v1490
        %v1492 = vmul.f32 %v1482, 1.442695
        %v1493 = vpow.pop %v1492
        %v1494 = vmul.f32 %v1483, 1.442695
        %v1495 = vpow.pop %v1494
        %v1496 = vmul.f32 %v1484, 1.442695
        %v1497 = vpow.pop %v1496
        %v1498 = vmul.f32 %v1485, 1.442695
        %v1499 = vpow.pop %v1498
        %v1500 = vmul.f32 %v1486, 1.442695
        %v1501 = vpow.pop %v1500
        %v1502 = vmul.f32 %v1487, 1.442695
        %v1503 = vpow.pop %v1502
        %v1504 = vadd.f32 %v1489, 1.0
        %v1505 = vadd.f32 %v1491, 1.0
        %v1506 = vadd.f32 %v1493, 1.0
        %v1507 = vadd.f32 %v1495, 1.0
        %v1508 = vadd.f32 %v1497, 1.0
        %v1509 = vadd.f32 %v1499, 1.0
        %v1510 = vadd.f32 %v1501, 1.0
        %v1511 = vadd.f32 %v1503, 1.0
        %v1512 = vrcp.pop %v1504
        %v1513 = vmul.f32 %v1504, %v1512
        %v1514 = vsub.f32 1.0, %v1513
        %v1515 = vmul.f32 %v1512, %v1514
        %v1516 = vadd.f32 %v1512, %v1515
        %vm1517 = vweird.f32 %v1504
        %vm1518 = vweird.f32 %v1512
        %vm1519 = vmor %vm1517, %vm1518
        %v1520 = vsel %vm1519, %v1512, %v1516
        %v1521 = vand.u32 2147483647, %v1504
        %vm1522 = vcmp.eq.f32.partialorder %v1521, 8.507059e+37
        %v1523 = vand.u32 %v1504, 2147483648
        %v1524 = vor.u32 1.1754944e-38, %v1523
        %v1525 = vsel %vm1522, %v1524, %v1520
        %v1526 = vmul.f32 1.0, %v1525
        %v1527 = vrcp.pop %v1505
        %v1528 = vmul.f32 %v1505, %v1527
        %v1529 = vsub.f32 1.0, %v1528
        %v1530 = vmul.f32 %v1527, %v1529
        %v1531 = vadd.f32 %v1527, %v1530
        %vm1532 = vweird.f32 %v1505
        %vm1533 = vweird.f32 %v1527
        %vm1534 = vmor %vm1532, %vm1533
        %v1535 = vsel %vm1534, %v1527, %v1531
        %v1536 = vand.u32 2147483647, %v1505
        %vm1537 = vcmp.eq.f32.partialorder %v1536, 8.507059e+37
        %v1538 = vand.u32 %v1505, 2147483648
        %v1539 = vor.u32 1.1754944e-38, %v1538
        %v1540 = vsel %vm1537, %v1539, %v1535
        %v1541 = vmul.f32 1.0, %v1540
        %v1542 = vrcp.pop %v1506
        %v1543 = vmul.f32 %v1506, %v1542
        %v1544 = vsub.f32 1.0, %v1543
        %v1545 = vmul.f32 %v1542, %v1544
        %v1546 = vadd.f32 %v1542, %v1545
        %vm1547 = vweird.f32 %v1506
        %vm1548 = vweird.f32 %v1542
        %vm1549 = vmor %vm1547, %vm1548
        %v1550 = vsel %vm1549, %v1542, %v1546
        %v1551 = vand.u32 2147483647, %v1506
        %vm1552 = vcmp.eq.f32.partialorder %v1551, 8.507059e+37
        %v1553 = vand.u32 %v1506, 2147483648
        %v1554 = vor.u32 1.1754944e-38, %v1553
        %v1555 = vsel %vm1552, %v1554, %v1550
        %v1556 = vmul.f32 1.0, %v1555
        %v1557 = vrcp.pop %v1507
        %v1558 = vmul.f32 %v1507, %v1557
        %v1559 = vsub.f32 1.0, %v1558
        %v1560 = vmul.f32 %v1557, %v1559
        %v1561 = vadd.f32 %v1557, %v1560
        %vm1562 = vweird.f32 %v1507
        %vm1563 = vweird.f32 %v1557
        %vm1564 = vmor %vm1562, %vm1563
        %v1565 = vsel %vm1564, %v1557, %v1561
        %v1566 = vand.u32 2147483647, %v1507
        %vm1567 = vcmp.eq.f32.partialorder %v1566, 8.507059e+37
        %v1568 = vand.u32 %v1507, 2147483648
        %v1569 = vor.u32 1.1754944e-38, %v1568
        %v1570 = vsel %vm1567, %v1569, %v1565
        %v1571 = vmul.f32 1.0, %v1570
        %v1572 = vrcp.pop %v1508
        %v1573 = vmul.f32 %v1508, %v1572
        %v1574 = vsub.f32 1.0, %v1573
        %v1575 = vmul.f32 %v1572, %v1574
        %v1576 = vadd.f32 %v1572, %v1575
        %vm1577 = vweird.f32 %v1508
        %vm1578 = vweird.f32 %v1572
        %vm1579 = vmor %vm1577, %vm1578
        %v1580 = vsel %vm1579, %v1572, %v1576
        %v1581 = vand.u32 2147483647, %v1508
        %vm1582 = vcmp.eq.f32.partialorder %v1581, 8.507059e+37
        %v1583 = vand.u32 %v1508, 2147483648
        %v1584 = vor.u32 1.1754944e-38, %v1583
        %v1585 = vsel %vm1582, %v1584, %v1580
        %v1586 = vmul.f32 1.0, %v1585
        %v1587 = vrcp.pop %v1509
        %v1588 = vmul.f32 %v1509, %v1587
        %v1589 = vsub.f32 1.0, %v1588
        %v1590 = vmul.f32 %v1587, %v1589
        %v1591 = vadd.f32 %v1587, %v1590
        %vm1592 = vweird.f32 %v1509
        %vm1593 = vweird.f32 %v1587
        %vm1594 = vmor %vm1592, %vm1593
        %v1595 = vsel %vm1594, %v1587, %v1591
        %v1596 = vand.u32 2147483647, %v1509
        %vm1597 = vcmp.eq.f32.partialorder %v1596, 8.507059e+37
        %v1598 = vand.u32 %v1509, 2147483648
        %v1599 = vor.u32 1.1754944e-38, %v1598
        %v1600 = vsel %vm1597, %v1599, %v1595
        %v1601 = vmul.f32 1.0, %v1600
        %v1602 = vrcp.pop %v1510
        %v1603 = vmul.f32 %v1510, %v1602
        %v1604 = vsub.f32 1.0, %v1603
        %v1605 = vmul.f32 %v1602, %v1604
        %v1606 = vadd.f32 %v1602, %v1605
        %vm1607 = vweird.f32 %v1510
        %vm1608 = vweird.f32 %v1602
        %vm1609 = vmor %vm1607, %vm1608
        %v1610 = vsel %vm1609, %v1602, %v1606
        %v1611 = vand.u32 2147483647, %v1510
        %vm1612 = vcmp.eq.f32.partialorder %v1611, 8.507059e+37
        %v1613 = vand.u32 %v1510, 2147483648
        %v1614 = vor.u32 1.1754944e-38, %v1613
        %v1615 = vsel %vm1612, %v1614, %v1610
        %v1616 = vmul.f32 1.0, %v1615
        %v1617 = vrcp.pop %v1511
        %v1618 = vmul.f32 %v1511, %v1617
        %v1619 = vsub.f32 1.0, %v1618
        %v1620 = vmul.f32 %v1617, %v1619
        %v1621 = vadd.f32 %v1617, %v1620
        %vm1622 = vweird.f32 %v1511
        %vm1623 = vweird.f32 %v1617
        %vm1624 = vmor %vm1622, %vm1623
        %v1625 = vsel %vm1624, %v1617, %v1621
        %v1626 = vand.u32 2147483647, %v1511
        %vm1627 = vcmp.eq.f32.partialorder %v1626, 8.507059e+37
        %v1628 = vand.u32 %v1511, 2147483648
        %v1629 = vor.u32 1.1754944e-38, %v1628
        %v1630 = vsel %vm1627, %v1629, %v1625
        %v1631 = vmul.f32 1.0, %v1630
        %1632 = vst [vmem:[%s659] sm:$0xff] %v1526
        %1633 = vst [vmem:[%s659 + $0x8] sm:$0xff] %v1541
        %1634 = vst [vmem:[%s659 + $0x10] sm:$0xff] %v1556
        %1635 = vst [vmem:[%s659 + $0x18] sm:$0xff] %v1571
        %1636 = vst [vmem:[%s659 + $0x20] sm:$0xff] %v1586
        %1637 = vst [vmem:[%s659 + $0x28] sm:$0xff] %v1601
        %1638 = vst [vmem:[%s659 + $0x30] sm:$0xff] %v1616
        %1639 = vst [vmem:[%s659 + $0x38] sm:$0xff] %v1631
        %1640 = vst [vmem:[%s666] sm:$0xff] %v1049
        %1641 = vst [vmem:[%s666 + $0x8] sm:$0xff] %v1078
        %1642 = vst [vmem:[%s666 + $0x10] sm:$0xff] %v1051
        %1643 = vst [vmem:[%s666 + $0x18] sm:$0xff] %v1080
        %1644 = vst [vmem:[%s666 + $0x20] sm:$0xff] %v1054
        %1645 = vst [vmem:[%s666 + $0x28] sm:$0xff] %v1083
        %1646 = vst [vmem:[%s666 + $0x30] sm:$0xff] %v1056
        %1647 = vst [vmem:[%s666 + $0x38] sm:$0xff] %v1085
        %1648 = vst [vmem:[%s666 + $0x40] sm:$0xff] %v1059
        %1649 = vst [vmem:[%s666 + $0x48] sm:$0xff] %v1088
        %1650 = vst [vmem:[%s666 + $0x50] sm:$0xff] %v1061
        %1651 = vst [vmem:[%s666 + $0x58] sm:$0xff] %v1090
        %1652 = vst [vmem:[%s666 + $0x60] sm:$0xff] %v1064
        %1653 = vst [vmem:[%s666 + $0x68] sm:$0xff] %v1093
        %1654 = vst [vmem:[%s666 + $0x70] sm:$0xff] %v1066
        %1655 = vst [vmem:[%s666 + $0x78] sm:$0xff] %v1095
        %s1656 = sand.u32 %s354, 1
        %s1657 = scalar_lea.sflag [#allocation4], %s1656
        %s1658 = sand.u32 %s354, 1
        %s1659 = smul.addr %s1658, 64
        %s1660 = scalar_lea.vmem [#allocation16], %s1659
        %s1661 = sand.u32 %s380, 1
        %s1662 = scalar_lea.sflag [#allocation18], %s1661
        %s1663 = sand.u32 %s380, 1
        %s1664 = smul.addr %s1663, 128
        %s1665 = scalar_lea.vmem [#allocation17], %s1664
        // Predicated region
        $region109: #{tpu_custom_call.1} parent=75 // pred_check
          %p1666 = pneg %p364
        $region110: #{tpu_custom_call.1} parent=75 // pred_check_branch
          %1668 = sbr.rel (%p1666) target = $region112
        $region111: #{tpu_custom_call.1} parent=75 // pred_region
          %s1669 = smul.u32 8, %s42
          %1671 = vsyncadd %s1657, 0
          %s1672 = smul.addr %s1669, 8
          %s1673 = scalar_lea.hbm %s14, %s1672
          %s1674 = sshll.u32 %s1660, 4
          %s1675 = int_to_ptr.vmem [resolvable:$true] %s1674
          %s1676 = sshll.u32 %s1673, 4
          %s1677 = int_to_ptr.hbm [resolvable:$true] %s1676
          %1682 = dma.vmem_to_hbm [thread:$0]  %s1675, 1024, %s1677, %s1657, 128, 128, 8
        $region112: #{tpu_custom_call.1} parent=75 // pred_fallthru
          _
        // Predicated region
        $region113: #{tpu_custom_call.1} parent=75 // pred_check
          %p1683 = pneg %p390
        $region114: #{tpu_custom_call.1} parent=75 // pred_check_branch
          %1685 = sbr.rel (%p1683) target = $region116
        $region115: #{tpu_custom_call.1} parent=75 // pred_region
          %s1686 = smul.u32 8, %s42
          %1688 = vsyncadd %s1662, 0
          %s1689 = smul.addr %s1686, 2
          %s1690 = smul.addr %s1689, 8
          %s1691 = scalar_lea.hbm %s15, %s1690
          %s1692 = sshll.u32 %s1665, 4
          %s1693 = int_to_ptr.vmem [resolvable:$true] %s1692
          %s1694 = sshll.u32 %s1691, 4
          %s1695 = int_to_ptr.hbm [resolvable:$true] %s1694
          %1700 = dma.vmem_to_hbm [thread:$0]  %s1693, 2048, %s1695, %s1662, 256, 256, 16
        $region116: #{tpu_custom_call.1} parent=75 // pred_fallthru
          _
      $region76: #{tpu_custom_call.1} parent=5 // pred_fallthru
        _
      %p1701 = scmp.le.s32.totalorder 2, %s37
      // Predicated region
      $region117: #{tpu_custom_call.1} parent=5 // pred_check
        %p1702 = pneg %p1701
      $region118: #{tpu_custom_call.1} parent=5 // pred_check_branch
        %1704 = sbr.rel (%p1702) target = $region120
      $region119: #{tpu_custom_call.1} parent=5 // pred_region
        %s1705 = ssub.s32 %s37, 2
        // Predicated region
        $region121: #{tpu_custom_call.1} parent=119 // pred_check
          %p1706 = pneg %p370
        $region122: #{tpu_custom_call.1} parent=119 // pred_check_branch
          %1708 = sbr.rel (%p1706) target = $region124
        $region123: #{tpu_custom_call.1} parent=119 // pred_region
          %s1709 = sand.u32 %s355, 1
          %s1710 = scalar_lea.sflag [#allocation4], %s1709
          %s1711 = sand.u32 %s355, 1
          %s1712 = smul.addr %s1711, 64
          %s1713 = scalar_lea.vmem [#allocation16], %s1712
          %1715 = dma.done %s1710, 1024
        $region124: #{tpu_custom_call.1} parent=119 // pred_fallthru
          _
        // Predicated region
        $region125: #{tpu_custom_call.1} parent=119 // pred_check
          %p1716 = pneg %p396
        $region126: #{tpu_custom_call.1} parent=119 // pred_check_branch
          %1718 = sbr.rel (%p1716) target = $region128
        $region127: #{tpu_custom_call.1} parent=119 // pred_region
          %s1719 = sand.u32 %s381, 1
          %s1720 = scalar_lea.sflag [#allocation18], %s1719
          %s1721 = sand.u32 %s381, 1
          %s1722 = smul.addr %s1721, 128
          %s1723 = scalar_lea.vmem [#allocation17], %s1722
          %1725 = dma.done %s1720, 2048
        $region128: #{tpu_custom_call.1} parent=119 // pred_fallthru
          _
      $region120: #{tpu_custom_call.1} parent=5 // pred_fallthru
        _
    $region6: #{tpu_custom_call.1} parent=1 // loop_footer
      %s41 = sadd.s32 1, %s37
    $region7: #{tpu_custom_call.1} parent=1 // loop_footer_branch
      %36 = sbr.rel target = $region3
    $region8: #{tpu_custom_call.1} parent=1 // loop_exit
      _
    %1726 = vsyncpa [#allocation3], 1
    %s1727 = scalar_lea.sflag [#allocation3], 1
    %1728 = vsyncpa %s1727, 1
    %1729 = vsyncpa [#allocation6], 1
    %s1730 = scalar_lea.sflag [#allocation6], 1
    %1731 = vsyncpa %s1730, 1
    %1732 = vsyncpa [#allocation9], 1
    %1733 = vsyncpa [#allocation12], 1
    %1734 = vsyncpa [#allocation15], 1
    %1735 = vsyncpa [#allocation4], 1
    %s1736 = scalar_lea.sflag [#allocation4], 1
    %1737 = vsyncpa %s1736, 1
    %1738 = vsyncpa [#allocation18], 1
    %s1739 = scalar_lea.sflag [#allocation18], 1
    %1740 = vsyncpa %s1739, 1

// kernel: tpu_custom_call.1
$region0: #{tpu_custom_call.1}
  #allocation0 [shape = 'u32[]', space=smem, size = 0x4, offset = 0x4, fixed_abs, tag = 'smem constant byte address 0x4 - core index']
  #allocation1 [shape = 'u32[72,128]{1,0:T(1,128)}', space=vmem, size = 0x9000, scoped, tag = 'internal scratch']
  %s0 = inlined_call_operand.hbm [shape: bf16[128,128], index: 0, kind: input, shape index: {}]
  %s1 = inlined_call_operand.hbm [shape: f32[128,128], index: 1, kind: input, shape index: {}]
  %s2 = inlined_call_operand.hbm [shape: bf16[128,128], index: 2, kind: input, shape index: {}]
  %s3 = inlined_call_operand.vmem [shape: f32[1,128], index: 3, kind: input, shape index: {}]
  %s4 = inlined_call_operand.hbm [shape: bf16[128,128], index: 4, kind: input, shape index: {}]
  %s5 = inlined_call_operand.vmem [shape: f32[1,128], index: 5, kind: input, shape index: {}]
  %s6 = inlined_call_operand.hbm [shape: bf16[128,256], index: 6, kind: input, shape index: {}]
  %s7 = inlined_call_operand.vmem [shape: f32[1,256], index: 7, kind: input, shape index: {}]
  %s8 = inlined_call_operand.hbm [shape: bf16[128,128], index: 8, kind: input, shape index: {}]
  %s9 = inlined_call_operand.vmem [shape: f32[1,128], index: 9, kind: input, shape index: {}]
  %s10 = inlined_call_operand.hbm [shape: bf16[128,128], index: 10, kind: input, shape index: {}]
  %s11 = inlined_call_operand.vmem [shape: f32[1,128], index: 11, kind: input, shape index: {}]
  %s12 = inlined_call_operand.hbm [shape: bf16[128,128], index: 12, kind: input, shape index: {}]
  %s13 = inlined_call_operand.vmem [shape: f32[1,128], index: 13, kind: input, shape index: {}]
  %s14 = inlined_call_operand.hbm [shape: f32[128,128], index: 14, kind: output, shape index: {0}]
  %s15 = inlined_call_operand.hbm [shape: f32[128,256], index: 15, kind: output, shape index: {1}]
  %16 = xla_tuple %s14, %s15
  %s17 = sld [smem:[#allocation0]]
  $region129: #{tpu_custom_call.1} parent=0
    _
  %s19 = ssub.s32 1, %s17
  %s20 = scalar_select 0, %s19, %s17
  $region1: #{tpu_custom_call.1} parent=0
    #allocation2 [shape = 'u8[32768]{0}', space=vmem, size = 0x8000, scoped, tag = 'input window, operand 0']
    #allocation3 [shape = 's32[2]{0}', space=sflag, size = 0x8, scoped, tag = 'scoped memory for tpu_custom_call.1']
    #allocation4 [shape = 's32[2]{0}', space=sflag, size = 0x8, scoped, tag = 'scoped memory for tpu_custom_call.1']
    #allocation5 [shape = 'u8[65536]{0}', space=vmem, size = 0x10000, scoped, tag = 'input window, operand 1']
    #allocation6 [shape = 's32[2]{0}', space=sflag, size = 0x8, scoped, tag = 'scoped memory for tpu_custom_call.1']
    #allocation7 [shape = 'u8[32768]{0}', space=vmem, size = 0x8000, scoped, tag = 'input window, operand 2, single buffered']
    #allocation8 [shape = 'u8[32768]{0}', space=vmem, size = 0x8000, scoped, tag = 'input window, operand 4, single buffered']
    #allocation9 [shape = 's32[1]{0}', space=sflag, size = 0x4, scoped, tag = 'scoped memory for tpu_custom_call.1']
    #allocation10 [shape = 'u8[65536]{0}', space=vmem, size = 0x10000, scoped, tag = 'input window, operand 6, single buffered']
    #allocation11 [shape = 'u8[32768]{0}', space=vmem, size = 0x8000, scoped, tag = 'input window, operand 8, single buffered']
    #allocation12 [shape = 's32[1]{0}', space=sflag, size = 0x4, scoped, tag = 'scoped memory for tpu_custom_call.1']
    #allocation13 [shape = 'u8[32768]{0}', space=vmem, size = 0x8000, scoped, tag = 'input window, operand 10, single buffered']
    #allocation14 [shape = 'u8[32768]{0}', space=vmem, size = 0x8000, scoped, tag = 'input window, operand 12, single buffered']
    #allocation15 [shape = 's32[1]{0}', space=sflag, size = 0x4, scoped, tag = 'scoped memory for tpu_custom_call.1']
    #allocation16 [shape = 'u8[65536]{0}', space=vmem, size = 0x10000, scoped, tag = 'output window, operand 0']
    #allocation17 [shape = 'u8[131072]{0}', space=vmem, size = 0x20000, scoped, tag = 'output window, operand 1']
    #allocation18 [shape = 's32[2]{0}', space=sflag, size = 0x8, scoped, tag = 'scoped memory for tpu_custom_call.1']
    %21 = vsyncpa [#allocation3], 0
    %s22 = scalar_lea.sflag [#allocation3], 1
    %23 = vsyncpa %s22, 0
    %24 = vsyncpa [#allocation6], 0
    %s25 = scalar_lea.sflag [#allocation6], 1
    %26 = vsyncpa %s25, 0
    %27 = vsyncpa [#allocation9], 0
    %28 = vsyncpa [#allocation12], 0
    %29 = vsyncpa [#allocation15], 0
    %30 = vsyncpa [#allocation4], 0
    %s31 = scalar_lea.sflag [#allocation4], 1
    %32 = vsyncpa %s31, 0
    %33 = vsyncpa [#allocation18], 0
    %s34 = scalar_lea.sflag [#allocation18], 1
    %35 = vsyncpa %s34, 0
    loop: start=0, step=1, limit=4
    $region2: #{tpu_custom_call.1} parent=1 // loop_pre_header
      _
    $region3: #{tpu_custom_call.1} parent=1 // loop_header
      %s37 = sphi 0, %s41
      %p38 = scmp.ge.s32.totalorder %s37, 4
      %s47 = sphi 0, %s49
      %s50 = sphi 0, %s47
      %s51 = sphi 0, %s50
      %s67 = sphi 0, %s51
      %s73 = sphi 0, %s75
      %s76 = sphi 0, %s73
      %s77 = sphi 0, %s76
      %s93 = sphi 0, %s77
      %s97 = sphi 0, %s97
      %s99 = sphi 0, %s97
      %s100 = sphi 0, %s99
      %s114 = sphi 0, %s100
      %s118 = sphi 0, %s118
      %s120 = sphi 0, %s118
      %s121 = sphi 0, %s120
      %s135 = sphi 0, %s121
      %s139 = sphi 0, %s139
      %s141 = sphi 0, %s139
      %s142 = sphi 0, %s141
      %s156 = sphi 0, %s142
      %s160 = sphi 0, %s160
      %s162 = sphi 0, %s160
      %s163 = sphi 0, %s162
      %s177 = sphi 0, %s163
      %s181 = sphi 0, %s181
      %s183 = sphi 0, %s181
      %s184 = sphi 0, %s183
      %s198 = sphi 0, %s184
      %s202 = sphi 0, %s202
      %s204 = sphi 0, %s202
      %s205 = sphi 0, %s204
      %s219 = sphi 0, %s205
      %s223 = sphi 0, %s223
      %s225 = sphi 0, %s223
      %s226 = sphi 0, %s225
      %s240 = sphi 0, %s226
      %s244 = sphi 0, %s244
      %s246 = sphi 0, %s244
      %s247 = sphi 0, %s246
      %s261 = sphi 0, %s247
      %s265 = sphi 0, %s265
      %s267 = sphi 0, %s265
      %s268 = sphi 0, %s267
      %s282 = sphi 0, %s268
      %s286 = sphi 0, %s286
      %s288 = sphi 0, %s286
      %s289 = sphi 0, %s288
      %s303 = sphi 0, %s289
      %s307 = sphi 0, %s307
      %s309 = sphi 0, %s307
      %s310 = sphi 0, %s309
      %s324 = sphi 0, %s310
      %s328 = sphi 0, %s328
      %s330 = sphi 0, %s328
      %s331 = sphi 0, %s330
      %s345 = sphi 0, %s331
      %s351 = sphi 0, %s353
      %s354 = sphi 0, %s351
      %s355 = sphi 0, %s354
      %s371 = sphi 0, %s355
      %s377 = sphi 0, %s379
      %s380 = sphi 0, %s377
      %s381 = sphi 0, %s380
      %s397 = sphi 0, %s381
    $region4: #{tpu_custom_call.1} parent=1 // loop_header_branch
      %40 = sbr.rel (%p38) target = $region8
    $region5: #{tpu_custom_call.1} parent=1 // loop_body
      %s42 = ssub.s32 %s37, 1
      %s43 = ssub.s32 %s37, 2
      %s44 = sadd.s32 %s37, 1
      %s45 = ssub.s32 %s37, %s44
      %p46 = scmp.eq.s32.totalorder %s45, 0
      %s48 = sadd.s32 %s47, 1
      %s49 = scalar_select %p46, %s47, %s48
      %p52 = pneg %p46
      %p53 = scmp.eq.s32.totalorder %s37, 1
      %p54 = por %p52, %p53
      %p55 = scmp.ne.s32.totalorder %s47, %s50
      %p56 = scmp.eq.s32.totalorder %s37, 0
      %p57 = por %p55, %p56
      %p58 = scmp.ne.s32.totalorder %s47, %s50
      %p59 = scmp.eq.s32.totalorder %s42, 1
      %p60 = por %p58, %p59
      %p61 = scmp.ne.s32.totalorder %s50, %s51
      %p62 = scmp.eq.s32.totalorder %s42, 0
      %p63 = por %p61, %p62
      %p64 = scmp.ne.s32.totalorder %s50, %s51
      %p65 = scmp.eq.s32.totalorder %s43, 1
      %p66 = por %p64, %p65
      %p68 = scmp.ne.s32.totalorder %s51, %s67
      %p69 = scmp.eq.s32.totalorder %s43, 0
      %p70 = por %p68, %p69
      %s71 = ssub.s32 %s37, %s44
      %p72 = scmp.eq.s32.totalorder %s71, 0
      %s74 = sadd.s32 %s73, 1
      %s75 = scalar_select %p72, %s73, %s74
      %p78 = pneg %p72
      %p79 = scmp.eq.s32.totalorder %s37, 1
      %p80 = por %p78, %p79
      %p81 = scmp.ne.s32.totalorder %s73, %s76
      %p82 = scmp.eq.s32.totalorder %s37, 0
      %p83 = por %p81, %p82
      %p84 = scmp.ne.s32.totalorder %s73, %s76
      %p85 = scmp.eq.s32.totalorder %s42, 1
      %p86 = por %p84, %p85
      %p87 = scmp.ne.s32.totalorder %s76, %s77
      %p88 = scmp.eq.s32.totalorder %s42, 0
      %p89 = por %p87, %p88
      %p90 = scmp.ne.s32.totalorder %s76, %s77
      %p91 = scmp.eq.s32.totalorder %s43, 1
      %p92 = por %p90, %p91
      %p94 = scmp.ne.s32.totalorder %s77, %s93
      %p95 = scmp.eq.s32.totalorder %s43, 0
      %p96 = por %p94, %p95
      %s98 = sadd.s32 %s97, 1
      %p101 = scmp.eq.s32.totalorder %s37, 1
      %p102 = scmp.ne.s32.totalorder %s97, %s99
      %p103 = scmp.eq.s32.totalorder %s37, 0
      %p104 = por %p102, %p103
      %p105 = scmp.ne.s32.totalorder %s97, %s99
      %p106 = scmp.eq.s32.totalorder %s42, 1
      %p107 = por %p105, %p106
      %p108 = scmp.ne.s32.totalorder %s99, %s100
      %p109 = scmp.eq.s32.totalorder %s42, 0
      %p110 = por %p108, %p109
      %p111 = scmp.ne.s32.totalorder %s99, %s100
      %p112 = scmp.eq.s32.totalorder %s43, 1
      %p113 = por %p111, %p112
      %p115 = scmp.ne.s32.totalorder %s100, %s114
      %p116 = scmp.eq.s32.totalorder %s43, 0
      %p117 = por %p115, %p116
      %s119 = sadd.s32 %s118, 1
      %p122 = scmp.eq.s32.totalorder %s37, 1
      %p123 = scmp.ne.s32.totalorder %s118, %s120
      %p124 = scmp.eq.s32.totalorder %s37, 0
      %p125 = por %p123, %p124
      %p126 = scmp.ne.s32.totalorder %s118, %s120
      %p127 = scmp.eq.s32.totalorder %s42, 1
      %p128 = por %p126, %p127
      %p129 = scmp.ne.s32.totalorder %s120, %s121
      %p130 = scmp.eq.s32.totalorder %s42, 0
      %p131 = por %p129, %p130
      %p132 = scmp.ne.s32.totalorder %s120, %s121
      %p133 = scmp.eq.s32.totalorder %s43, 1
      %p134 = por %p132, %p133
      %p136 = scmp.ne.s32.totalorder %s121, %s135
      %p137 = scmp.eq.s32.totalorder %s43, 0
      %p138 = por %p136, %p137
      %s140 = sadd.s32 %s139, 1
      %p143 = scmp.eq.s32.totalorder %s37, 1
      %p144 = scmp.ne.s32.totalorder %s139, %s141
      %p145 = scmp.eq.s32.totalorder %s37, 0
      %p146 = por %p144, %p145
      %p147 = scmp.ne.s32.totalorder %s139, %s141
      %p148 = scmp.eq.s32.totalorder %s42, 1
      %p149 = por %p147, %p148
      %p150 = scmp.ne.s32.totalorder %s141, %s142
      %p151 = scmp.eq.s32.totalorder %s42, 0
      %p152 = por %p150, %p151
      %p153 = scmp.ne.s32.totalorder %s141, %s142
      %p154 = scmp.eq.s32.totalorder %s43, 1
      %p155 = por %p153, %p154
      %p157 = scmp.ne.s32.totalorder %s142, %s156
      %p158 = scmp.eq.s32.totalorder %s43, 0
      %p159 = por %p157, %p158
      %s161 = sadd.s32 %s160, 1
      %p164 = scmp.eq.s32.totalorder %s37, 1
      %p165 = scmp.ne.s32.totalorder %s160, %s162
      %p166 = scmp.eq.s32.totalorder %s37, 0
      %p167 = por %p165, %p166
      %p168 = scmp.ne.s32.totalorder %s160, %s162
      %p169 = scmp.eq.s32.totalorder %s42, 1
      %p170 = por %p168, %p169
      %p171 = scmp.ne.s32.totalorder %s162, %s163
      %p172 = scmp.eq.s32.totalorder %s42, 0
      %p173 = por %p171, %p172
      %p174 = scmp.ne.s32.totalorder %s162, %s163
      %p175 = scmp.eq.s32.totalorder %s43, 1
      %p176 = por %p174, %p175
      %p178 = scmp.ne.s32.totalorder %s163, %s177
      %p179 = scmp.eq.s32.totalorder %s43, 0
      %p180 = por %p178, %p179
      %s182 = sadd.s32 %s181, 1
      %p185 = scmp.eq.s32.totalorder %s37, 1
      %p186 = scmp.ne.s32.totalorder %s181, %s183
      %p187 = scmp.eq.s32.totalorder %s37, 0
      %p188 = por %p186, %p187
      %p189 = scmp.ne.s32.totalorder %s181, %s183
      %p190 = scmp.eq.s32.totalorder %s42, 1
      %p191 = por %p189, %p190
      %p192 = scmp.ne.s32.totalorder %s183, %s184
      %p193 = scmp.eq.s32.totalorder %s42, 0
      %p194 = por %p192, %p193
      %p195 = scmp.ne.s32.totalorder %s183, %s184
      %p196 = scmp.eq.s32.totalorder %s43, 1
      %p197 = por %p195, %p196
      %p199 = scmp.ne.s32.totalorder %s184, %s198
      %p200 = scmp.eq.s32.totalorder %s43, 0
      %p201 = por %p199, %p200
      %s203 = sadd.s32 %s202, 1
      %p206 = scmp.eq.s32.totalorder %s37, 1
      %p207 = scmp.ne.s32.totalorder %s202, %s204
      %p208 = scmp.eq.s32.totalorder %s37, 0
      %p209 = por %p207, %p208
      %p210 = scmp.ne.s32.totalorder %s202, %s204
      %p211 = scmp.eq.s32.totalorder %s42, 1
      %p212 = por %p210, %p211
      %p213 = scmp.ne.s32.totalorder %s204, %s205
      %p214 = scmp.eq.s32.totalorder %s42, 0
      %p215 = por %p213, %p214
      %p216 = scmp.ne.s32.totalorder %s204, %s205
      %p217 = scmp.eq.s32.totalorder %s43, 1
      %p218 = por %p216, %p217
      %p220 = scmp.ne.s32.totalorder %s205, %s219
      %p221 = scmp.eq.s32.totalorder %s43, 0
      %p222 = por %p220, %p221
      %s224 = sadd.s32 %s223, 1
      %p227 = scmp.eq.s32.totalorder %s37, 1
      %p228 = scmp.ne.s32.totalorder %s223, %s225
      %p229 = scmp.eq.s32.totalorder %s37, 0
      %p230 = por %p228, %p229
      %p231 = scmp.ne.s32.totalorder %s223, %s225
      %p232 = scmp.eq.s32.totalorder %s42, 1
      %p233 = por %p231, %p232
      %p234 = scmp.ne.s32.totalorder %s225, %s226
      %p235 = scmp.eq.s32.totalorder %s42, 0
      %p236 = por %p234, %p235
      %p237 = scmp.ne.s32.totalorder %s225, %s226
      %p238 = scmp.eq.s32.totalorder %s43, 1
      %p239 = por %p237, %p238
      %p241 = scmp.ne.s32.totalorder %s226, %s240
      %p242 = scmp.eq.s32.totalorder %s43, 0
      %p243 = por %p241, %p242
      %s245 = sadd.s32 %s244, 1
      %p248 = scmp.eq.s32.totalorder %s37, 1
      %p249 = scmp.ne.s32.totalorder %s244, %s246
      %p250 = scmp.eq.s32.totalorder %s37, 0
      %p251 = por %p249, %p250
      %p252 = scmp.ne.s32.totalorder %s244, %s246
      %p253 = scmp.eq.s32.totalorder %s42, 1
      %p254 = por %p252, %p253
      %p255 = scmp.ne.s32.totalorder %s246, %s247
      %p256 = scmp.eq.s32.totalorder %s42, 0
      %p257 = por %p255, %p256
      %p258 = scmp.ne.s32.totalorder %s246, %s247
      %p259 = scmp.eq.s32.totalorder %s43, 1
      %p260 = por %p258, %p259
      %p262 = scmp.ne.s32.totalorder %s247, %s261
      %p263 = scmp.eq.s32.totalorder %s43, 0
      %p264 = por %p262, %p263
      %s266 = sadd.s32 %s265, 1
      %p269 = scmp.eq.s32.totalorder %s37, 1
      %p270 = scmp.ne.s32.totalorder %s265, %s267
      %p271 = scmp.eq.s32.totalorder %s37, 0
      %p272 = por %p270, %p271
      %p273 = scmp.ne.s32.totalorder %s265, %s267
      %p274 = scmp.eq.s32.totalorder %s42, 1
      %p275 = por %p273, %p274
      %p276 = scmp.ne.s32.totalorder %s267, %s268
      %p277 = scmp.eq.s32.totalorder %s42, 0
      %p278 = por %p276, %p277
      %p279 = scmp.ne.s32.totalorder %s267, %s268
      %p280 = scmp.eq.s32.totalorder %s43, 1
      %p281 = por %p279, %p280
      %p283 = scmp.ne.s32.totalorder %s268, %s282
      %p284 = scmp.eq.s32.totalorder %s43, 0
      %p285 = por %p283, %p284
      %s287 = sadd.s32 %s286, 1
      %p290 = scmp.eq.s32.totalorder %s37, 1
      %p291 = scmp.ne.s32.totalorder %s286, %s288
      %p292 = scmp.eq.s32.totalorder %s37, 0
      %p293 = por %p291, %p292
      %p294 = scmp.ne.s32.totalorder %s286, %s288
      %p295 = scmp.eq.s32.totalorder %s42, 1
      %p296 = por %p294, %p295
      %p297 = scmp.ne.s32.totalorder %s288, %s289
      %p298 = scmp.eq.s32.totalorder %s42, 0
      %p299 = por %p297, %p298
      %p300 = scmp.ne.s32.totalorder %s288, %s289
      %p301 = scmp.eq.s32.totalorder %s43, 1
      %p302 = por %p300, %p301
      %p304 = scmp.ne.s32.totalorder %s289, %s303
      %p305 = scmp.eq.s32.totalorder %s43, 0
      %p306 = por %p304, %p305
      %s308 = sadd.s32 %s307, 1
      %p311 = scmp.eq.s32.totalorder %s37, 1
      %p312 = scmp.ne.s32.totalorder %s307, %s309
      %p313 = scmp.eq.s32.totalorder %s37, 0
      %p314 = por %p312, %p313
      %p315 = scmp.ne.s32.totalorder %s307, %s309
      %p316 = scmp.eq.s32.totalorder %s42, 1
      %p317 = por %p315, %p316
      %p318 = scmp.ne.s32.totalorder %s309, %s310
      %p319 = scmp.eq.s32.totalorder %s42, 0
      %p320 = por %p318, %p319
      %p321 = scmp.ne.s32.totalorder %s309, %s310
      %p322 = scmp.eq.s32.totalorder %s43, 1
      %p323 = por %p321, %p322
      %p325 = scmp.ne.s32.totalorder %s310, %s324
      %p326 = scmp.eq.s32.totalorder %s43, 0
      %p327 = por %p325, %p326
      %s329 = sadd.s32 %s328, 1
      %p332 = scmp.eq.s32.totalorder %s37, 1
      %p333 = scmp.ne.s32.totalorder %s328, %s330
      %p334 = scmp.eq.s32.totalorder %s37, 0
      %p335 = por %p333, %p334
      %p336 = scmp.ne.s32.totalorder %s328, %s330
      %p337 = scmp.eq.s32.totalorder %s42, 1
      %p338 = por %p336, %p337
      %p339 = scmp.ne.s32.totalorder %s330, %s331
      %p340 = scmp.eq.s32.totalorder %s42, 0
      %p341 = por %p339, %p340
      %p342 = scmp.ne.s32.totalorder %s330, %s331
      %p343 = scmp.eq.s32.totalorder %s43, 1
      %p344 = por %p342, %p343
      %p346 = scmp.ne.s32.totalorder %s331, %s345
      %p347 = scmp.eq.s32.totalorder %s43, 0
      %p348 = por %p346, %p347
      %s349 = ssub.s32 %s37, %s44
      %p350 = scmp.eq.s32.totalorder %s349, 0
      %s352 = sadd.s32 %s351, 1
      %s353 = scalar_select %p350, %s351, %s352
      %p356 = pneg %p350
      %p357 = scmp.eq.s32.totalorder %s37, 1
      %p358 = por %p356, %p357
      %p359 = scmp.ne.s32.totalorder %s351, %s354
      %p360 = scmp.eq.s32.totalorder %s37, 0
      %p361 = por %p359, %p360
      %p362 = scmp.ne.s32.totalorder %s351, %s354
      %p363 = scmp.eq.s32.totalorder %s42, 1
      %p364 = por %p362, %p363
      %p365 = scmp.ne.s32.totalorder %s354, %s355
      %p366 = scmp.eq.s32.totalorder %s42, 0
      %p367 = por %p365, %p366
      %p368 = scmp.ne.s32.totalorder %s354, %s355
      %p369 = scmp.eq.s32.totalorder %s43, 1
      %p370 = por %p368, %p369
      %p372 = scmp.ne.s32.totalorder %s355, %s371
      %p373 = scmp.eq.s32.totalorder %s43, 0
      %p374 = por %p372, %p373
      %s375 = ssub.s32 %s37, %s44
      %p376 = scmp.eq.s32.totalorder %s375, 0
      %s378 = sadd.s32 %s377, 1
      %s379 = scalar_select %p376, %s377, %s378
      %p382 = pneg %p376
      %p383 = scmp.eq.s32.totalorder %s37, 1
      %p384 = por %p382, %p383
      %p385 = scmp.ne.s32.totalorder %s377, %s380
      %p386 = scmp.eq.s32.totalorder %s37, 0
      %p387 = por %p385, %p386
      %p388 = scmp.ne.s32.totalorder %s377, %s380
      %p389 = scmp.eq.s32.totalorder %s42, 1
      %p390 = por %p388, %p389
      %p391 = scmp.ne.s32.totalorder %s380, %s381
      %p392 = scmp.eq.s32.totalorder %s42, 0
      %p393 = por %p391, %p392
      %p394 = scmp.ne.s32.totalorder %s380, %s381
      %p395 = scmp.eq.s32.totalorder %s43, 1
      %p396 = por %p394, %p395
      %p398 = scmp.ne.s32.totalorder %s381, %s397
      %p399 = scmp.eq.s32.totalorder %s43, 0
      %p400 = por %p398, %p399
      %p401 = scmp.le.s32.totalorder 1, %s37
      %p402 = scmp.lt.s32.totalorder %s37, 3
      %p403 = pnand %p401, %p402
      %p404 = pneg %p403
      // Predicated region
      $region9: #{tpu_custom_call.1} parent=5 // pred_check
        _
      $region10: #{tpu_custom_call.1} parent=5 // pred_check_branch
        %406 = sbr.rel (%p403) target = $region12
      $region11: #{tpu_custom_call.1} parent=5 // pred_region
        %s407 = ssub.s32 %s37, 1
        // Predicated region
        $region13: #{tpu_custom_call.1} parent=11 // pred_check
          %p408 = pneg %p110
        $region14: #{tpu_custom_call.1} parent=11 // pred_check_branch
          %410 = sbr.rel (%p408) target = $region16
        $region15: #{tpu_custom_call.1} parent=11 // pred_region
          %412 = vsyncadd [#allocation6], 0
          %s413 = sshll.u32 %s2, 4
          %s414 = int_to_ptr.hbm [resolvable:$true] %s413
          %s415 = sshll.u32 [#allocation7], 4
          %s416 = int_to_ptr.vmem [resolvable:$true] %s415
          %421 = dma.hbm_to_vmem [thread:$0]  %s414, 1024, %s416, [#allocation6], 64, 64, 4
        $region16: #{tpu_custom_call.1} parent=11 // pred_fallthru
          _
        // Predicated region
        $region17: #{tpu_custom_call.1} parent=11 // pred_check
          %p422 = pneg %p131
        $region18: #{tpu_custom_call.1} parent=11 // pred_check_branch
          %424 = sbr.rel (%p422) target = $region20
        $region19: #{tpu_custom_call.1} parent=11 // pred_region
          _
        $region20: #{tpu_custom_call.1} parent=11 // pred_fallthru
          _
        // Predicated region
        $region21: #{tpu_custom_call.1} parent=11 // pred_check
          %p425 = pneg %p152
        $region22: #{tpu_custom_call.1} parent=11 // pred_check_branch
          %427 = sbr.rel (%p425) target = $region24
        $region23: #{tpu_custom_call.1} parent=11 // pred_region
          %429 = vsyncadd [#allocation9], 0
          %s430 = sshll.u32 %s4, 4
          %s431 = int_to_ptr.hbm [resolvable:$true] %s430
          %s432 = sshll.u32 [#allocation8], 4
          %s433 = int_to_ptr.vmem [resolvable:$true] %s432
          %438 = dma.hbm_to_vmem [thread:$0]  %s431, 1024, %s433, [#allocation9], 64, 64, 4
        $region24: #{tpu_custom_call.1} parent=11 // pred_fallthru
          _
        // Predicated region
        $region25: #{tpu_custom_call.1} parent=11 // pred_check
          %p439 = pneg %p173
        $region26: #{tpu_custom_call.1} parent=11 // pred_check_branch
          %441 = sbr.rel (%p439) target = $region28
        $region27: #{tpu_custom_call.1} parent=11 // pred_region
          _
        $region28: #{tpu_custom_call.1} parent=11 // pred_fallthru
          _
        // Predicated region
        $region29: #{tpu_custom_call.1} parent=11 // pred_check
          %p442 = pneg %p194
        $region30: #{tpu_custom_call.1} parent=11 // pred_check_branch
          %444 = sbr.rel (%p442) target = $region32
        $region31: #{tpu_custom_call.1} parent=11 // pred_region
          %446 = vsyncadd [#allocation9], 0
          %s447 = sshll.u32 %s6, 4
          %s448 = int_to_ptr.hbm [resolvable:$true] %s447
          %s449 = sshll.u32 [#allocation10], 4
          %s450 = int_to_ptr.vmem [resolvable:$true] %s449
          %455 = dma.hbm_to_vmem [thread:$0]  %s448, 2048, %s450, [#allocation9], 128, 128, 8
        $region32: #{tpu_custom_call.1} parent=11 // pred_fallthru
          _
        // Predicated region
        $region33: #{tpu_custom_call.1} parent=11 // pred_check
          %p456 = pneg %p215
        $region34: #{tpu_custom_call.1} parent=11 // pred_check_branch
          %458 = sbr.rel (%p456) target = $region36
        $region35: #{tpu_custom_call.1} parent=11 // pred_region
          _
        $region36: #{tpu_custom_call.1} parent=11 // pred_fallthru
          _
        // Predicated region
        $region37: #{tpu_custom_call.1} parent=11 // pred_check
          %p459 = pneg %p236
        $region38: #{tpu_custom_call.1} parent=11 // pred_check_branch
          %461 = sbr.rel (%p459) target = $region40
        $region39: #{tpu_custom_call.1} parent=11 // pred_region
          %463 = vsyncadd [#allocation12], 0
          %s464 = sshll.u32 %s8, 4
          %s465 = int_to_ptr.hbm [resolvable:$true] %s464
          %s466 = sshll.u32 [#allocation11], 4
          %s467 = int_to_ptr.vmem [resolvable:$true] %s466
          %472 = dma.hbm_to_vmem [thread:$0]  %s465, 1024, %s467, [#allocation12], 64, 64, 4
        $region40: #{tpu_custom_call.1} parent=11 // pred_fallthru
          _
        // Predicated region
        $region41: #{tpu_custom_call.1} parent=11 // pred_check
          %p473 = pneg %p257
        $region42: #{tpu_custom_call.1} parent=11 // pred_check_branch
          %475 = sbr.rel (%p473) target = $region44
        $region43: #{tpu_custom_call.1} parent=11 // pred_region
          _
        $region44: #{tpu_custom_call.1} parent=11 // pred_fallthru
          _
        // Predicated region
        $region45: #{tpu_custom_call.1} parent=11 // pred_check
          %p476 = pneg %p278
        $region46: #{tpu_custom_call.1} parent=11 // pred_check_branch
          %478 = sbr.rel (%p476) target = $region48
        $region47: #{tpu_custom_call.1} parent=11 // pred_region
          %480 = vsyncadd [#allocation12], 0
          %s481 = sshll.u32 %s10, 4
          %s482 = int_to_ptr.hbm [resolvable:$true] %s481
          %s483 = sshll.u32 [#allocation13], 4
          %s484 = int_to_ptr.vmem [resolvable:$true] %s483
          %489 = dma.hbm_to_vmem [thread:$0]  %s482, 1024, %s484, [#allocation12], 64, 64, 4
        $region48: #{tpu_custom_call.1} parent=11 // pred_fallthru
          _
        // Predicated region
        $region49: #{tpu_custom_call.1} parent=11 // pred_check
          %p490 = pneg %p299
        $region50: #{tpu_custom_call.1} parent=11 // pred_check_branch
          %492 = sbr.rel (%p490) target = $region52
        $region51: #{tpu_custom_call.1} parent=11 // pred_region
          _
        $region52: #{tpu_custom_call.1} parent=11 // pred_fallthru
          _
        // Predicated region
        $region53: #{tpu_custom_call.1} parent=11 // pred_check
          %p493 = pneg %p320
        $region54: #{tpu_custom_call.1} parent=11 // pred_check_branch
          %495 = sbr.rel (%p493) target = $region56
        $region55: #{tpu_custom_call.1} parent=11 // pred_region
          %497 = vsyncadd [#allocation15], 0
          %s498 = sshll.u32 %s12, 4
          %s499 = int_to_ptr.hbm [resolvable:$true] %s498
          %s500 = sshll.u32 [#allocation14], 4
          %s501 = int_to_ptr.vmem [resolvable:$true] %s500
          %506 = dma.hbm_to_vmem [thread:$0]  %s499, 1024, %s501, [#allocation15], 64, 64, 4
        $region56: #{tpu_custom_call.1} parent=11 // pred_fallthru
          _
        // Predicated region
        $region57: #{tpu_custom_call.1} parent=11 // pred_check
          %p507 = pneg %p341
        $region58: #{tpu_custom_call.1} parent=11 // pred_check_branch
          %509 = sbr.rel (%p507) target = $region60
        $region59: #{tpu_custom_call.1} parent=11 // pred_region
          _
        $region60: #{tpu_custom_call.1} parent=11 // pred_fallthru
          _
      $region12: #{tpu_custom_call.1} parent=5 // pred_fallthru
        _
      %p510 = scmp.lt.s32.totalorder %s37, 2
      // Predicated region
      $region61: #{tpu_custom_call.1} parent=5 // pred_check
        %p511 = pneg %p510
      $region62: #{tpu_custom_call.1} parent=5 // pred_check_branch
        %513 = sbr.rel (%p511) target = $region64
      $region63: #{tpu_custom_call.1} parent=5 // pred_region
        // Predicated region
        $region65: #{tpu_custom_call.1} parent=63 // pred_check
          %p514 = pneg %p57
        $region66: #{tpu_custom_call.1} parent=63 // pred_check_branch
          %516 = sbr.rel (%p514) target = $region68
        $region67: #{tpu_custom_call.1} parent=63 // pred_region
          %s517 = sand.u32 %s47, 1
          %s518 = scalar_lea.sflag [#allocation3], %s517
          %s519 = sand.u32 %s47, 1
          %s520 = smul.addr %s519, 32
          %s521 = scalar_lea.vmem [#allocation2], %s520
          %s522 = smul.u32 8, %s37
          %524 = vsyncadd %s518, 0
          %s525 = smul.addr %s522, 4
          %s526 = scalar_lea.hbm %s0, %s525
          %s527 = sshll.u32 %s526, 4
          %s528 = int_to_ptr.hbm [resolvable:$true] %s527
          %s529 = sshll.u32 %s521, 4
          %s530 = int_to_ptr.vmem [resolvable:$true] %s529
          %535 = dma.hbm_to_vmem [thread:$0]  %s528, 512, %s530, %s518, 64, 64, 4
        $region68: #{tpu_custom_call.1} parent=63 // pred_fallthru
          _
        // Predicated region
        $region69: #{tpu_custom_call.1} parent=63 // pred_check
          %p536 = pneg %p83
        $region70: #{tpu_custom_call.1} parent=63 // pred_check_branch
          %538 = sbr.rel (%p536) target = $region72
        $region71: #{tpu_custom_call.1} parent=63 // pred_region
          %s539 = sand.u32 %s37, 1
          %s540 = scalar_lea.sflag [#allocation6], %s539
          %s541 = sand.u32 %s73, 1
          %s542 = smul.addr %s541, 64
          %s543 = scalar_lea.vmem [#allocation5], %s542
          %s544 = smul.u32 8, %s37
          %546 = vsyncadd %s540, 0
          %s547 = smul.addr %s544, 8
          %s548 = scalar_lea.hbm %s1, %s547
          %s549 = sshll.u32 %s548, 4
          %s550 = int_to_ptr.hbm [resolvable:$true] %s549
          %s551 = sshll.u32 %s543, 4
          %s552 = int_to_ptr.vmem [resolvable:$true] %s551
          %557 = dma.hbm_to_vmem [thread:$0]  %s550, 1024, %s552, %s540, 128, 128, 8
        $region72: #{tpu_custom_call.1} parent=63 // pred_fallthru
          _
      $region64: #{tpu_custom_call.1} parent=5 // pred_fallthru
        _
      %p558 = scmp.le.s32.totalorder 1, %s37
      %p559 = scmp.lt.s32.totalorder %s37, 3
      %p560 = pnand %p558, %p559
      %p561 = pneg %p560
      // Predicated region
      $region73: #{tpu_custom_call.1} parent=5 // pred_check
        _
      $region74: #{tpu_custom_call.1} parent=5 // pred_check_branch
        %563 = sbr.rel (%p560) target = $region76
      $region75: #{tpu_custom_call.1} parent=5 // pred_region
        %s564 = ssub.s32 %s37, 1
        %s565 = sand.u32 %s50, 1
        %s566 = scalar_lea.sflag [#allocation3], %s565
        %s567 = sand.u32 %s50, 1
        %s568 = smul.addr %s567, 32
        %s569 = scalar_lea.vmem [#allocation2], %s568
        // Predicated region
        $region77: #{tpu_custom_call.1} parent=75 // pred_check
          %p570 = pneg %p63
        $region78: #{tpu_custom_call.1} parent=75 // pred_check_branch
          %572 = sbr.rel (%p570) target = $region80
        $region79: #{tpu_custom_call.1} parent=75 // pred_region
          %574 = dma.done %s566, 512
        $region80: #{tpu_custom_call.1} parent=75 // pred_fallthru
          _
        %s575 = sand.u32 %s42, 1
        %s576 = scalar_lea.sflag [#allocation6], %s575
        %s577 = sand.u32 %s76, 1
        %s578 = smul.addr %s577, 64
        %s579 = scalar_lea.vmem [#allocation5], %s578
        // Predicated region
        $region81: #{tpu_custom_call.1} parent=75 // pred_check
          %p580 = pneg %p89
        $region82: #{tpu_custom_call.1} parent=75 // pred_check_branch
          %582 = sbr.rel (%p580) target = $region84
        $region83: #{tpu_custom_call.1} parent=75 // pred_region
          %584 = dma.done %s576, 1024
        $region84: #{tpu_custom_call.1} parent=75 // pred_fallthru
          _
        // Predicated region
        $region85: #{tpu_custom_call.1} parent=75 // pred_check
          %p585 = pneg %p110
        $region86: #{tpu_custom_call.1} parent=75 // pred_check_branch
          %587 = sbr.rel (%p585) target = $region88
        $region87: #{tpu_custom_call.1} parent=75 // pred_region
          %589 = dma.done [#allocation6], 1024
        $region88: #{tpu_custom_call.1} parent=75 // pred_fallthru
          _
        // Predicated region
        $region89: #{tpu_custom_call.1} parent=75 // pred_check
          %p590 = pneg %p152
        $region90: #{tpu_custom_call.1} parent=75 // pred_check_branch
          %592 = sbr.rel (%p590) target = $region92
        $region91: #{tpu_custom_call.1} parent=75 // pred_region
          %594 = dma.done [#allocation9], 1024
        $region92: #{tpu_custom_call.1} parent=75 // pred_fallthru
          _
        // Predicated region
        $region93: #{tpu_custom_call.1} parent=75 // pred_check
          %p595 = pneg %p194
        $region94: #{tpu_custom_call.1} parent=75 // pred_check_branch
          %597 = sbr.rel (%p595) target = $region96
        $region95: #{tpu_custom_call.1} parent=75 // pred_region
          %599 = dma.done [#allocation9], 2048
        $region96: #{tpu_custom_call.1} parent=75 // pred_fallthru
          _
        // Predicated region
        $region97: #{tpu_custom_call.1} parent=75 // pred_check
          %p600 = pneg %p236
        $region98: #{tpu_custom_call.1} parent=75 // pred_check_branch
          %602 = sbr.rel (%p600) target = $region100
        $region99: #{tpu_custom_call.1} parent=75 // pred_region
          %604 = dma.done [#allocation12], 1024
        $region100: #{tpu_custom_call.1} parent=75 // pred_fallthru
          _
        // Predicated region
        $region101: #{tpu_custom_call.1} parent=75 // pred_check
          %p605 = pneg %p278
        $region102: #{tpu_custom_call.1} parent=75 // pred_check_branch
          %607 = sbr.rel (%p605) target = $region104
        $region103: #{tpu_custom_call.1} parent=75 // pred_region
          %609 = dma.done [#allocation12], 1024
        $region104: #{tpu_custom_call.1} parent=75 // pred_fallthru
          _
        // Predicated region
        $region105: #{tpu_custom_call.1} parent=75 // pred_check
          %p610 = pneg %p320
        $region106: #{tpu_custom_call.1} parent=75 // pred_check_branch
          %612 = sbr.rel (%p610) target = $region108
        $region107: #{tpu_custom_call.1} parent=75 // pred_region
          %614 = dma.done [#allocation15], 1024
        $region108: #{tpu_custom_call.1} parent=75 // pred_fallthru
          _
        %s615 = sand.u32 %s50, 1
        %s616 = scalar_lea.sflag [#allocation3], %s615
        %s617 = sand.u32 %s50, 1
        %s618 = smul.addr %s617, 32
        %s619 = scalar_lea.vmem [#allocation2], %s618
        %p620 = pneg %p63
        %p621 = pneg %p60
        %s622 = sand.u32 %s42, 1
        %s623 = scalar_lea.sflag [#allocation6], %s622
        %s624 = sand.u32 %s76, 1
        %s625 = smul.addr %s624, 64
        %s626 = scalar_lea.vmem [#allocation5], %s625
        %p627 = pneg %p89
        %p628 = pneg %p86
        %p629 = pneg %p110
        %p630 = pneg %p107
        %p631 = pneg %p131
        %p632 = pneg %p128
        %p633 = pneg %p152
        %p634 = pneg %p149
        %p635 = pneg %p173
        %p636 = pneg %p170
        %p637 = pneg %p194
        %p638 = pneg %p191
        %p639 = pneg %p215
        %p640 = pneg %p212
        %p641 = pneg %p236
        %p642 = pneg %p233
        %p643 = pneg %p257
        %p644 = pneg %p254
        %p645 = pneg %p278
        %p646 = pneg %p275
        %p647 = pneg %p299
        %p648 = pneg %p296
        %p649 = pneg %p320
        %p650 = pneg %p317
        %p651 = pneg %p341
        %p652 = pneg %p338
        %p653 = pneg %p367
        %p654 = pneg %p364
        %s655 = sand.u32 %s354, 1
        %s656 = scalar_lea.sflag [#allocation4], %s655
        %s657 = sand.u32 %s354, 1
        %s658 = smul.addr %s657, 64
        %s659 = scalar_lea.vmem [#allocation16], %s658
        %p660 = pneg %p393
        %p661 = pneg %p390
        %s662 = sand.u32 %s380, 1
        %s663 = scalar_lea.sflag [#allocation18], %s662
        %s664 = sand.u32 %s380, 1
        %s665 = smul.addr %s664, 128
        %s666 = scalar_lea.vmem [#allocation17], %s665
        %s667 = smul.u32 8, %s42
        %s668 = smul.u32 8, %s42
        %s669 = smul.u32 8, %s42
        %s670 = smul.u32 8, %s42
        %v671 = vld [vmem:[%s569] sm:$0xf]
        %v672 = vld [vmem:[%s569 + $0x4] sm:$0xf]
        %v673 = vld [vmem:[%s569 + $0x8] sm:$0xf]
        %v674 = vld [vmem:[%s569 + $0xc] sm:$0xf]
        %v675 = vld [vmem:[%s569 + $0x10] sm:$0xf]
        %v676 = vld [vmem:[%s569 + $0x14] sm:$0xf]
        %v677 = vld [vmem:[%s569 + $0x18] sm:$0xf]
        %v678 = vld [vmem:[%s569 + $0x1c] sm:$0xf]
        %v679 = vld [vmem:[#allocation7] sm:$0xf]
        %v680 = vld [vmem:[#allocation7 + $0x4] sm:$0xf]
        %v681 = vld [vmem:[#allocation7 + $0x8] sm:$0xf]
        %v682 = vld [vmem:[#allocation7 + $0xc] sm:$0xf]
        %v683 = vld [vmem:[#allocation7 + $0x10] sm:$0xf]
        %v684 = vld [vmem:[#allocation7 + $0x14] sm:$0xf]
        %v685 = vld [vmem:[#allocation7 + $0x18] sm:$0xf]
        %v686 = vld [vmem:[#allocation7 + $0x1c] sm:$0xf]
        %v687 = vld [vmem:[#allocation7 + $0x20] sm:$0xf]
        %v688 = vld [vmem:[#allocation7 + $0x24] sm:$0xf]
        %v689 = vld [vmem:[#allocation7 + $0x28] sm:$0xf]
        %v690 = vld [vmem:[#allocation7 + $0x2c] sm:$0xf]
        %v691 = vld [vmem:[#allocation7 + $0x30] sm:$0xf]
        %v692 = vld [vmem:[#allocation7 + $0x34] sm:$0xf]
        %v693 = vld [vmem:[#allocation7 + $0x38] sm:$0xf]
        %v694 = vld [vmem:[#allocation7 + $0x3c] sm:$0xf]
        %v695 = vld [vmem:[%s3] sm:$0x1]
        %v697 = vperm.slane %v695, 0
        %v707 = vunpack.c.l.b16 %v671
        %v708 = vunpack.c.l.b16 %v672
        %v709 = vunpack.c.l.b16 %v673
        %v710 = vunpack.c.l.b16 %v674
        %v711 = vunpack.c.l.b16 %v675
        %v712 = vunpack.c.l.b16 %v676
        %v713 = vunpack.c.l.b16 %v677
        %v714 = vunpack.c.l.b16 %v678
        %v715 = vpack.c.b16 %v708, %v707
        %v716 = vpack.c.b16 %v710, %v709
        %v717 = vpack.c.b16 %v712, %v711
        %v718 = vpack.c.b16 %v714, %v713
        %v739 = vunpack.c.l.b16 %v679
        %v740 = vunpack.c.l.b16 %v680
        %v741 = vunpack.c.l.b16 %v681
        %v742 = vunpack.c.l.b16 %v682
        %v743 = vunpack.c.l.b16 %v683
        %v744 = vunpack.c.l.b16 %v684
        %v745 = vunpack.c.l.b16 %v685
        %v746 = vunpack.c.l.b16 %v686
        %v747 = vunpack.c.l.b16 %v687
        %v748 = vunpack.c.l.b16 %v688
        %v749 = vunpack.c.l.b16 %v689
        %v750 = vunpack.c.l.b16 %v690
        %v751 = vunpack.c.l.b16 %v691
        %v752 = vunpack.c.l.b16 %v692
        %v753 = vunpack.c.l.b16 %v693
        %v754 = vunpack.c.l.b16 %v694
        %v755 = vpack.c.b16 %v740, %v739
        %v756 = vpack.c.b16 %v742, %v741
        %v757 = vpack.c.b16 %v744, %v743
        %v758 = vpack.c.b16 %v746, %v745
        %v759 = vpack.c.b16 %v748, %v747
        %v760 = vpack.c.b16 %v750, %v749
        %v761 = vpack.c.b16 %v752, %v751
        %v762 = vpack.c.b16 %v754, %v753
        %771 = vmatpush.bf16.msra.mxu0 %v762
        %772 = vmatpush.bf16.msra.mxu0 %v761
        %773 = vmatpush.bf16.msra.mxu0 %v760
        %774 = vmatpush.bf16.msra.mxu0 %v759
        %775 = vmatpush.bf16.msra.mxu0 %v758
        %776 = vmatpush.bf16.msra.mxu0 %v757
        %777 = vmatpush.bf16.msra.mxu0 %v756
        %778 = vmatpush.bf16.msra.mxu0 %v755
        %779 = vmatmul.bf16.gmra.mxu0 %v715
        %v780 = vpop.f32.mrf.mxu0
        %v781 = vadd.f32 %v697, %v780
        %v782 = vpop.f32.mrf.mxu0
        %v783 = vadd.f32 %v697, %v782
        %784 = vmatmul.bf16.gmra.mxu0 %v716
        %v785 = vpop.f32.mrf.mxu0
        %v786 = vadd.f32 %v697, %v785
        %v787 = vpop.f32.mrf.mxu0
        %v788 = vadd.f32 %v697, %v787
        %789 = vmatmul.bf16.gmra.mxu0 %v717
        %v790 = vpop.f32.mrf.mxu0
        %v791 = vadd.f32 %v697, %v790
        %v792 = vpop.f32.mrf.mxu0
        %v793 = vadd.f32 %v697, %v792
        %794 = vmatmul.bf16.gmra.mxu0 %v718
        %v795 = vpop.f32.mrf.mxu0
        %v796 = vadd.f32 %v697, %v795
        %v797 = vpop.f32.mrf.mxu0
        %v798 = vadd.f32 %v697, %v797
        %799 = vdwg.mxu0
        %v800 = vmul.f32 %v781, 0.2
        %v801 = vmul.f32 %v783, 0.2
        %v802 = vmul.f32 %v786, 0.2
        %v803 = vmul.f32 %v788, 0.2
        %v804 = vmul.f32 %v791, 0.2
        %v805 = vmul.f32 %v793, 0.2
        %v806 = vmul.f32 %v796, 0.2
        %v807 = vmul.f32 %v798, 0.2
        %v808 = vmax.f32 %v781, %v800
        %v809 = vmax.f32 %v783, %v801
        %v810 = vmax.f32 %v786, %v802
        %v811 = vmax.f32 %v788, %v803
        %v812 = vmax.f32 %v791, %v804
        %v813 = vmax.f32 %v793, %v805
        %v814 = vmax.f32 %v796, %v806
        %v815 = vmax.f32 %v798, %v807
        %v816 = vpack.c.bf16 %v809, %v808
        %v817 = vpack.c.bf16 %v811, %v810
        %v818 = vpack.c.bf16 %v813, %v812
        %v819 = vpack.c.bf16 %v815, %v814
        %v820 = vld [vmem:[#allocation8] sm:$0xf]
        %v821 = vld [vmem:[#allocation8 + $0x4] sm:$0xf]
        %v822 = vld [vmem:[#allocation8 + $0x8] sm:$0xf]
        %v823 = vld [vmem:[#allocation8 + $0xc] sm:$0xf]
        %v824 = vld [vmem:[#allocation8 + $0x10] sm:$0xf]
        %v825 = vld [vmem:[#allocation8 + $0x14] sm:$0xf]
        %v826 = vld [vmem:[#allocation8 + $0x18] sm:$0xf]
        %v827 = vld [vmem:[#allocation8 + $0x1c] sm:$0xf]
        %v828 = vld [vmem:[#allocation8 + $0x20] sm:$0xf]
        %v829 = vld [vmem:[#allocation8 + $0x24] sm:$0xf]
        %v830 = vld [vmem:[#allocation8 + $0x28] sm:$0xf]
        %v831 = vld [vmem:[#allocation8 + $0x2c] sm:$0xf]
        %v832 = vld [vmem:[#allocation8 + $0x30] sm:$0xf]
        %v833 = vld [vmem:[#allocation8 + $0x34] sm:$0xf]
        %v834 = vld [vmem:[#allocation8 + $0x38] sm:$0xf]
        %v835 = vld [vmem:[#allocation8 + $0x3c] sm:$0xf]
        %v836 = vld [vmem:[%s5] sm:$0x1]
        %v838 = vperm.slane %v836, 0
        %v856 = vunpack.c.l.b16 %v820
        %v857 = vunpack.c.l.b16 %v821
        %v858 = vunpack.c.l.b16 %v822
        %v859 = vunpack.c.l.b16 %v823
        %v860 = vunpack.c.l.b16 %v824
        %v861 = vunpack.c.l.b16 %v825
        %v862 = vunpack.c.l.b16 %v826
        %v863 = vunpack.c.l.b16 %v827
        %v864 = vunpack.c.l.b16 %v828
        %v865 = vunpack.c.l.b16 %v829
        %v866 = vunpack.c.l.b16 %v830
        %v867 = vunpack.c.l.b16 %v831
        %v868 = vunpack.c.l.b16 %v832
        %v869 = vunpack.c.l.b16 %v833
        %v870 = vunpack.c.l.b16 %v834
        %v871 = vunpack.c.l.b16 %v835
        %v872 = vpack.c.b16 %v857, %v856
        %v873 = vpack.c.b16 %v859, %v858
        %v874 = vpack.c.b16 %v861, %v860
        %v875 = vpack.c.b16 %v863, %v862
        %v876 = vpack.c.b16 %v865, %v864
        %v877 = vpack.c.b16 %v867, %v866
        %v878 = vpack.c.b16 %v869, %v868
        %v879 = vpack.c.b16 %v871, %v870
        %888 = vmatpush.bf16.msra.mxu0 %v879
        %889 = vmatpush.bf16.msra.mxu0 %v878
        %890 = vmatpush.bf16.msra.mxu0 %v877
        %891 = vmatpush.bf16.msra.mxu0 %v876
        %892 = vmatpush.bf16.msra.mxu0 %v875
        %893 = vmatpush.bf16.msra.mxu0 %v874
        %894 = vmatpush.bf16.msra.mxu0 %v873
        %895 = vmatpush.bf16.msra.mxu0 %v872
        %896 = vmatmul.bf16.gmra.mxu0 %v816
        %v897 = vpop.f32.mrf.mxu0
        %v898 = vadd.f32 %v838, %v897
        %v899 = vpop.f32.mrf.mxu0
        %v900 = vadd.f32 %v838, %v899
        %901 = vmatmul.bf16.gmra.mxu0 %v817
        %v902 = vpop.f32.mrf.mxu0
        %v903 = vadd.f32 %v838, %v902
        %v904 = vpop.f32.mrf.mxu0
        %v905 = vadd.f32 %v838, %v904
        %906 = vmatmul.bf16.gmra.mxu0 %v818
        %v907 = vpop.f32.mrf.mxu0
        %v908 = vadd.f32 %v838, %v907
        %v909 = vpop.f32.mrf.mxu0
        %v910 = vadd.f32 %v838, %v909
        %911 = vmatmul.bf16.gmra.mxu0 %v819
        %v912 = vpop.f32.mrf.mxu0
        %v913 = vadd.f32 %v838, %v912
        %v914 = vpop.f32.mrf.mxu0
        %v915 = vadd.f32 %v838, %v914
        %916 = vdwg.mxu0
        %v917 = vmul.f32 %v898, 0.2
        %v918 = vmul.f32 %v900, 0.2
        %v919 = vmul.f32 %v903, 0.2
        %v920 = vmul.f32 %v905, 0.2
        %v921 = vmul.f32 %v908, 0.2
        %v922 = vmul.f32 %v910, 0.2
        %v923 = vmul.f32 %v913, 0.2
        %v924 = vmul.f32 %v915, 0.2
        %v925 = vmax.f32 %v898, %v917
        %v926 = vmax.f32 %v900, %v918
        %v927 = vmax.f32 %v903, %v919
        %v928 = vmax.f32 %v905, %v920
        %v929 = vmax.f32 %v908, %v921
        %v930 = vmax.f32 %v910, %v922
        %v931 = vmax.f32 %v913, %v923
        %v932 = vmax.f32 %v915, %v924
        %v933 = vpack.c.bf16 %v926, %v925
        %v934 = vpack.c.bf16 %v928, %v927
        %v935 = vpack.c.bf16 %v930, %v929
        %v936 = vpack.c.bf16 %v932, %v931
        %v937 = vld [vmem:[#allocation10] sm:$0xff]
        %v938 = vld [vmem:[#allocation10 + $0x8] sm:$0xff]
        %v939 = vld [vmem:[#allocation10 + $0x10] sm:$0xff]
        %v940 = vld [vmem:[#allocation10 + $0x18] sm:$0xff]
        %v941 = vld [vmem:[#allocation10 + $0x20] sm:$0xff]
        %v942 = vld [vmem:[#allocation10 + $0x28] sm:$0xff]
        %v943 = vld [vmem:[#allocation10 + $0x30] sm:$0xff]
        %v944 = vld [vmem:[#allocation10 + $0x38] sm:$0xff]
        %v945 = vld [vmem:[#allocation10 + $0x40] sm:$0xff]
        %v946 = vld [vmem:[#allocation10 + $0x48] sm:$0xff]
        %v947 = vld [vmem:[#allocation10 + $0x50] sm:$0xff]
        %v948 = vld [vmem:[#allocation10 + $0x58] sm:$0xff]
        %v949 = vld [vmem:[#allocation10 + $0x60] sm:$0xff]
        %v950 = vld [vmem:[#allocation10 + $0x68] sm:$0xff]
        %v951 = vld [vmem:[#allocation10 + $0x70] sm:$0xff]
        %v952 = vld [vmem:[#allocation10 + $0x78] sm:$0xff]
        %v953 = vld [vmem:[%s7] sm:$0x3]
        %v955 = vperm.slane %v953, 0
        %v956 = vperm.slane %v953, 1
        %v975 = vunpack.c.l.b16 %v937
        %v976 = vunpack.c.h.b16 %v937
        %v977 = vunpack.c.l.b16 %v938
        %v978 = vunpack.c.h.b16 %v938
        %v979 = vunpack.c.l.b16 %v939
        %v980 = vunpack.c.h.b16 %v939
        %v981 = vunpack.c.l.b16 %v940
        %v982 = vunpack.c.h.b16 %v940
        %v983 = vunpack.c.l.b16 %v941
        %v984 = vunpack.c.h.b16 %v941
        %v985 = vunpack.c.l.b16 %v942
        %v986 = vunpack.c.h.b16 %v942
        %v987 = vunpack.c.l.b16 %v943
        %v988 = vunpack.c.h.b16 %v943
        %v989 = vunpack.c.l.b16 %v944
        %v990 = vunpack.c.h.b16 %v944
        %v991 = vunpack.c.l.b16 %v945
        %v992 = vunpack.c.h.b16 %v945
        %v993 = vunpack.c.l.b16 %v946
        %v994 = vunpack.c.h.b16 %v946
        %v995 = vunpack.c.l.b16 %v947
        %v996 = vunpack.c.h.b16 %v947
        %v997 = vunpack.c.l.b16 %v948
        %v998 = vunpack.c.h.b16 %v948
        %v999 = vunpack.c.l.b16 %v949
        %v1000 = vunpack.c.h.b16 %v949
        %v1001 = vunpack.c.l.b16 %v950
        %v1002 = vunpack.c.h.b16 %v950
        %v1003 = vunpack.c.l.b16 %v951
        %v1004 = vunpack.c.h.b16 %v951
        %v1005 = vunpack.c.l.b16 %v952
        %v1006 = vunpack.c.h.b16 %v952
        %v1007 = vpack.c.b16 %v977, %v975
        %v1008 = vpack.c.b16 %v978, %v976
        %v1009 = vpack.c.b16 %v981, %v979
        %v1010 = vpack.c.b16 %v982, %v980
        %v1011 = vpack.c.b16 %v985, %v983
        %v1012 = vpack.c.b16 %v986, %v984
        %v1013 = vpack.c.b16 %v989, %v987
        %v1014 = vpack.c.b16 %v990, %v988
        %v1015 = vpack.c.b16 %v993, %v991
        %v1016 = vpack.c.b16 %v994, %v992
        %v1017 = vpack.c.b16 %v997, %v995
        %v1018 = vpack.c.b16 %v998, %v996
        %v1019 = vpack.c.b16 %v1001, %v999
        %v1020 = vpack.c.b16 %v1002, %v1000
        %v1021 = vpack.c.b16 %v1005, %v1003
        %v1022 = vpack.c.b16 %v1006, %v1004
        %1039 = vmatpush.bf16.msra.mxu0 %v1021
        %1040 = vmatpush.bf16.msra.mxu0 %v1019
        %1041 = vmatpush.bf16.msra.mxu0 %v1017
        %1042 = vmatpush.bf16.msra.mxu0 %v1015
        %1043 = vmatpush.bf16.msra.mxu0 %v1013
        %1044 = vmatpush.bf16.msra.mxu0 %v1011
        %1045 = vmatpush.bf16.msra.mxu0 %v1009
        %1046 = vmatpush.bf16.msra.mxu0 %v1007
        %1047 = vmatmul.bf16.gmra.mxu0 %v933
        %v1048 = vpop.f32.mrf.mxu0
        %v1049 = vadd.f32 %v955, %v1048
        %v1050 = vpop.f32.mrf.mxu0
        %v1051 = vadd.f32 %v955, %v1050
        %1052 = vmatmul.bf16.gmra.mxu0 %v934
        %v1053 = vpop.f32.mrf.mxu0
        %v1054 = vadd.f32 %v955, %v1053
        %v1055 = vpop.f32.mrf.mxu0
        %v1056 = vadd.f32 %v955, %v1055
        %1057 = vmatmul.bf16.gmra.mxu0 %v935
        %v1058 = vpop.f32.mrf.mxu0
        %v1059 = vadd.f32 %v955, %v1058
        %v1060 = vpop.f32.mrf.mxu0
        %v1061 = vadd.f32 %v955, %v1060
        %1062 = vmatmul.bf16.gmra.mxu0 %v936
        %v1063 = vpop.f32.mrf.mxu0
        %v1064 = vadd.f32 %v955, %v1063
        %v1065 = vpop.f32.mrf.mxu0
        %v1066 = vadd.f32 %v955, %v1065
        %1067 = vdwg.mxu0
        %1068 = vmatpush.bf16.msra.mxu0 %v1022
        %1069 = vmatpush.bf16.msra.mxu0 %v1020
        %1070 = vmatpush.bf16.msra.mxu0 %v1018
        %1071 = vmatpush.bf16.msra.mxu0 %v1016
        %1072 = vmatpush.bf16.msra.mxu0 %v1014
        %1073 = vmatpush.bf16.msra.mxu0 %v1012
        %1074 = vmatpush.bf16.msra.mxu0 %v1010
        %1075 = vmatpush.bf16.msra.mxu0 %v1008
        %1076 = vmatmul.bf16.gmra.mxu0 %v933
        %v1077 = vpop.f32.mrf.mxu0
        %v1078 = vadd.f32 %v956, %v1077
        %v1079 = vpop.f32.mrf.mxu0
        %v1080 = vadd.f32 %v956, %v1079
        %1081 = vmatmul.bf16.gmra.mxu0 %v934
        %v1082 = vpop.f32.mrf.mxu0
        %v1083 = vadd.f32 %v956, %v1082
        %v1084 = vpop.f32.mrf.mxu0
        %v1085 = vadd.f32 %v956, %v1084
        %1086 = vmatmul.bf16.gmra.mxu0 %v935
        %v1087 = vpop.f32.mrf.mxu0
        %v1088 = vadd.f32 %v956, %v1087
        %v1089 = vpop.f32.mrf.mxu0
        %v1090 = vadd.f32 %v956, %v1089
        %1091 = vmatmul.bf16.gmra.mxu0 %v936
        %v1092 = vpop.f32.mrf.mxu0
        %v1093 = vadd.f32 %v956, %v1092
        %v1094 = vpop.f32.mrf.mxu0
        %v1095 = vadd.f32 %v956, %v1094
        %1096 = vdwg.mxu0
        %v1097 = vmul.f32 %v1078, 0.5
        %v1098 = vmul.f32 %v1080, 0.5
        %v1099 = vmul.f32 %v1083, 0.5
        %v1100 = vmul.f32 %v1085, 0.5
        %v1101 = vmul.f32 %v1088, 0.5
        %v1102 = vmul.f32 %v1090, 0.5
        %v1103 = vmul.f32 %v1093, 0.5
        %v1104 = vmul.f32 %v1095, 0.5
        %v1105 = vmul.f32 %v1097, 1.442695
        %v1106 = vpow.pop %v1105
        %v1107 = vmul.f32 %v1098, 1.442695
        %v1108 = vpow.pop %v1107
        %v1109 = vmul.f32 %v1099, 1.442695
        %v1110 = vpow.pop %v1109
        %v1111 = vmul.f32 %v1100, 1.442695
        %v1112 = vpow.pop %v1111
        %v1113 = vmul.f32 %v1101, 1.442695
        %v1114 = vpow.pop %v1113
        %v1115 = vmul.f32 %v1102, 1.442695
        %v1116 = vpow.pop %v1115
        %v1117 = vmul.f32 %v1103, 1.442695
        %v1118 = vpow.pop %v1117
        %v1119 = vmul.f32 %v1104, 1.442695
        %v1120 = vpow.pop %v1119
        %v1121 = vld [vmem:[%s579] sm:$0xff]
        %v1122 = vld [vmem:[%s579 + $0x8] sm:$0xff]
        %v1123 = vld [vmem:[%s579 + $0x10] sm:$0xff]
        %v1124 = vld [vmem:[%s579 + $0x18] sm:$0xff]
        %v1125 = vld [vmem:[%s579 + $0x20] sm:$0xff]
        %v1126 = vld [vmem:[%s579 + $0x28] sm:$0xff]
        %v1127 = vld [vmem:[%s579 + $0x30] sm:$0xff]
        %v1128 = vld [vmem:[%s579 + $0x38] sm:$0xff]
        %v1129 = vmul.f32 %v1106, %v1121
        %v1130 = vmul.f32 %v1108, %v1122
        %v1131 = vmul.f32 %v1110, %v1123
        %v1132 = vmul.f32 %v1112, %v1124
        %v1133 = vmul.f32 %v1114, %v1125
        %v1134 = vmul.f32 %v1116, %v1126
        %v1135 = vmul.f32 %v1118, %v1127
        %v1136 = vmul.f32 %v1120, %v1128
        %v1137 = vadd.f32 %v1049, %v1129
        %v1138 = vadd.f32 %v1051, %v1130
        %v1139 = vadd.f32 %v1054, %v1131
        %v1140 = vadd.f32 %v1056, %v1132
        %v1141 = vadd.f32 %v1059, %v1133
        %v1142 = vadd.f32 %v1061, %v1134
        %v1143 = vadd.f32 %v1064, %v1135
        %v1144 = vadd.f32 %v1066, %v1136
        %v1145 = vpack.c.bf16 %v1138, %v1137
        %v1146 = vpack.c.bf16 %v1140, %v1139
        %v1147 = vpack.c.bf16 %v1142, %v1141
        %v1148 = vpack.c.bf16 %v1144, %v1143
        %v1149 = vld [vmem:[#allocation11] sm:$0xf]
        %v1150 = vld [vmem:[#allocation11 + $0x4] sm:$0xf]
        %v1151 = vld [vmem:[#allocation11 + $0x8] sm:$0xf]
        %v1152 = vld [vmem:[#allocation11 + $0xc] sm:$0xf]
        %v1153 = vld [vmem:[#allocation11 + $0x10] sm:$0xf]
        %v1154 = vld [vmem:[#allocation11 + $0x14] sm:$0xf]
        %v1155 = vld [vmem:[#allocation11 + $0x18] sm:$0xf]
        %v1156 = vld [vmem:[#allocation11 + $0x1c] sm:$0xf]
        %v1157 = vld [vmem:[#allocation11 + $0x20] sm:$0xf]
        %v1158 = vld [vmem:[#allocation11 + $0x24] sm:$0xf]
        %v1159 = vld [vmem:[#allocation11 + $0x28] sm:$0xf]
        %v1160 = vld [vmem:[#allocation11 + $0x2c] sm:$0xf]
        %v1161 = vld [vmem:[#allocation11 + $0x30] sm:$0xf]
        %v1162 = vld [vmem:[#allocation11 + $0x34] sm:$0xf]
        %v1163 = vld [vmem:[#allocation11 + $0x38] sm:$0xf]
        %v1164 = vld [vmem:[#allocation11 + $0x3c] sm:$0xf]
        %v1165 = vld [vmem:[%s9] sm:$0x1]
        %v1167 = vperm.slane %v1165, 0
        %v1185 = vunpack.c.l.b16 %v1149
        %v1186 = vunpack.c.l.b16 %v1150
        %v1187 = vunpack.c.l.b16 %v1151
        %v1188 = vunpack.c.l.b16 %v1152
        %v1189 = vunpack.c.l.b16 %v1153
        %v1190 = vunpack.c.l.b16 %v1154
        %v1191 = vunpack.c.l.b16 %v1155
        %v1192 = vunpack.c.l.b16 %v1156
        %v1193 = vunpack.c.l.b16 %v1157
        %v1194 = vunpack.c.l.b16 %v1158
        %v1195 = vunpack.c.l.b16 %v1159
        %v1196 = vunpack.c.l.b16 %v1160
        %v1197 = vunpack.c.l.b16 %v1161
        %v1198 = vunpack.c.l.b16 %v1162
        %v1199 = vunpack.c.l.b16 %v1163
        %v1200 = vunpack.c.l.b16 %v1164
        %v1201 = vpack.c.b16 %v1186, %v1185
        %v1202 = vpack.c.b16 %v1188, %v1187
        %v1203 = vpack.c.b16 %v1190, %v1189
        %v1204 = vpack.c.b16 %v1192, %v1191
        %v1205 = vpack.c.b16 %v1194, %v1193
        %v1206 = vpack.c.b16 %v1196, %v1195
        %v1207 = vpack.c.b16 %v1198, %v1197
        %v1208 = vpack.c.b16 %v1200, %v1199
        %1217 = vmatpush.bf16.msra.mxu0 %v1208
        %1218 = vmatpush.bf16.msra.mxu0 %v1207
        %1219 = vmatpush.bf16.msra.mxu0 %v1206
        %1220 = vmatpush.bf16.msra.mxu0 %v1205
        %1221 = vmatpush.bf16.msra.mxu0 %v1204
        %1222 = vmatpush.bf16.msra.mxu0 %v1203
        %1223 = vmatpush.bf16.msra.mxu0 %v1202
        %1224 = vmatpush.bf16.msra.mxu0 %v1201
        %1225 = vmatmul.bf16.gmra.mxu0 %v1145
        %v1226 = vpop.f32.mrf.mxu0
        %v1227 = vadd.f32 %v1167, %v1226
        %v1228 = vpop.f32.mrf.mxu0
        %v1229 = vadd.f32 %v1167, %v1228
        %1230 = vmatmul.bf16.gmra.mxu0 %v1146
        %v1231 = vpop.f32.mrf.mxu0
        %v1232 = vadd.f32 %v1167, %v1231
        %v1233 = vpop.f32.mrf.mxu0
        %v1234 = vadd.f32 %v1167, %v1233
        %1235 = vmatmul.bf16.gmra.mxu0 %v1147
        %v1236 = vpop.f32.mrf.mxu0
        %v1237 = vadd.f32 %v1167, %v1236
        %v1238 = vpop.f32.mrf.mxu0
        %v1239 = vadd.f32 %v1167, %v1238
        %1240 = vmatmul.bf16.gmra.mxu0 %v1148
        %v1241 = vpop.f32.mrf.mxu0
        %v1242 = vadd.f32 %v1167, %v1241
        %v1243 = vpop.f32.mrf.mxu0
        %v1244 = vadd.f32 %v1167, %v1243
        %1245 = vdwg.mxu0
        %v1246 = vmul.f32 %v1227, 0.2
        %v1247 = vmul.f32 %v1229, 0.2
        %v1248 = vmul.f32 %v1232, 0.2
        %v1249 = vmul.f32 %v1234, 0.2
        %v1250 = vmul.f32 %v1237, 0.2
        %v1251 = vmul.f32 %v1239, 0.2
        %v1252 = vmul.f32 %v1242, 0.2
        %v1253 = vmul.f32 %v1244, 0.2
        %v1254 = vmax.f32 %v1227, %v1246
        %v1255 = vmax.f32 %v1229, %v1247
        %v1256 = vmax.f32 %v1232, %v1248
        %v1257 = vmax.f32 %v1234, %v1249
        %v1258 = vmax.f32 %v1237, %v1250
        %v1259 = vmax.f32 %v1239, %v1251
        %v1260 = vmax.f32 %v1242, %v1252
        %v1261 = vmax.f32 %v1244, %v1253
        %v1262 = vpack.c.bf16 %v1255, %v1254
        %v1263 = vpack.c.bf16 %v1257, %v1256
        %v1264 = vpack.c.bf16 %v1259, %v1258
        %v1265 = vpack.c.bf16 %v1261, %v1260
        %v1266 = vld [vmem:[#allocation13] sm:$0xf]
        %v1267 = vld [vmem:[#allocation13 + $0x4] sm:$0xf]
        %v1268 = vld [vmem:[#allocation13 + $0x8] sm:$0xf]
        %v1269 = vld [vmem:[#allocation13 + $0xc] sm:$0xf]
        %v1270 = vld [vmem:[#allocation13 + $0x10] sm:$0xf]
        %v1271 = vld [vmem:[#allocation13 + $0x14] sm:$0xf]
        %v1272 = vld [vmem:[#allocation13 + $0x18] sm:$0xf]
        %v1273 = vld [vmem:[#allocation13 + $0x1c] sm:$0xf]
        %v1274 = vld [vmem:[#allocation13 + $0x20] sm:$0xf]
        %v1275 = vld [vmem:[#allocation13 + $0x24] sm:$0xf]
        %v1276 = vld [vmem:[#allocation13 + $0x28] sm:$0xf]
        %v1277 = vld [vmem:[#allocation13 + $0x2c] sm:$0xf]
        %v1278 = vld [vmem:[#allocation13 + $0x30] sm:$0xf]
        %v1279 = vld [vmem:[#allocation13 + $0x34] sm:$0xf]
        %v1280 = vld [vmem:[#allocation13 + $0x38] sm:$0xf]
        %v1281 = vld [vmem:[#allocation13 + $0x3c] sm:$0xf]
        %v1282 = vld [vmem:[%s11] sm:$0x1]
        %v1284 = vperm.slane %v1282, 0
        %v1302 = vunpack.c.l.b16 %v1266
        %v1303 = vunpack.c.l.b16 %v1267
        %v1304 = vunpack.c.l.b16 %v1268
        %v1305 = vunpack.c.l.b16 %v1269
        %v1306 = vunpack.c.l.b16 %v1270
        %v1307 = vunpack.c.l.b16 %v1271
        %v1308 = vunpack.c.l.b16 %v1272
        %v1309 = vunpack.c.l.b16 %v1273
        %v1310 = vunpack.c.l.b16 %v1274
        %v1311 = vunpack.c.l.b16 %v1275
        %v1312 = vunpack.c.l.b16 %v1276
        %v1313 = vunpack.c.l.b16 %v1277
        %v1314 = vunpack.c.l.b16 %v1278
        %v1315 = vunpack.c.l.b16 %v1279
        %v1316 = vunpack.c.l.b16 %v1280
        %v1317 = vunpack.c.l.b16 %v1281
        %v1318 = vpack.c.b16 %v1303, %v1302
        %v1319 = vpack.c.b16 %v1305, %v1304
        %v1320 = vpack.c.b16 %v1307, %v1306
        %v1321 = vpack.c.b16 %v1309, %v1308
        %v1322 = vpack.c.b16 %v1311, %v1310
        %v1323 = vpack.c.b16 %v1313, %v1312
        %v1324 = vpack.c.b16 %v1315, %v1314
        %v1325 = vpack.c.b16 %v1317, %v1316
        %1334 = vmatpush.bf16.msra.mxu0 %v1325
        %1335 = vmatpush.bf16.msra.mxu0 %v1324
        %1336 = vmatpush.bf16.msra.mxu0 %v1323
        %1337 = vmatpush.bf16.msra.mxu0 %v1322
        %1338 = vmatpush.bf16.msra.mxu0 %v1321
        %1339 = vmatpush.bf16.msra.mxu0 %v1320
        %1340 = vmatpush.bf16.msra.mxu0 %v1319
        %1341 = vmatpush.bf16.msra.mxu0 %v1318
        %1342 = vmatmul.bf16.gmra.mxu0 %v1262
        %v1343 = vpop.f32.mrf.mxu0
        %v1344 = vadd.f32 %v1284, %v1343
        %v1345 = vpop.f32.mrf.mxu0
        %v1346 = vadd.f32 %v1284, %v1345
        %1347 = vmatmul.bf16.gmra.mxu0 %v1263
        %v1348 = vpop.f32.mrf.mxu0
        %v1349 = vadd.f32 %v1284, %v1348
        %v1350 = vpop.f32.mrf.mxu0
        %v1351 = vadd.f32 %v1284, %v1350
        %1352 = vmatmul.bf16.gmra.mxu0 %v1264
        %v1353 = vpop.f32.mrf.mxu0
        %v1354 = vadd.f32 %v1284, %v1353
        %v1355 = vpop.f32.mrf.mxu0
        %v1356 = vadd.f32 %v1284, %v1355
        %1357 = vmatmul.bf16.gmra.mxu0 %v1265
        %v1358 = vpop.f32.mrf.mxu0
        %v1359 = vadd.f32 %v1284, %v1358
        %v1360 = vpop.f32.mrf.mxu0
        %v1361 = vadd.f32 %v1284, %v1360
        %1362 = vdwg.mxu0
        %v1363 = vmul.f32 %v1344, 0.2
        %v1364 = vmul.f32 %v1346, 0.2
        %v1365 = vmul.f32 %v1349, 0.2
        %v1366 = vmul.f32 %v1351, 0.2
        %v1367 = vmul.f32 %v1354, 0.2
        %v1368 = vmul.f32 %v1356, 0.2
        %v1369 = vmul.f32 %v1359, 0.2
        %v1370 = vmul.f32 %v1361, 0.2
        %v1371 = vmax.f32 %v1344, %v1363
        %v1372 = vmax.f32 %v1346, %v1364
        %v1373 = vmax.f32 %v1349, %v1365
        %v1374 = vmax.f32 %v1351, %v1366
        %v1375 = vmax.f32 %v1354, %v1367
        %v1376 = vmax.f32 %v1356, %v1368
        %v1377 = vmax.f32 %v1359, %v1369
        %v1378 = vmax.f32 %v1361, %v1370
        %v1379 = vpack.c.bf16 %v1372, %v1371
        %v1380 = vpack.c.bf16 %v1374, %v1373
        %v1381 = vpack.c.bf16 %v1376, %v1375
        %v1382 = vpack.c.bf16 %v1378, %v1377
        %v1383 = vld [vmem:[#allocation14] sm:$0xf]
        %v1384 = vld [vmem:[#allocation14 + $0x4] sm:$0xf]
        %v1385 = vld [vmem:[#allocation14 + $0x8] sm:$0xf]
        %v1386 = vld [vmem:[#allocation14 + $0xc] sm:$0xf]
        %v1387 = vld [vmem:[#allocation14 + $0x10] sm:$0xf]
        %v1388 = vld [vmem:[#allocation14 + $0x14] sm:$0xf]
        %v1389 = vld [vmem:[#allocation14 + $0x18] sm:$0xf]
        %v1390 = vld [vmem:[#allocation14 + $0x1c] sm:$0xf]
        %v1391 = vld [vmem:[#allocation14 + $0x20] sm:$0xf]
        %v1392 = vld [vmem:[#allocation14 + $0x24] sm:$0xf]
        %v1393 = vld [vmem:[#allocation14 + $0x28] sm:$0xf]
        %v1394 = vld [vmem:[#allocation14 + $0x2c] sm:$0xf]
        %v1395 = vld [vmem:[#allocation14 + $0x30] sm:$0xf]
        %v1396 = vld [vmem:[#allocation14 + $0x34] sm:$0xf]
        %v1397 = vld [vmem:[#allocation14 + $0x38] sm:$0xf]
        %v1398 = vld [vmem:[#allocation14 + $0x3c] sm:$0xf]
        %v1399 = vld [vmem:[%s13] sm:$0x1]
        %v1401 = vperm.slane %v1399, 0
        %v1419 = vunpack.c.l.b16 %v1383
        %v1420 = vunpack.c.l.b16 %v1384
        %v1421 = vunpack.c.l.b16 %v1385
        %v1422 = vunpack.c.l.b16 %v1386
        %v1423 = vunpack.c.l.b16 %v1387
        %v1424 = vunpack.c.l.b16 %v1388
        %v1425 = vunpack.c.l.b16 %v1389
        %v1426 = vunpack.c.l.b16 %v1390
        %v1427 = vunpack.c.l.b16 %v1391
        %v1428 = vunpack.c.l.b16 %v1392
        %v1429 = vunpack.c.l.b16 %v1393
        %v1430 = vunpack.c.l.b16 %v1394
        %v1431 = vunpack.c.l.b16 %v1395
        %v1432 = vunpack.c.l.b16 %v1396
        %v1433 = vunpack.c.l.b16 %v1397
        %v1434 = vunpack.c.l.b16 %v1398
        %v1435 = vpack.c.b16 %v1420, %v1419
        %v1436 = vpack.c.b16 %v1422, %v1421
        %v1437 = vpack.c.b16 %v1424, %v1423
        %v1438 = vpack.c.b16 %v1426, %v1425
        %v1439 = vpack.c.b16 %v1428, %v1427
        %v1440 = vpack.c.b16 %v1430, %v1429
        %v1441 = vpack.c.b16 %v1432, %v1431
        %v1442 = vpack.c.b16 %v1434, %v1433
        %1451 = vmatpush.bf16.msra.mxu0 %v1442
        %1452 = vmatpush.bf16.msra.mxu0 %v1441
        %1453 = vmatpush.bf16.msra.mxu0 %v1440
        %1454 = vmatpush.bf16.msra.mxu0 %v1439
        %1455 = vmatpush.bf16.msra.mxu0 %v1438
        %1456 = vmatpush.bf16.msra.mxu0 %v1437
        %1457 = vmatpush.bf16.msra.mxu0 %v1436
        %1458 = vmatpush.bf16.msra.mxu0 %v1435
        %1459 = vmatmul.bf16.gmra.mxu0 %v1379
        %v1460 = vpop.f32.mrf.mxu0
        %v1461 = vadd.f32 %v1401, %v1460
        %v1462 = vpop.f32.mrf.mxu0
        %v1463 = vadd.f32 %v1401, %v1462
        %1464 = vmatmul.bf16.gmra.mxu0 %v1380
        %v1465 = vpop.f32.mrf.mxu0
        %v1466 = vadd.f32 %v1401, %v1465
        %v1467 = vpop.f32.mrf.mxu0
        %v1468 = vadd.f32 %v1401, %v1467
        %1469 = vmatmul.bf16.gmra.mxu0 %v1381
        %v1470 = vpop.f32.mrf.mxu0
        %v1471 = vadd.f32 %v1401, %v1470
        %v1472 = vpop.f32.mrf.mxu0
        %v1473 = vadd.f32 %v1401, %v1472
        %1474 = vmatmul.bf16.gmra.mxu0 %v1382
        %v1475 = vpop.f32.mrf.mxu0
        %v1476 = vadd.f32 %v1401, %v1475
        %v1477 = vpop.f32.mrf.mxu0
        %v1478 = vadd.f32 %v1401, %v1477
        %1479 = vdwg.mxu0
        %v1480 = vxor.u32 %v1461, 2147483648
        %v1481 = vxor.u32 %v1463, 2147483648
        %v1482 = vxor.u32 %v1466, 2147483648
        %v1483 = vxor.u32 %v1468, 2147483648
        %v1484 = vxor.u32 %v1471, 2147483648
        %v1485 = vxor.u32 %v1473, 2147483648
        %v1486 = vxor.u32 %v1476, 2147483648
        %v1487 = vxor.u32 %v1478, 2147483648
        %v1488 = vmul.f32 %v1480, 1.442695
        %v1489 = vpow.pop %v1488
        %v1490 = vmul.f32 %v1481, 1.442695
        %v1491 = vpow.pop %v1490
        %v1492 = vmul.f32 %v1482, 1.442695
        %v1493 = vpow.pop %v1492
        %v1494 = vmul.f32 %v1483, 1.442695
        %v1495 = vpow.pop %v1494
        %v1496 = vmul.f32 %v1484, 1.442695
        %v1497 = vpow.pop %v1496
        %v1498 = vmul.f32 %v1485, 1.442695
        %v1499 = vpow.pop %v1498
        %v1500 = vmul.f32 %v1486, 1.442695
        %v1501 = vpow.pop %v1500
        %v1502 = vmul.f32 %v1487, 1.442695
        %v1503 = vpow.pop %v1502
        %v1504 = vadd.f32 %v1489, 1.0
        %v1505 = vadd.f32 %v1491, 1.0
        %v1506 = vadd.f32 %v1493, 1.0
        %v1507 = vadd.f32 %v1495, 1.0
        %v1508 = vadd.f32 %v1497, 1.0
        %v1509 = vadd.f32 %v1499, 1.0
        %v1510 = vadd.f32 %v1501, 1.0
        %v1511 = vadd.f32 %v1503, 1.0
        %v1512 = vrcp.pop %v1504
        %v1513 = vmul.f32 %v1504, %v1512
        %v1514 = vsub.f32 1.0, %v1513
        %v1515 = vmul.f32 %v1512, %v1514
        %v1516 = vadd.f32 %v1512, %v1515
        %vm1517 = vweird.f32 %v1504
        %vm1518 = vweird.f32 %v1512
        %vm1519 = vmor %vm1517, %vm1518
        %v1520 = vsel %vm1519, %v1512, %v1516
        %v1521 = vand.u32 2147483647, %v1504
        %vm1522 = vcmp.eq.f32.partialorder %v1521, 8.507059e+37
        %v1523 = vand.u32 %v1504, 2147483648
        %v1524 = vor.u32 1.1754944e-38, %v1523
        %v1525 = vsel %vm1522, %v1524, %v1520
        %v1526 = vmul.f32 1.0, %v1525
        %v1527 = vrcp.pop %v1505
        %v1528 = vmul.f32 %v1505, %v1527
        %v1529 = vsub.f32 1.0, %v1528
        %v1530 = vmul.f32 %v1527, %v1529
        %v1531 = vadd.f32 %v1527, %v1530
        %vm1532 = vweird.f32 %v1505
        %vm1533 = vweird.f32 %v1527
        %vm1534 = vmor %vm1532, %vm1533
        %v1535 = vsel %vm1534, %v1527, %v1531
        %v1536 = vand.u32 2147483647, %v1505
        %vm1537 = vcmp.eq.f32.partialorder %v1536, 8.507059e+37
        %v1538 = vand.u32 %v1505, 2147483648
        %v1539 = vor.u32 1.1754944e-38, %v1538
        %v1540 = vsel %vm1537, %v1539, %v1535
        %v1541 = vmul.f32 1.0, %v1540
        %v1542 = vrcp.pop %v1506
        %v1543 = vmul.f32 %v1506, %v1542
        %v1544 = vsub.f32 1.0, %v1543
        %v1545 = vmul.f32 %v1542, %v1544
        %v1546 = vadd.f32 %v1542, %v1545
        %vm1547 = vweird.f32 %v1506
        %vm1548 = vweird.f32 %v1542
        %vm1549 = vmor %vm1547, %vm1548
        %v1550 = vsel %vm1549, %v1542, %v1546
        %v1551 = vand.u32 2147483647, %v1506
        %vm1552 = vcmp.eq.f32.partialorder %v1551, 8.507059e+37
        %v1553 = vand.u32 %v1506, 2147483648
        %v1554 = vor.u32 1.1754944e-38, %v1553
        %v1555 = vsel %vm1552, %v1554, %v1550
        %v1556 = vmul.f32 1.0, %v1555
        %v1557 = vrcp.pop %v1507
        %v1558 = vmul.f32 %v1507, %v1557
        %v1559 = vsub.f32 1.0, %v1558
        %v1560 = vmul.f32 %v1557, %v1559
        %v1561 = vadd.f32 %v1557, %v1560
        %vm1562 = vweird.f32 %v1507
        %vm1563 = vweird.f32 %v1557
        %vm1564 = vmor %vm1562, %vm1563
        %v1565 = vsel %vm1564, %v1557, %v1561
        %v1566 = vand.u32 2147483647, %v1507
        %vm1567 = vcmp.eq.f32.partialorder %v1566, 8.507059e+37
        %v1568 = vand.u32 %v1507, 2147483648
        %v1569 = vor.u32 1.1754944e-38, %v1568
        %v1570 = vsel %vm1567, %v1569, %v1565
        %v1571 = vmul.f32 1.0, %v1570
        %v1572 = vrcp.pop %v1508
        %v1573 = vmul.f32 %v1508, %v1572
        %v1574 = vsub.f32 1.0, %v1573
        %v1575 = vmul.f32 %v1572, %v1574
        %v1576 = vadd.f32 %v1572, %v1575
        %vm1577 = vweird.f32 %v1508
        %vm1578 = vweird.f32 %v1572
        %vm1579 = vmor %vm1577, %vm1578
        %v1580 = vsel %vm1579, %v1572, %v1576
        %v1581 = vand.u32 2147483647, %v1508
        %vm1582 = vcmp.eq.f32.partialorder %v1581, 8.507059e+37
        %v1583 = vand.u32 %v1508, 2147483648
        %v1584 = vor.u32 1.1754944e-38, %v1583
        %v1585 = vsel %vm1582, %v1584, %v1580
        %v1586 = vmul.f32 1.0, %v1585
        %v1587 = vrcp.pop %v1509
        %v1588 = vmul.f32 %v1509, %v1587
        %v1589 = vsub.f32 1.0, %v1588
        %v1590 = vmul.f32 %v1587, %v1589
        %v1591 = vadd.f32 %v1587, %v1590
        %vm1592 = vweird.f32 %v1509
        %vm1593 = vweird.f32 %v1587
        %vm1594 = vmor %vm1592, %vm1593
        %v1595 = vsel %vm1594, %v1587, %v1591
        %v1596 = vand.u32 2147483647, %v1509
        %vm1597 = vcmp.eq.f32.partialorder %v1596, 8.507059e+37
        %v1598 = vand.u32 %v1509, 2147483648
        %v1599 = vor.u32 1.1754944e-38, %v1598
        %v1600 = vsel %vm1597, %v1599, %v1595
        %v1601 = vmul.f32 1.0, %v1600
        %v1602 = vrcp.pop %v1510
        %v1603 = vmul.f32 %v1510, %v1602
        %v1604 = vsub.f32 1.0, %v1603
        %v1605 = vmul.f32 %v1602, %v1604
        %v1606 = vadd.f32 %v1602, %v1605
        %vm1607 = vweird.f32 %v1510
        %vm1608 = vweird.f32 %v1602
        %vm1609 = vmor %vm1607, %vm1608
        %v1610 = vsel %vm1609, %v1602, %v1606
        %v1611 = vand.u32 2147483647, %v1510
        %vm1612 = vcmp.eq.f32.partialorder %v1611, 8.507059e+37
        %v1613 = vand.u32 %v1510, 2147483648
        %v1614 = vor.u32 1.1754944e-38, %v1613
        %v1615 = vsel %vm1612, %v1614, %v1610
        %v1616 = vmul.f32 1.0, %v1615
        %v1617 = vrcp.pop %v1511
        %v1618 = vmul.f32 %v1511, %v1617
        %v1619 = vsub.f32 1.0, %v1618
        %v1620 = vmul.f32 %v1617, %v1619
        %v1621 = vadd.f32 %v1617, %v1620
        %vm1622 = vweird.f32 %v1511
        %vm1623 = vweird.f32 %v1617
        %vm1624 = vmor %vm1622, %vm1623
        %v1625 = vsel %vm1624, %v1617, %v1621
        %v1626 = vand.u32 2147483647, %v1511
        %vm1627 = vcmp.eq.f32.partialorder %v1626, 8.507059e+37
        %v1628 = vand.u32 %v1511, 2147483648
        %v1629 = vor.u32 1.1754944e-38, %v1628
        %v1630 = vsel %vm1627, %v1629, %v1625
        %v1631 = vmul.f32 1.0, %v1630
        %1632 = vst [vmem:[%s659] sm:$0xff] %v1526
        %1633 = vst [vmem:[%s659 + $0x8] sm:$0xff] %v1541
        %1634 = vst [vmem:[%s659 + $0x10] sm:$0xff] %v1556
        %1635 = vst [vmem:[%s659 + $0x18] sm:$0xff] %v1571
        %1636 = vst [vmem:[%s659 + $0x20] sm:$0xff] %v1586
        %1637 = vst [vmem:[%s659 + $0x28] sm:$0xff] %v1601
        %1638 = vst [vmem:[%s659 + $0x30] sm:$0xff] %v1616
        %1639 = vst [vmem:[%s659 + $0x38] sm:$0xff] %v1631
        %1640 = vst [vmem:[%s666] sm:$0xff] %v1049
        %1641 = vst [vmem:[%s666 + $0x8] sm:$0xff] %v1078
        %1642 = vst [vmem:[%s666 + $0x10] sm:$0xff] %v1051
        %1643 = vst [vmem:[%s666 + $0x18] sm:$0xff] %v1080
        %1644 = vst [vmem:[%s666 + $0x20] sm:$0xff] %v1054
        %1645 = vst [vmem:[%s666 + $0x28] sm:$0xff] %v1083
        %1646 = vst [vmem:[%s666 + $0x30] sm:$0xff] %v1056
        %1647 = vst [vmem:[%s666 + $0x38] sm:$0xff] %v1085
        %1648 = vst [vmem:[%s666 + $0x40] sm:$0xff] %v1059
        %1649 = vst [vmem:[%s666 + $0x48] sm:$0xff] %v1088
        %1650 = vst [vmem:[%s666 + $0x50] sm:$0xff] %v1061
        %1651 = vst [vmem:[%s666 + $0x58] sm:$0xff] %v1090
        %1652 = vst [vmem:[%s666 + $0x60] sm:$0xff] %v1064
        %1653 = vst [vmem:[%s666 + $0x68] sm:$0xff] %v1093
        %1654 = vst [vmem:[%s666 + $0x70] sm:$0xff] %v1066
        %1655 = vst [vmem:[%s666 + $0x78] sm:$0xff] %v1095
        %s1656 = sand.u32 %s354, 1
        %s1657 = scalar_lea.sflag [#allocation4], %s1656
        %s1658 = sand.u32 %s354, 1
        %s1659 = smul.addr %s1658, 64
        %s1660 = scalar_lea.vmem [#allocation16], %s1659
        %s1661 = sand.u32 %s380, 1
        %s1662 = scalar_lea.sflag [#allocation18], %s1661
        %s1663 = sand.u32 %s380, 1
        %s1664 = smul.addr %s1663, 128
        %s1665 = scalar_lea.vmem [#allocation17], %s1664
        // Predicated region
        $region109: #{tpu_custom_call.1} parent=75 // pred_check
          %p1666 = pneg %p364
        $region110: #{tpu_custom_call.1} parent=75 // pred_check_branch
          %1668 = sbr.rel (%p1666) target = $region112
        $region111: #{tpu_custom_call.1} parent=75 // pred_region
          %s1669 = smul.u32 8, %s42
          %1671 = vsyncadd %s1657, 0
          %s1672 = smul.addr %s1669, 8
          %s1673 = scalar_lea.hbm %s14, %s1672
          %s1674 = sshll.u32 %s1660, 4
          %s1675 = int_to_ptr.vmem [resolvable:$true] %s1674
          %s1676 = sshll.u32 %s1673, 4
          %s1677 = int_to_ptr.hbm [resolvable:$true] %s1676
          %1682 = dma.vmem_to_hbm [thread:$0]  %s1675, 1024, %s1677, %s1657, 128, 128, 8
        $region112: #{tpu_custom_call.1} parent=75 // pred_fallthru
          _
        // Predicated region
        $region113: #{tpu_custom_call.1} parent=75 // pred_check
          %p1683 = pneg %p390
        $region114: #{tpu_custom_call.1} parent=75 // pred_check_branch
          %1685 = sbr.rel (%p1683) target = $region116
        $region115: #{tpu_custom_call.1} parent=75 // pred_region
          %s1686 = smul.u32 8, %s42
          %1688 = vsyncadd %s1662, 0
          %s1689 = smul.addr %s1686, 2
          %s1690 = smul.addr %s1689, 8
          %s1691 = scalar_lea.hbm %s15, %s1690
          %s1692 = sshll.u32 %s1665, 4
          %s1693 = int_to_ptr.vmem [resolvable:$true] %s1692
          %s1694 = sshll.u32 %s1691, 4
          %s1695 = int_to_ptr.hbm [resolvable:$true] %s1694
          %1700 = dma.vmem_to_hbm [thread:$0]  %s1693, 2048, %s1695, %s1662, 256, 256, 16
        $region116: #{tpu_custom_call.1} parent=75 // pred_fallthru
          _
      $region76: #{tpu_custom_call.1} parent=5 // pred_fallthru
        _
      %p1701 = scmp.le.s32.totalorder 2, %s37
      // Predicated region
      $region117: #{tpu_custom_call.1} parent=5 // pred_check
        %p1702 = pneg %p1701
      $region118: #{tpu_custom_call.1} parent=5 // pred_check_branch
        %1704 = sbr.rel (%p1702) target = $region120
      $region119: #{tpu_custom_call.1} parent=5 // pred_region
        %s1705 = ssub.s32 %s37, 2
        // Predicated region
        $region121: #{tpu_custom_call.1} parent=119 // pred_check
          %p1706 = pneg %p370
        $region122: #{tpu_custom_call.1} parent=119 // pred_check_branch
          %1708 = sbr.rel (%p1706) target = $region124
        $region123: #{tpu_custom_call.1} parent=119 // pred_region
          %s1709 = sand.u32 %s355, 1
          %s1710 = scalar_lea.sflag [#allocation4], %s1709
          %s1711 = sand.u32 %s355, 1
          %s1712 = smul.addr %s1711, 64
          %s1713 = scalar_lea.vmem [#allocation16], %s1712
          %1715 = dma.done %s1710, 1024
        $region124: #{tpu_custom_call.1} parent=119 // pred_fallthru
          _
        // Predicated region
        $region125: #{tpu_custom_call.1} parent=119 // pred_check
          %p1716 = pneg %p396
        $region126: #{tpu_custom_call.1} parent=119 // pred_check_branch
          %1718 = sbr.rel (%p1716) target = $region128
        $region127: #{tpu_custom_call.1} parent=119 // pred_region
          %s1719 = sand.u32 %s381, 1
          %s1720 = scalar_lea.sflag [#allocation18], %s1719
          %s1721 = sand.u32 %s381, 1
          %s1722 = smul.addr %s1721, 128
          %s1723 = scalar_lea.vmem [#allocation17], %s1722
          %1725 = dma.done %s1720, 2048
        $region128: #{tpu_custom_call.1} parent=119 // pred_fallthru
          _
      $region120: #{tpu_custom_call.1} parent=5 // pred_fallthru
        _
    $region6: #{tpu_custom_call.1} parent=1 // loop_footer
      %s41 = sadd.s32 1, %s37
    $region7: #{tpu_custom_call.1} parent=1 // loop_footer_branch
      %36 = sbr.rel target = $region3
    $region8: #{tpu_custom_call.1} parent=1 // loop_exit
      _
    %1726 = vsyncpa [#allocation3], 1
    %s1727 = scalar_lea.sflag [#allocation3], 1
    %1728 = vsyncpa %s1727, 1
    %1729 = vsyncpa [#allocation6], 1
    %s1730 = scalar_lea.sflag [#allocation6], 1
    %1731 = vsyncpa %s1730, 1
    %1732 = vsyncpa [#allocation9], 1
    %1733 = vsyncpa [#allocation12], 1
    %1734 = vsyncpa [#allocation15], 1
    %1735 = vsyncpa [#allocation4], 1
    %s1736 = scalar_lea.sflag [#allocation4], 1
    %1737 = vsyncpa %s1736, 1
    %1738 = vsyncpa [#allocation18], 1
    %s1739 = scalar_lea.sflag [#allocation18], 1
    %1740 = vsyncpa %s1739, 1

</llo_original>
